<compile_context>
chip_gen: v5e
topology: v5e:2x2
jax: 0.10.0
libtpu: 0.0.40
codegen_flags: <defaults>
</compile_context>

<pallas_src>
import jax
import jax.numpy as jnp
from jax import lax
from jax.experimental import pallas as pl
from jax.experimental.pallas import tpu as pltpu

EPS = 1e-5


# ---------------------------------------------------------------------------
# In-kernel helpers
# ---------------------------------------------------------------------------
def _conv3x3_im2col(xpad, w_ref):
    """3x3 'same' conv of a zero-padded (1, Hp, Wp, C) image as ONE MXU matmul.

    Builds the (H*W, 9*C) im2col patch with static slices + one lane-concat
    (K = 9*C instead of nine K=C matmuls), then a single jnp.dot.
    """
    _, Hp, Wp, C = xpad.shape
    H, W = Hp - 2, Wp - 2
    taps = [
        xpad[:, dh:dh + H, dw:dw + W, :].reshape(H * W, C)
        for dh in range(3) for dw in range(3)
    ]
    patch = jnp.concatenate(taps, axis=1)                       # (H*W, 9C)
    return jnp.dot(patch, w_ref[...],                           # (H*W, C) f32
                   preferred_element_type=jnp.float32)


def _to_lane_dense(y, H, W, C):
    """(H*W, C) -> (H, W*C): lane-dense layout for unmasked full-width stores.

    Uses only minor-preserving reshapes, static slices and a lane-concat so it
    always lowers (no minor-dim-changing reshape).
    """
    y3 = y.reshape(H, W, C)
    cols = [y3[:, w:w + 1, :].reshape(H, C) for w in range(W)]
    return jnp.concatenate(cols, axis=1)                        # (H, W*C)


def _partial_bn_stats(y, C):
    """Per-image partial BN statistics: (1, 2, C) = [sum, sum of squares]."""
    s = jnp.sum(y, axis=0, keepdims=True)
    ss = jnp.sum(y * y, axis=0, keepdims=True)
    return jnp.concatenate([s, ss], axis=0).reshape(1, 2, C)


def _zero_pad_border(pad_ref, Hp, Wp, C):
    """Zero only the 1-element border of the padded scratch (interior is overwritten)."""
    pad_ref[:, 0:1, :, :] = jnp.zeros((1, 1, Wp, C), jnp.float32)
    pad_ref[:, Hp - 1:Hp, :, :] = jnp.zeros((1, 1, Wp, C), jnp.float32)
    pad_ref[:, :, 0:1, :] = jnp.zeros((1, Hp, 1, C), jnp.float32)
    pad_ref[:, :, Wp - 1:Wp, :] = jnp.zeros((1, Hp, 1, C), jnp.float32)


# ---------------------------------------------------------------------------
# Kernels (grid = (N,), one image per step, grid axis "parallel")
# ---------------------------------------------------------------------------
def _conv1_kernel(x_ref, w_ref, out_ref, stats_ref, pad_ref):
    # x_ref    : (1, H, W, C)   unpadded NHWC input image
    # out_ref  : (1, H, W*C)    raw conv1 output (pre-BN), lane-dense
    # stats_ref: (1, 2, C)      partial BN1 statistics
    # pad_ref  : (1, Hp, Wp, C) VMEM scratch for the zero-padded input
    _, H, W, C = x_ref.shape
    Hp, Wp = H + 2, W + 2

    _zero_pad_border(pad_ref, Hp, Wp, C)
    pad_ref[:, 1:H + 1, 1:W + 1, :] = x_ref[...].astype(jnp.float32)

    y = _conv3x3_im2col(pad_ref[...], w_ref)
    stats_ref[...] = _partial_bn_stats(y, C)
    out_ref[...] = _to_lane_dense(y, H, W, C).reshape(1, H, W * C)


def _bn_relu_conv2_kernel(y1_ref, s1_ref, t1_ref, w_ref, out_ref, stats_ref,
                          pad_ref):
    # y1_ref   : (1, H, W, C) raw conv1 output (NHWC view of the lane-dense slab)
    # s1/t1    : (1, C) folded BN1 scale / shift (gamma*rsqrt(var+eps), beta-mean*scale)
    # out_ref  : (1, H, W*C) raw conv2 output (pre-BN), lane-dense
    # stats_ref: (1, 2, C) partial BN2 statistics
    # pad_ref  : (1, Hp, Wp, C) VMEM scratch for the zero-padded BN1+ReLU activation
    _, H, W, C = y1_ref.shape
    Hp, Wp = H + 2, W + 2

    # BN1 + ReLU folded into a single FMA (per-channel scale/shift precomputed).
    act = jnp.maximum(y1_ref[...] * s1_ref[...] + t1_ref[...], 0.0)   # (1,H,W,C)

    _zero_pad_border(pad_ref, Hp, Wp, C)
    pad_ref[:, 1:H + 1, 1:W + 1, :] = act

    y2 = _conv3x3_im2col(pad_ref[...], w_ref)
    stats_ref[...] = _partial_bn_stats(y2, C)
    out_ref[...] = _to_lane_dense(y2, H, W, C).reshape(1, H, W * C)


def _bn_add_relu_kernel(y2_ref, res_ref, s2_ref, t2_ref, out_ref):
    # Fully lane-dense elementwise epilogue: out = relu(y2*scale2 + shift2 + residual)
    out = y2_ref[...] * s2_ref[...] + t2_ref[...] + res_ref[...].astype(jnp.float32)
    out_ref[...] = jnp.maximum(out, 0.0).astype(out_ref.dtype)


# ---------------------------------------------------------------------------
# Wrapper
# ---------------------------------------------------------------------------
def _bn_fold(stats, gamma, beta, count):
    """Finalize two-pass BN: per-channel (scale, shift) from partial stats."""
    s = jnp.sum(stats[:, 0, :], axis=0)
    ss = jnp.sum(stats[:, 1, :], axis=0)
    mean = s / count
    var = ss / count - mean * mean          # biased variance (training-mode BN)
    scale = gamma * lax.rsqrt(var + EPS)
    shift = beta - mean * scale
    return scale, shift


@jax.jit
def residual_block(x_nchw, w1, g1, b1, w2, g2, b2):
    """x_nchw: (N, C, H, W); conv weights in PyTorch OIHW layout."""
    N, C, H, W = x_nchw.shape
    assert w1.shape[0] == C, "identity residual requires in_channels == out_channels"
    Hp, Wp, WC = H + 2, W + 2, W * C
    count = float(N * H * W)

    x = jnp.transpose(x_nchw, (0, 2, 3, 1)).astype(jnp.float32)       # NHWC, f32

    # (Cout, Cin, 3, 3) -> (9*Cin, Cout) matching the im2col tap order (dh, dw).
    w1k = jnp.transpose(w1, (2, 3, 1, 0)).reshape(9 * C, C).astype(jnp.float32)
    w2k = jnp.transpose(w2, (2, 3, 1, 0)).reshape(9 * C, C).astype(jnp.float32)

    cparams = pltpu.CompilerParams(
        dimension_semantics=("parallel",),        # megacore: split batch across TCs
    )

    # ---- pass 1: pad (in VMEM) + conv1 + partial BN1 stats ------------------
    y1raw, stats1 = pl.pallas_call(
        _conv1_kernel,
        grid=(N,),
        in_specs=[
            pl.BlockSpec((1, H, W, C), lambda n: (n, 0, 0, 0)),
            pl.BlockSpec((9 * C, C), lambda n: (0, 0)),
        ],
        out_specs=(
            pl.BlockSpec((1, H, WC), lambda n: (n, 0, 0)),
            pl.BlockSpec((1, 2, C), lambda n: (n, 0, 0)),
        ),
        out_shape=(
            jax.ShapeDtypeStruct((N, H, WC), jnp.float32),
            jax.ShapeDtypeStruct((N, 2, C), jnp.float32),
        ),
        scratch_shapes=[pltpu.VMEM((1, Hp, Wp, C), jnp.float32)],
        compiler_params=cparams,
    )(x, w1k)

    scale1, shift1 = _bn_fold(stats1, g1, b1, count)

    # ---- pass 2: BN1+ReLU (folded FMA) -> conv2 + partial BN2 stats ---------
    y1_nhwc = y1raw.reshape(N, H, W, C)            # same HBM bytes, free view
    y2raw, stats2 = pl.pallas_call(
        _bn_relu_conv2_kernel,
        grid=(N,),
        in_specs=[
            pl.BlockSpec((1, H, W, C), lambda n: (n, 0, 0, 0)),
            pl.BlockSpec((1, C), lambda n: (0, 0)),
            pl.BlockSpec((1, C), lambda n: (0, 0)),
            pl.BlockSpec((9 * C, C), lambda n: (0, 0)),
        ],
        out_specs=(
            pl.BlockSpec((1, H, WC), lambda n: (n, 0, 0)),
            pl.BlockSpec((1, 2, C), lambda n: (n, 0, 0)),
        ),
        out_shape=(
            jax.ShapeDtypeStruct((N, H, WC), jnp.float32),
            jax.ShapeDtypeStruct((N, 2, C), jnp.float32),
        ),
        scratch_shapes=[pltpu.VMEM((1, Hp, Wp, C), jnp.float32)],
        compiler_params=cparams,
    )(y1_nhwc, scale1.reshape(1, C), shift1.reshape(1, C), w2k)

    scale2, shift2 = _bn_fold(stats2, g2, b2, count)

    # ---- pass 3: BN2 affine + residual add + ReLU (fully lane-dense) --------
    x_res = x.reshape(N, H, WC)                    # residual as a lane-dense slab
    s2_t = jnp.tile(scale2, W).reshape(1, WC)      # per-channel scale tiled over W
    t2_t = jnp.tile(shift2, W).reshape(1, WC)
    out_flat = pl.pallas_call(
        _bn_add_relu_kernel,
        grid=(N,),
        in_specs=[
            pl.BlockSpec((1, H, WC), lambda n: (n, 0, 0)),
            pl.BlockSpec((1, H, WC), lambda n: (n, 0, 0)),
            pl.BlockSpec((1, WC), lambda n: (0, 0)),
            pl.BlockSpec((1, WC), lambda n: (0, 0)),
        ],
        out_specs=pl.BlockSpec((1, H, WC), lambda n: (n, 0, 0)),
        out_shape=jax.ShapeDtypeStruct((N, H, WC), x_nchw.dtype),
        compiler_params=cparams,
    )(y2raw, x_res, s2_t, t2_t)

    out_nhwc = out_flat.reshape(N, H, W, C)
    return jnp.transpose(out_nhwc, (0, 3, 1, 2))   # back to NCHW


# ---------------------------------------------------------------------------
# Pure-JAX reference (NCHW), mirrors the PyTorch forward
# ---------------------------------------------------------------------------
def residual_block_ref(x, w1, g1, b1, w2, g2, b2):
    def conv(x, w):
        return lax.conv_general_dilated(
            x, w, window_strides=(1, 1), padding=((1, 1), (1, 1)),
            dimension_numbers=("NCHW", "OIHW", "NCHW"),
            precision=lax.Precision.HIGHEST)

    def bn(y, g, b):
        mean = jnp.mean(y, axis=(0, 2, 3), keepdims=True)
        var = jnp.mean((y - mean) ** 2, axis=(0, 2, 3), keepdims=True)
        yhat = (y - mean) * lax.rsqrt(var + EPS)
        return yhat * g.reshape(1, -1, 1, 1) + b.reshape(1, -1, 1, 1)

    out = jax.nn.relu(bn(conv(x, w1), g1, b1))
    out = bn(conv(out, w2), g2, b2)
    return jax.nn.relu(out + x)


if __name__ == "__main__":
    N, C, H, W = 2, 16, 16, 16
    key = jax.random.PRNGKey(0)
    kx, kw1, kw2 = jax.random.split(key, 3)

    x = jax.random.normal(kx, (N, C, H, W), jnp.float32)

    # deterministic init (PyTorch-style: kaiming-uniform conv, BN gamma=1, beta=0)
    bound = 1.0 / (9 * C) ** 0.5
    w1 = jax.random.uniform(kw1, (C, C, 3, 3), jnp.float32, -bound, bound)
    w2 = jax.random.uniform(kw2, (C, C, 3, 3), jnp.float32, -bound, bound)
    g1 = jnp.ones((C,), jnp.float32)
    b1 = jnp.zeros((C,), jnp.float32)
    g2 = jnp.ones((C,), jnp.float32)
    b2 = jnp.zeros((C,), jnp.float32)

    out = residual_block(x, w1, g1, b1, w2, g2, b2)
    out = jax.block_until_ready(out)

    ref = residual_block_ref(x, w1, g1, b1, w2, g2, b2)
    err = float(jnp.max(jnp.abs(out - ref)))
    assert out.shape == (N, C, H, W)
    assert err < 1e-2, f"mismatch vs reference: {err}"

    print("KERNEL_OK")
</pallas_src>

<mosaic_0001>
module attributes {stable_mosaic.version = 11 : i64} {
  func.func @_conv1_kernel(%arg0: i32, %arg1: memref<1x16x16x16xf32, #tpu.memory_space<vmem>>, %arg2: memref<144x16xf32, #tpu.memory_space<vmem>>, %arg3: memref<1x16x256xf32, #tpu.memory_space<vmem>>, %arg4: memref<1x2x16xf32, #tpu.memory_space<vmem>>, %arg5: memref<1x18x18x16xf32, #tpu.memory_space<vmem>>) attributes {dimension_semantics = [#tpu.dimension_semantics<parallel>], iteration_bounds = array<i64: 2>, scalar_prefetch = 0 : i64, scratch_operands = 1 : i64, tpu.core_type = #tpu.core_type<tc>, window_params = [{transform_indices = @transform_0, window_bounds = array<i64: 1, 16, 16, 16>}, {pipeline_mode = #tpu.pipeline_mode<synchronous>, transform_indices = @transform_1, window_bounds = array<i64: 144, 16>}, {transform_indices = @transform_2, window_bounds = array<i64: 1, 16, 256>}, {transform_indices = @transform_3, window_bounds = array<i64: 1, 2, 16>}]} {
    %cst = arith.constant 0.000000e+00 : f32
    %0 = vector.broadcast %cst : f32 to vector<1x1x18x16xf32>
    %c0 = arith.constant 0 : index
    %c0_0 = arith.constant 0 : index
    %c0_1 = arith.constant 0 : index
    %c0_2 = arith.constant 0 : index
    %1 = vector.load %arg5[%c0, %c0_0, %c0_1, %c0_2] : memref<1x18x18x16xf32, #tpu.memory_space<vmem>>, vector<1x1x18x16xf32>
    tpu.vector_store %arg5[%c0, %c0_0, %c0_1, %c0_2], %0 {strides = array<i32>} : memref<1x18x18x16xf32, #tpu.memory_space<vmem>>, vector<1x1x18x16xf32>,
    %cst_3 = arith.constant 0.000000e+00 : f32
    %2 = vector.broadcast %cst_3 : f32 to vector<1x1x18x16xf32>
    %c0_4 = arith.constant 0 : index
    %c17 = arith.constant 17 : index
    %c0_5 = arith.constant 0 : index
    %c0_6 = arith.constant 0 : index
    %3 = vector.load %arg5[%c0_4, %c17, %c0_5, %c0_6] : memref<1x18x18x16xf32, #tpu.memory_space<vmem>>, vector<1x1x18x16xf32>
    tpu.vector_store %arg5[%c0_4, %c17, %c0_5, %c0_6], %2 {strides = array<i32>} : memref<1x18x18x16xf32, #tpu.memory_space<vmem>>, vector<1x1x18x16xf32>,
    %cst_7 = arith.constant 0.000000e+00 : f32
    %4 = vector.broadcast %cst_7 : f32 to vector<1x18x1x16xf32>
    %c0_8 = arith.constant 0 : index
    %c0_9 = arith.constant 0 : index
    %c0_10 = arith.constant 0 : index
    %c0_11 = arith.constant 0 : index
    %5 = vector.load %arg5[%c0_8, %c0_9, %c0_10, %c0_11] : memref<1x18x18x16xf32, #tpu.memory_space<vmem>>, vector<1x18x1x16xf32>
    tpu.vector_store %arg5[%c0_8, %c0_9, %c0_10, %c0_11], %4 {strides = array<i32>} : memref<1x18x18x16xf32, #tpu.memory_space<vmem>>, vector<1x18x1x16xf32>,
    %cst_12 = arith.constant 0.000000e+00 : f32
    %6 = vector.broadcast %cst_12 : f32 to vector<1x18x1x16xf32>
    %c0_13 = arith.constant 0 : index
    %c0_14 = arith.constant 0 : index
    %c17_15 = arith.constant 17 : index
    %c0_16 = arith.constant 0 : index
    %7 = vector.load %arg5[%c0_13, %c0_14, %c17_15, %c0_16] : memref<1x18x18x16xf32, #tpu.memory_space<vmem>>, vector<1x18x1x16xf32>
    tpu.vector_store %arg5[%c0_13, %c0_14, %c17_15, %c0_16], %6 {strides = array<i32>} : memref<1x18x18x16xf32, #tpu.memory_space<vmem>>, vector<1x18x1x16xf32>,
    %c0_17 = arith.constant 0 : index
    %c0_18 = arith.constant 0 : index
    %c0_19 = arith.constant 0 : index
    %c0_20 = arith.constant 0 : index
    %8 = vector.load %arg1[%c0_17, %c0_18, %c0_19, %c0_20] : memref<1x16x16x16xf32, #tpu.memory_space<vmem>>, vector<1x16x16x16xf32>
    %c0_21 = arith.constant 0 : index
    %c1 = arith.constant 1 : index
    %c1_22 = arith.constant 1 : index
    %c0_23 = arith.constant 0 : index
    %9 = vector.load %arg5[%c0_21, %c1, %c1_22, %c0_23] : memref<1x18x18x16xf32, #tpu.memory_space<vmem>>, vector<1x16x16x16xf32>
    tpu.vector_store %arg5[%c0_21, %c1, %c1_22, %c0_23], %8 {strides = array<i32>} : memref<1x18x18x16xf32, #tpu.memory_space<vmem>>, vector<1x16x16x16xf32>,
    %c0_24 = arith.constant 0 : index
    %c0_25 = arith.constant 0 : index
    %c0_26 = arith.constant 0 : index
    %c0_27 = arith.constant 0 : index
    %10 = vector.load %arg5[%c0_24, %c0_25, %c0_26, %c0_27] : memref<1x18x18x16xf32, #tpu.memory_space<vmem>>, vector<1x18x18x16xf32>
    %11 = vector.extract_strided_slice %10 {offsets = [0, 0, 0, 0], sizes = [1, 16, 16, 16], strides = [1, 1, 1, 1]} : vector<1x18x18x16xf32> to vector<1x16x16x16xf32>
    %12 = vector.shape_cast %11 : vector<1x16x16x16xf32> to vector<256x16xf32>
    %13 = vector.extract_strided_slice %10 {offsets = [0, 0, 1, 0], sizes = [1, 16, 16, 16], strides = [1, 1, 1, 1]} : vector<1x18x18x16xf32> to vector<1x16x16x16xf32>
    %14 = vector.shape_cast %13 : vector<1x16x16x16xf32> to vector<256x16xf32>
    %15 = vector.extract_strided_slice %10 {offsets = [0, 0, 2, 0], sizes = [1, 16, 16, 16], strides = [1, 1, 1, 1]} : vector<1x18x18x16xf32> to vector<1x16x16x16xf32>
    %16 = vector.shape_cast %15 : vector<1x16x16x16xf32> to vector<256x16xf32>
    %17 = vector.extract_strided_slice %10 {offsets = [0, 1, 0, 0], sizes = [1, 16, 16, 16], strides = [1, 1, 1, 1]} : vector<1x18x18x16xf32> to vector<1x16x16x16xf32>
    %18 = vector.shape_cast %17 : vector<1x16x16x16xf32> to vector<256x16xf32>
    %19 = vector.extract_strided_slice %10 {offsets = [0, 1, 1, 0], sizes = [1, 16, 16, 16], strides = [1, 1, 1, 1]} : vector<1x18x18x16xf32> to vector<1x16x16x16xf32>
    %20 = vector.shape_cast %19 : vector<1x16x16x16xf32> to vector<256x16xf32>
    %21 = vector.extract_strided_slice %10 {offsets = [0, 1, 2, 0], sizes = [1, 16, 16, 16], strides = [1, 1, 1, 1]} : vector<1x18x18x16xf32> to vector<1x16x16x16xf32>
    %22 = vector.shape_cast %21 : vector<1x16x16x16xf32> to vector<256x16xf32>
    %23 = vector.extract_strided_slice %10 {offsets = [0, 2, 0, 0], sizes = [1, 16, 16, 16], strides = [1, 1, 1, 1]} : vector<1x18x18x16xf32> to vector<1x16x16x16xf32>
    %24 = vector.shape_cast %23 : vector<1x16x16x16xf32> to vector<256x16xf32>
    %25 = vector.extract_strided_slice %10 {offsets = [0, 2, 1, 0], sizes = [1, 16, 16, 16], strides = [1, 1, 1, 1]} : vector<1x18x18x16xf32> to vector<1x16x16x16xf32>
    %26 = vector.shape_cast %25 : vector<1x16x16x16xf32> to vector<256x16xf32>
    %27 = vector.extract_strided_slice %10 {offsets = [0, 2, 2, 0], sizes = [1, 16, 16, 16], strides = [1, 1, 1, 1]} : vector<1x18x18x16xf32> to vector<1x16x16x16xf32>
    %28 = vector.shape_cast %27 : vector<1x16x16x16xf32> to vector<256x16xf32>
    %29 = tpu.concatenate %12, %14, %16, %18, %20, %22, %24, %26, %28 in 1 : vector<256x16xf32>, vector<256x16xf32>, vector<256x16xf32>, vector<256x16xf32>, vector<256x16xf32>, vector<256x16xf32>, vector<256x16xf32>, vector<256x16xf32>, vector<256x16xf32> -> vector<256x144xf32>
    %c0_28 = arith.constant 0 : index
    %c0_29 = arith.constant 0 : index
    %30 = vector.load %arg2[%c0_28, %c0_29] : memref<144x16xf32, #tpu.memory_space<vmem>>, vector<144x16xf32>
    %cst_30 = arith.constant dense<0.000000e+00> : vector<256x16xf32>
    %31 = tpu.matmul %29, %30, %cst_30 {dimension_numbers = #tpu.dot_dimension_numbers<[1], [0], [0], [1], [0, 0, 1, 1], [], []>} : vector<256x144xf32>, vector<144x16xf32>, vector<256x16xf32> -> vector<256x16xf32>
    %cst_31 = arith.constant dense<0.000000e+00> : vector<16xf32>
    %32 = vector.multi_reduction <add>, %31, %cst_31 [0] : vector<256x16xf32> to vector<16xf32>
    %33 = vector.shape_cast %32 : vector<16xf32> to vector<1x16xf32>
    %34 = arith.mulf %31, %31 : vector<256x16xf32>
    %cst_32 = arith.constant dense<0.000000e+00> : vector<16xf32>
    %35 = vector.multi_reduction <add>, %34, %cst_32 [0] : vector<256x16xf32> to vector<16xf32>
    %36 = vector.shape_cast %35 : vector<16xf32> to vector<1x16xf32>
    %37 = tpu.concatenate %33, %36 in 0 : vector<1x16xf32>, vector<1x16xf32> -> vector<2x16xf32>
    %38 = vector.shape_cast %37 : vector<2x16xf32> to vector<1x2x16xf32>
    %c0_33 = arith.constant 0 : index
    %c0_34 = arith.constant 0 : index
    %c0_35 = arith.constant 0 : index
    %39 = vector.load %arg4[%c0_33, %c0_34, %c0_35] : memref<1x2x16xf32, #tpu.memory_space<vmem>>, vector<1x2x16xf32>
    tpu.vector_store %arg4[%c0_33, %c0_34, %c0_35], %38 {strides = array<i32>} : memref<1x2x16xf32, #tpu.memory_space<vmem>>, vector<1x2x16xf32>,
    %40 = vector.shape_cast %31 : vector<256x16xf32> to vector<16x16x16xf32>
    %41 = vector.extract_strided_slice %40 {offsets = [0, 0, 0], sizes = [16, 1, 16], strides = [1, 1, 1]} : vector<16x16x16xf32> to vector<16x1x16xf32>
    %42 = vector.shape_cast %41 : vector<16x1x16xf32> to vector<16x16xf32>
    %43 = vector.extract_strided_slice %40 {offsets = [0, 1, 0], sizes = [16, 1, 16], strides = [1, 1, 1]} : vector<16x16x16xf32> to vector<16x1x16xf32>
    %44 = vector.shape_cast %43 : vector<16x1x16xf32> to vector<16x16xf32>
    %45 = vector.extract_strided_slice %40 {offsets = [0, 2, 0], sizes = [16, 1, 16], strides = [1, 1, 1]} : vector<16x16x16xf32> to vector<16x1x16xf32>
    %46 = vector.shape_cast %45 : vector<16x1x16xf32> to vector<16x16xf32>
    %47 = vector.extract_strided_slice %40 {offsets = [0, 3, 0], sizes = [16, 1, 16], strides = [1, 1, 1]} : vector<16x16x16xf32> to vector<16x1x16xf32>
    %48 = vector.shape_cast %47 : vector<16x1x16xf32> to vector<16x16xf32>
    %49 = vector.extract_strided_slice %40 {offsets = [0, 4, 0], sizes = [16, 1, 16], strides = [1, 1, 1]} : vector<16x16x16xf32> to vector<16x1x16xf32>
    %50 = vector.shape_cast %49 : vector<16x1x16xf32> to vector<16x16xf32>
    %51 = vector.extract_strided_slice %40 {offsets = [0, 5, 0], sizes = [16, 1, 16], strides = [1, 1, 1]} : vector<16x16x16xf32> to vector<16x1x16xf32>
    %52 = vector.shape_cast %51 : vector<16x1x16xf32> to vector<16x16xf32>
    %53 = vector.extract_strided_slice %40 {offsets = [0, 6, 0], sizes = [16, 1, 16], strides = [1, 1, 1]} : vector<16x16x16xf32> to vector<16x1x16xf32>
    %54 = vector.shape_cast %53 : vector<16x1x16xf32> to vector<16x16xf32>
    %55 = vector.extract_strided_slice %40 {offsets = [0, 7, 0], sizes = [16, 1, 16], strides = [1, 1, 1]} : vector<16x16x16xf32> to vector<16x1x16xf32>
    %56 = vector.shape_cast %55 : vector<16x1x16xf32> to vector<16x16xf32>
    %57 = vector.extract_strided_slice %40 {offsets = [0, 8, 0], sizes = [16, 1, 16], strides = [1, 1, 1]} : vector<16x16x16xf32> to vector<16x1x16xf32>
    %58 = vector.shape_cast %57 : vector<16x1x16xf32> to vector<16x16xf32>
    %59 = vector.extract_strided_slice %40 {offsets = [0, 9, 0], sizes = [16, 1, 16], strides = [1, 1, 1]} : vector<16x16x16xf32> to vector<16x1x16xf32>
    %60 = vector.shape_cast %59 : vector<16x1x16xf32> to vector<16x16xf32>
    %61 = vector.extract_strided_slice %40 {offsets = [0, 10, 0], sizes = [16, 1, 16], strides = [1, 1, 1]} : vector<16x16x16xf32> to vector<16x1x16xf32>
    %62 = vector.shape_cast %61 : vector<16x1x16xf32> to vector<16x16xf32>
    %63 = vector.extract_strided_slice %40 {offsets = [0, 11, 0], sizes = [16, 1, 16], strides = [1, 1, 1]} : vector<16x16x16xf32> to vector<16x1x16xf32>
    %64 = vector.shape_cast %63 : vector<16x1x16xf32> to vector<16x16xf32>
    %65 = vector.extract_strided_slice %40 {offsets = [0, 12, 0], sizes = [16, 1, 16], strides = [1, 1, 1]} : vector<16x16x16xf32> to vector<16x1x16xf32>
    %66 = vector.shape_cast %65 : vector<16x1x16xf32> to vector<16x16xf32>
    %67 = vector.extract_strided_slice %40 {offsets = [0, 13, 0], sizes = [16, 1, 16], strides = [1, 1, 1]} : vector<16x16x16xf32> to vector<16x1x16xf32>
    %68 = vector.shape_cast %67 : vector<16x1x16xf32> to vector<16x16xf32>
    %69 = vector.extract_strided_slice %40 {offsets = [0, 14, 0], sizes = [16, 1, 16], strides = [1, 1, 1]} : vector<16x16x16xf32> to vector<16x1x16xf32>
    %70 = vector.shape_cast %69 : vector<16x1x16xf32> to vector<16x16xf32>
    %71 = vector.extract_strided_slice %40 {offsets = [0, 15, 0], sizes = [16, 1, 16], strides = [1, 1, 1]} : vector<16x16x16xf32> to vector<16x1x16xf32>
    %72 = vector.shape_cast %71 : vector<16x1x16xf32> to vector<16x16xf32>
    %73 = tpu.concatenate %42, %44, %46, %48, %50, %52, %54, %56, %58, %60, %62, %64, %66, %68, %70, %72 in 1 : vector<16x16xf32>, vector<16x16xf32>, vector<16x16xf32>, vector<16x16xf32>, vector<16x16xf32>, vector<16x16xf32>, vector<16x16xf32>, vector<16x16xf32>, vector<16x16xf32>, vector<16x16xf32>, vector<16x16xf32>, vector<16x16xf32>, vector<16x16xf32>, vector<16x16xf32>, vector<16x16xf32>, vector<16x16xf32> -> vector<16x256xf32>
    %74 = vector.shape_cast %73 : vector<16x256xf32> to vector<1x16x256xf32>
    %c0_36 = arith.constant 0 : index
    %c0_37 = arith.constant 0 : index
    %c0_38 = arith.constant 0 : index
    %75 = vector.load %arg3[%c0_36, %c0_37, %c0_38] : memref<1x16x256xf32, #tpu.memory_space<vmem>>, vector<1x16x256xf32>
    tpu.vector_store %arg3[%c0_36, %c0_37, %c0_38], %74 {strides = array<i32>} : memref<1x16x256xf32, #tpu.memory_space<vmem>>, vector<1x16x256xf32>,
    return
  }
  func.func @transform_0(%arg0: i32) -> (i32, i32, i32, i32) {
    %c0_i32 = arith.constant 0 : i32
    %c0_i32_0 = arith.constant 0 : i32
    %c0_i32_1 = arith.constant 0 : i32
    %c0_i32_2 = arith.constant 0 : i32
    return %arg0, %c0_i32, %c0_i32_0, %c0_i32_1 : i32, i32, i32, i32
  }
  func.func @transform_1(%arg0: i32) -> (i32, i32) {
    %c0_i32 = arith.constant 0 : i32
    %c0_i32_0 = arith.constant 0 : i32
    %c0_i32_1 = arith.constant 0 : i32
    return %c0_i32, %c0_i32_0 : i32, i32
  }
  func.func @transform_2(%arg0: i32) -> (i32, i32, i32) {
    %c0_i32 = arith.constant 0 : i32
    %c0_i32_0 = arith.constant 0 : i32
    %c0_i32_1 = arith.constant 0 : i32
    return %arg0, %c0_i32, %c0_i32_0 : i32, i32, i32
  }
  func.func @transform_3(%arg0: i32) -> (i32, i32, i32) {
    %c0_i32 = arith.constant 0 : i32
    %c0_i32_0 = arith.constant 0 : i32
    %c0_i32_1 = arith.constant 0 : i32
    return %arg0, %c0_i32, %c0_i32_0 : i32, i32, i32
  }
}

module attributes {stable_mosaic.version = 11 : i64} {
  func.func @_bn_relu_conv2_kernel(%arg0: i32, %arg1: memref<1x16x16x16xf32, #tpu.memory_space<vmem>>, %arg2: memref<1x16xf32, #tpu.memory_space<vmem>>, %arg3: memref<1x16xf32, #tpu.memory_space<vmem>>, %arg4: memref<144x16xf32, #tpu.memory_space<vmem>>, %arg5: memref<1x16x256xf32, #tpu.memory_space<vmem>>, %arg6: memref<1x2x16xf32, #tpu.memory_space<vmem>>, %arg7: memref<1x18x18x16xf32, #tpu.memory_space<vmem>>) attributes {dimension_semantics = [#tpu.dimension_semantics<parallel>], iteration_bounds = array<i64: 2>, scalar_prefetch = 0 : i64, scratch_operands = 1 : i64, tpu.core_type = #tpu.core_type<tc>, window_params = [{transform_indices = @transform_0, window_bounds = array<i64: 1, 16, 16, 16>}, {pipeline_mode = #tpu.pipeline_mode<synchronous>, transform_indices = @transform_1, window_bounds = array<i64: 1, 16>}, {pipeline_mode = #tpu.pipeline_mode<synchronous>, transform_indices = @transform_2, window_bounds = array<i64: 1, 16>}, {pipeline_mode = #tpu.pipeline_mode<synchronous>, transform_indices = @transform_3, window_bounds = array<i64: 144, 16>}, {transform_indices = @transform_4, window_bounds = array<i64: 1, 16, 256>}, {transform_indices = @transform_5, window_bounds = array<i64: 1, 2, 16>}]} {
    %c0 = arith.constant 0 : index
    %c0_0 = arith.constant 0 : index
    %c0_1 = arith.constant 0 : index
    %c0_2 = arith.constant 0 : index
    %0 = vector.load %arg1[%c0, %c0_0, %c0_1, %c0_2] : memref<1x16x16x16xf32, #tpu.memory_space<vmem>>, vector<1x16x16x16xf32>
    %c0_3 = arith.constant 0 : index
    %c0_4 = arith.constant 0 : index
    %1 = vector.load %arg2[%c0_3, %c0_4] : memref<1x16xf32, #tpu.memory_space<vmem>>, vector<1x16xf32>
    %2 = vector.shape_cast %1 : vector<1x16xf32> to vector<1x1x1x16xf32>
    %3 = vector.broadcast %2 : vector<1x1x1x16xf32> to vector<1x16x16x16xf32>
    %4 = arith.mulf %0, %3 : vector<1x16x16x16xf32>
    %c0_5 = arith.constant 0 : index
    %c0_6 = arith.constant 0 : index
    %5 = vector.load %arg3[%c0_5, %c0_6] : memref<1x16xf32, #tpu.memory_space<vmem>>, vector<1x16xf32>
    %6 = vector.shape_cast %5 : vector<1x16xf32> to vector<1x1x1x16xf32>
    %7 = vector.broadcast %6 : vector<1x1x1x16xf32> to vector<1x16x16x16xf32>
    %8 = arith.addf %4, %7 : vector<1x16x16x16xf32>
    %cst = arith.constant 0.000000e+00 : f32
    %9 = vector.broadcast %cst : f32 to vector<1x16x16x16xf32>
    %10 = arith.maximumf %8, %9 : vector<1x16x16x16xf32>
    %cst_7 = arith.constant 0.000000e+00 : f32
    %11 = vector.broadcast %cst_7 : f32 to vector<1x1x18x16xf32>
    %c0_8 = arith.constant 0 : index
    %c0_9 = arith.constant 0 : index
    %c0_10 = arith.constant 0 : index
    %c0_11 = arith.constant 0 : index
    %12 = vector.load %arg7[%c0_8, %c0_9, %c0_10, %c0_11] : memref<1x18x18x16xf32, #tpu.memory_space<vmem>>, vector<1x1x18x16xf32>
    tpu.vector_store %arg7[%c0_8, %c0_9, %c0_10, %c0_11], %11 {strides = array<i32>} : memref<1x18x18x16xf32, #tpu.memory_space<vmem>>, vector<1x1x18x16xf32>,
    %cst_12 = arith.constant 0.000000e+00 : f32
    %13 = vector.broadcast %cst_12 : f32 to vector<1x1x18x16xf32>
    %c0_13 = arith.constant 0 : index
    %c17 = arith.constant 17 : index
    %c0_14 = arith.constant 0 : index
    %c0_15 = arith.constant 0 : index
    %14 = vector.load %arg7[%c0_13, %c17, %c0_14, %c0_15] : memref<1x18x18x16xf32, #tpu.memory_space<vmem>>, vector<1x1x18x16xf32>
    tpu.vector_store %arg7[%c0_13, %c17, %c0_14, %c0_15], %13 {strides = array<i32>} : memref<1x18x18x16xf32, #tpu.memory_space<vmem>>, vector<1x1x18x16xf32>,
    %cst_16 = arith.constant 0.000000e+00 : f32
    %15 = vector.broadcast %cst_16 : f32 to vector<1x18x1x16xf32>
    %c0_17 = arith.constant 0 : index
    %c0_18 = arith.constant 0 : index
    %c0_19 = arith.constant 0 : index
    %c0_20 = arith.constant 0 : index
    %16 = vector.load %arg7[%c0_17, %c0_18, %c0_19, %c0_20] : memref<1x18x18x16xf32, #tpu.memory_space<vmem>>, vector<1x18x1x16xf32>
    tpu.vector_store %arg7[%c0_17, %c0_18, %c0_19, %c0_20], %15 {strides = array<i32>} : memref<1x18x18x16xf32, #tpu.memory_space<vmem>>, vector<1x18x1x16xf32>,
    %cst_21 = arith.constant 0.000000e+00 : f32
    %17 = vector.broadcast %cst_21 : f32 to vector<1x18x1x16xf32>
    %c0_22 = arith.constant 0 : index
    %c0_23 = arith.constant 0 : index
    %c17_24 = arith.constant 17 : index
    %c0_25 = arith.constant 0 : index
    %18 = vector.load %arg7[%c0_22, %c0_23, %c17_24, %c0_25] : memref<1x18x18x16xf32, #tpu.memory_space<vmem>>, vector<1x18x1x16xf32>
    tpu.vector_store %arg7[%c0_22, %c0_23, %c17_24, %c0_25], %17 {strides = array<i32>} : memref<1x18x18x16xf32, #tpu.memory_space<vmem>>, vector<1x18x1x16xf32>,
    %c0_26 = arith.constant 0 : index
    %c1 = arith.constant 1 : index
    %c1_27 = arith.constant 1 : index
    %c0_28 = arith.constant 0 : index
    %19 = vector.load %arg7[%c0_26, %c1, %c1_27, %c0_28] : memref<1x18x18x16xf32, #tpu.memory_space<vmem>>, vector<1x16x16x16xf32>
    tpu.vector_store %arg7[%c0_26, %c1, %c1_27, %c0_28], %10 {strides = array<i32>} : memref<1x18x18x16xf32, #tpu.memory_space<vmem>>, vector<1x16x16x16xf32>,
    %c0_29 = arith.constant 0 : index
    %c0_30 = arith.constant 0 : index
    %c0_31 = arith.constant 0 : index
    %c0_32 = arith.constant 0 : index
    %20 = vector.load %arg7[%c0_29, %c0_30, %c0_31, %c0_32] : memref<1x18x18x16xf32, #tpu.memory_space<vmem>>, vector<1x18x18x16xf32>
    %21 = vector.extract_strided_slice %20 {offsets = [0, 0, 0, 0], sizes = [1, 16, 16, 16], strides = [1, 1, 1, 1]} : vector<1x18x18x16xf32> to vector<1x16x16x16xf32>
    %22 = vector.shape_cast %21 : vector<1x16x16x16xf32> to vector<256x16xf32>
    %23 = vector.extract_strided_slice %20 {offsets = [0, 0, 1, 0], sizes = [1, 16, 16, 16], strides = [1, 1, 1, 1]} : vector<1x18x18x16xf32> to vector<1x16x16x16xf32>
    %24 = vector.shape_cast %23 : vector<1x16x16x16xf32> to vector<256x16xf32>
    %25 = vector.extract_strided_slice %20 {offsets = [0, 0, 2, 0], sizes = [1, 16, 16, 16], strides = [1, 1, 1, 1]} : vector<1x18x18x16xf32> to vector<1x16x16x16xf32>
    %26 = vector.shape_cast %25 : vector<1x16x16x16xf32> to vector<256x16xf32>
    %27 = vector.extract_strided_slice %20 {offsets = [0, 1, 0, 0], sizes = [1, 16, 16, 16], strides = [1, 1, 1, 1]} : vector<1x18x18x16xf32> to vector<1x16x16x16xf32>
    %28 = vector.shape_cast %27 : vector<1x16x16x16xf32> to vector<256x16xf32>
    %29 = vector.extract_strided_slice %20 {offsets = [0, 1, 1, 0], sizes = [1, 16, 16, 16], strides = [1, 1, 1, 1]} : vector<1x18x18x16xf32> to vector<1x16x16x16xf32>
    %30 = vector.shape_cast %29 : vector<1x16x16x16xf32> to vector<256x16xf32>
    %31 = vector.extract_strided_slice %20 {offsets = [0, 1, 2, 0], sizes = [1, 16, 16, 16], strides = [1, 1, 1, 1]} : vector<1x18x18x16xf32> to vector<1x16x16x16xf32>
    %32 = vector.shape_cast %31 : vector<1x16x16x16xf32> to vector<256x16xf32>
    %33 = vector.extract_strided_slice %20 {offsets = [0, 2, 0, 0], sizes = [1, 16, 16, 16], strides = [1, 1, 1, 1]} : vector<1x18x18x16xf32> to vector<1x16x16x16xf32>
    %34 = vector.shape_cast %33 : vector<1x16x16x16xf32> to vector<256x16xf32>
    %35 = vector.extract_strided_slice %20 {offsets = [0, 2, 1, 0], sizes = [1, 16, 16, 16], strides = [1, 1, 1, 1]} : vector<1x18x18x16xf32> to vector<1x16x16x16xf32>
    %36 = vector.shape_cast %35 : vector<1x16x16x16xf32> to vector<256x16xf32>
    %37 = vector.extract_strided_slice %20 {offsets = [0, 2, 2, 0], sizes = [1, 16, 16, 16], strides = [1, 1, 1, 1]} : vector<1x18x18x16xf32> to vector<1x16x16x16xf32>
    %38 = vector.shape_cast %37 : vector<1x16x16x16xf32> to vector<256x16xf32>
    %39 = tpu.concatenate %22, %24, %26, %28, %30, %32, %34, %36, %38 in 1 : vector<256x16xf32>, vector<256x16xf32>, vector<256x16xf32>, vector<256x16xf32>, vector<256x16xf32>, vector<256x16xf32>, vector<256x16xf32>, vector<256x16xf32>, vector<256x16xf32> -> vector<256x144xf32>
    %c0_33 = arith.constant 0 : index
    %c0_34 = arith.constant 0 : index
    %40 = vector.load %arg4[%c0_33, %c0_34] : memref<144x16xf32, #tpu.memory_space<vmem>>, vector<144x16xf32>
    %cst_35 = arith.constant dense<0.000000e+00> : vector<256x16xf32>
    %41 = tpu.matmul %39, %40, %cst_35 {dimension_numbers = #tpu.dot_dimension_numbers<[1], [0], [0], [1], [0, 0, 1, 1], [], []>} : vector<256x144xf32>, vector<144x16xf32>, vector<256x16xf32> -> vector<256x16xf32>
    %cst_36 = arith.constant dense<0.000000e+00> : vector<16xf32>
    %42 = vector.multi_reduction <add>, %41, %cst_36 [0] : vector<256x16xf32> to vector<16xf32>
    %43 = vector.shape_cast %42 : vector<16xf32> to vector<1x16xf32>
    %44 = arith.mulf %41, %41 : vector<256x16xf32>
    %cst_37 = arith.constant dense<0.000000e+00> : vector<16xf32>
    %45 = vector.multi_reduction <add>, %44, %cst_37 [0] : vector<256x16xf32> to vector<16xf32>
    %46 = vector.shape_cast %45 : vector<16xf32> to vector<1x16xf32>
    %47 = tpu.concatenate %43, %46 in 0 : vector<1x16xf32>, vector<1x16xf32> -> vector<2x16xf32>
    %48 = vector.shape_cast %47 : vector<2x16xf32> to vector<1x2x16xf32>
    %c0_38 = arith.constant 0 : index
    %c0_39 = arith.constant 0 : index
    %c0_40 = arith.constant 0 : index
    %49 = vector.load %arg6[%c0_38, %c0_39, %c0_40] : memref<1x2x16xf32, #tpu.memory_space<vmem>>, vector<1x2x16xf32>
    tpu.vector_store %arg6[%c0_38, %c0_39, %c0_40], %48 {strides = array<i32>} : memref<1x2x16xf32, #tpu.memory_space<vmem>>, vector<1x2x16xf32>,
    %50 = vector.shape_cast %41 : vector<256x16xf32> to vector<16x16x16xf32>
    %51 = vector.extract_strided_slice %50 {offsets = [0, 0, 0], sizes = [16, 1, 16], strides = [1, 1, 1]} : vector<16x16x16xf32> to vector<16x1x16xf32>
    %52 = vector.shape_cast %51 : vector<16x1x16xf32> to vector<16x16xf32>
    %53 = vector.extract_strided_slice %50 {offsets = [0, 1, 0], sizes = [16, 1, 16], strides = [1, 1, 1]} : vector<16x16x16xf32> to vector<16x1x16xf32>
    %54 = vector.shape_cast %53 : vector<16x1x16xf32> to vector<16x16xf32>
    %55 = vector.extract_strided_slice %50 {offsets = [0, 2, 0], sizes = [16, 1, 16], strides = [1, 1, 1]} : vector<16x16x16xf32> to vector<16x1x16xf32>
    %56 = vector.shape_cast %55 : vector<16x1x16xf32> to vector<16x16xf32>
    %57 = vector.extract_strided_slice %50 {offsets = [0, 3, 0], sizes = [16, 1, 16], strides = [1, 1, 1]} : vector<16x16x16xf32> to vector<16x1x16xf32>
    %58 = vector.shape_cast %57 : vector<16x1x16xf32> to vector<16x16xf32>
    %59 = vector.extract_strided_slice %50 {offsets = [0, 4, 0], sizes = [16, 1, 16], strides = [1, 1, 1]} : vector<16x16x16xf32> to vector<16x1x16xf32>
    %60 = vector.shape_cast %59 : vector<16x1x16xf32> to vector<16x16xf32>
    %61 = vector.extract_strided_slice %50 {offsets = [0, 5, 0], sizes = [16, 1, 16], strides = [1, 1, 1]} : vector<16x16x16xf32> to vector<16x1x16xf32>
    %62 = vector.shape_cast %61 : vector<16x1x16xf32> to vector<16x16xf32>
    %63 = vector.extract_strided_slice %50 {offsets = [0, 6, 0], sizes = [16, 1, 16], strides = [1, 1, 1]} : vector<16x16x16xf32> to vector<16x1x16xf32>
    %64 = vector.shape_cast %63 : vector<16x1x16xf32> to vector<16x16xf32>
    %65 = vector.extract_strided_slice %50 {offsets = [0, 7, 0], sizes = [16, 1, 16], strides = [1, 1, 1]} : vector<16x16x16xf32> to vector<16x1x16xf32>
    %66 = vector.shape_cast %65 : vector<16x1x16xf32> to vector<16x16xf32>
    %67 = vector.extract_strided_slice %50 {offsets = [0, 8, 0], sizes = [16, 1, 16], strides = [1, 1, 1]} : vector<16x16x16xf32> to vector<16x1x16xf32>
    %68 = vector.shape_cast %67 : vector<16x1x16xf32> to vector<16x16xf32>
    %69 = vector.extract_strided_slice %50 {offsets = [0, 9, 0], sizes = [16, 1, 16], strides = [1, 1, 1]} : vector<16x16x16xf32> to vector<16x1x16xf32>
    %70 = vector.shape_cast %69 : vector<16x1x16xf32> to vector<16x16xf32>
    %71 = vector.extract_strided_slice %50 {offsets = [0, 10, 0], sizes = [16, 1, 16], strides = [1, 1, 1]} : vector<16x16x16xf32> to vector<16x1x16xf32>
    %72 = vector.shape_cast %71 : vector<16x1x16xf32> to vector<16x16xf32>
    %73 = vector.extract_strided_slice %50 {offsets = [0, 11, 0], sizes = [16, 1, 16], strides = [1, 1, 1]} : vector<16x16x16xf32> to vector<16x1x16xf32>
    %74 = vector.shape_cast %73 : vector<16x1x16xf32> to vector<16x16xf32>
    %75 = vector.extract_strided_slice %50 {offsets = [0, 12, 0], sizes = [16, 1, 16], strides = [1, 1, 1]} : vector<16x16x16xf32> to vector<16x1x16xf32>
    %76 = vector.shape_cast %75 : vector<16x1x16xf32> to vector<16x16xf32>
    %77 = vector.extract_strided_slice %50 {offsets = [0, 13, 0], sizes = [16, 1, 16], strides = [1, 1, 1]} : vector<16x16x16xf32> to vector<16x1x16xf32>
    %78 = vector.shape_cast %77 : vector<16x1x16xf32> to vector<16x16xf32>
    %79 = vector.extract_strided_slice %50 {offsets = [0, 14, 0], sizes = [16, 1, 16], strides = [1, 1, 1]} : vector<16x16x16xf32> to vector<16x1x16xf32>
    %80 = vector.shape_cast %79 : vector<16x1x16xf32> to vector<16x16xf32>
    %81 = vector.extract_strided_slice %50 {offsets = [0, 15, 0], sizes = [16, 1, 16], strides = [1, 1, 1]} : vector<16x16x16xf32> to vector<16x1x16xf32>
    %82 = vector.shape_cast %81 : vector<16x1x16xf32> to vector<16x16xf32>
    %83 = tpu.concatenate %52, %54, %56, %58, %60, %62, %64, %66, %68, %70, %72, %74, %76, %78, %80, %82 in 1 : vector<16x16xf32>, vector<16x16xf32>, vector<16x16xf32>, vector<16x16xf32>, vector<16x16xf32>, vector<16x16xf32>, vector<16x16xf32>, vector<16x16xf32>, vector<16x16xf32>, vector<16x16xf32>, vector<16x16xf32>, vector<16x16xf32>, vector<16x16xf32>, vector<16x16xf32>, vector<16x16xf32>, vector<16x16xf32> -> vector<16x256xf32>
    %84 = vector.shape_cast %83 : vector<16x256xf32> to vector<1x16x256xf32>
    %c0_41 = arith.constant 0 : index
    %c0_42 = arith.constant 0 : index
    %c0_43 = arith.constant 0 : index
    %85 = vector.load %arg5[%c0_41, %c0_42, %c0_43] : memref<1x16x256xf32, #tpu.memory_space<vmem>>, vector<1x16x256xf32>
    tpu.vector_store %arg5[%c0_41, %c0_42, %c0_43], %84 {strides = array<i32>} : memref<1x16x256xf32, #tpu.memory_space<vmem>>, vector<1x16x256xf32>,
    return
  }
  func.func @transform_0(%arg0: i32) -> (i32, i32, i32, i32) {
    %c0_i32 = arith.constant 0 : i32
    %c0_i32_0 = arith.constant 0 : i32
    %c0_i32_1 = arith.constant 0 : i32
    %c0_i32_2 = arith.constant 0 : i32
    return %arg0, %c0_i32, %c0_i32_0, %c0_i32_1 : i32, i32, i32, i32
  }
  func.func @transform_1(%arg0: i32) -> (i32, i32) {
    %c0_i32 = arith.constant 0 : i32
    %c0_i32_0 = arith.constant 0 : i32
    %c0_i32_1 = arith.constant 0 : i32
    return %c0_i32, %c0_i32_0 : i32, i32
  }
  func.func @transform_2(%arg0: i32) -> (i32, i32) {
    %c0_i32 = arith.constant 0 : i32
    %c0_i32_0 = arith.constant 0 : i32
    %c0_i32_1 = arith.constant 0 : i32
    return %c0_i32, %c0_i32_0 : i32, i32
  }
  func.func @transform_3(%arg0: i32) -> (i32, i32) {
    %c0_i32 = arith.constant 0 : i32
    %c0_i32_0 = arith.constant 0 : i32
    %c0_i32_1 = arith.constant 0 : i32
    return %c0_i32, %c0_i32_0 : i32, i32
  }
  func.func @transform_4(%arg0: i32) -> (i32, i32, i32) {
    %c0_i32 = arith.constant 0 : i32
    %c0_i32_0 = arith.constant 0 : i32
    %c0_i32_1 = arith.constant 0 : i32
    return %arg0, %c0_i32, %c0_i32_0 : i32, i32, i32
  }
  func.func @transform_5(%arg0: i32) -> (i32, i32, i32) {
    %c0_i32 = arith.constant 0 : i32
    %c0_i32_0 = arith.constant 0 : i32
    %c0_i32_1 = arith.constant 0 : i32
    return %arg0, %c0_i32, %c0_i32_0 : i32, i32, i32
  }
}

module attributes {stable_mosaic.version = 11 : i64} {
  func.func @_bn_add_relu_kernel(%arg0: i32, %arg1: memref<1x16x256xf32, #tpu.memory_space<vmem>>, %arg2: memref<1x16x256xf32, #tpu.memory_space<vmem>>, %arg3: memref<1x256xf32, #tpu.memory_space<vmem>>, %arg4: memref<1x256xf32, #tpu.memory_space<vmem>>, %arg5: memref<1x16x256xf32, #tpu.memory_space<vmem>>) attributes {dimension_semantics = [#tpu.dimension_semantics<parallel>], iteration_bounds = array<i64: 2>, scalar_prefetch = 0 : i64, scratch_operands = 0 : i64, tpu.core_type = #tpu.core_type<tc>, window_params = [{transform_indices = @transform_0, window_bounds = array<i64: 1, 16, 256>}, {transform_indices = @transform_1, window_bounds = array<i64: 1, 16, 256>}, {pipeline_mode = #tpu.pipeline_mode<synchronous>, transform_indices = @transform_2, window_bounds = array<i64: 1, 256>}, {pipeline_mode = #tpu.pipeline_mode<synchronous>, transform_indices = @transform_3, window_bounds = array<i64: 1, 256>}, {transform_indices = @transform_4, window_bounds = array<i64: 1, 16, 256>}]} {
    %c0 = arith.constant 0 : index
    %c0_0 = arith.constant 0 : index
    %c0_1 = arith.constant 0 : index
    %0 = vector.load %arg1[%c0, %c0_0, %c0_1] : memref<1x16x256xf32, #tpu.memory_space<vmem>>, vector<1x16x256xf32>
    %c0_2 = arith.constant 0 : index
    %c0_3 = arith.constant 0 : index
    %1 = vector.load %arg3[%c0_2, %c0_3] : memref<1x256xf32, #tpu.memory_space<vmem>>, vector<1x256xf32>
    %2 = vector.shape_cast %1 : vector<1x256xf32> to vector<1x1x256xf32>
    %3 = vector.broadcast %2 : vector<1x1x256xf32> to vector<1x16x256xf32>
    %4 = arith.mulf %0, %3 : vector<1x16x256xf32>
    %c0_4 = arith.constant 0 : index
    %c0_5 = arith.constant 0 : index
    %5 = vector.load %arg4[%c0_4, %c0_5] : memref<1x256xf32, #tpu.memory_space<vmem>>, vector<1x256xf32>
    %6 = vector.shape_cast %5 : vector<1x256xf32> to vector<1x1x256xf32>
    %7 = vector.broadcast %6 : vector<1x1x256xf32> to vector<1x16x256xf32>
    %8 = arith.addf %4, %7 : vector<1x16x256xf32>
    %c0_6 = arith.constant 0 : index
    %c0_7 = arith.constant 0 : index
    %c0_8 = arith.constant 0 : index
    %9 = vector.load %arg2[%c0_6, %c0_7, %c0_8] : memref<1x16x256xf32, #tpu.memory_space<vmem>>, vector<1x16x256xf32>
    %10 = arith.addf %8, %9 : vector<1x16x256xf32>
    %cst = arith.constant 0.000000e+00 : f32
    %11 = vector.broadcast %cst : f32 to vector<1x16x256xf32>
    %12 = arith.maximumf %10, %11 : vector<1x16x256xf32>
    %c0_9 = arith.constant 0 : index
    %c0_10 = arith.constant 0 : index
    %c0_11 = arith.constant 0 : index
    %13 = vector.load %arg5[%c0_9, %c0_10, %c0_11] : memref<1x16x256xf32, #tpu.memory_space<vmem>>, vector<1x16x256xf32>
    tpu.vector_store %arg5[%c0_9, %c0_10, %c0_11], %12 {strides = array<i32>} : memref<1x16x256xf32, #tpu.memory_space<vmem>>, vector<1x16x256xf32>,
    return
  }
  func.func @transform_0(%arg0: i32) -> (i32, i32, i32) {
    %c0_i32 = arith.constant 0 : i32
    %c0_i32_0 = arith.constant 0 : i32
    %c0_i32_1 = arith.constant 0 : i32
    return %arg0, %c0_i32, %c0_i32_0 : i32, i32, i32
  }
  func.func @transform_1(%arg0: i32) -> (i32, i32, i32) {
    %c0_i32 = arith.constant 0 : i32
    %c0_i32_0 = arith.constant 0 : i32
    %c0_i32_1 = arith.constant 0 : i32
    return %arg0, %c0_i32, %c0_i32_0 : i32, i32, i32
  }
  func.func @transform_2(%arg0: i32) -> (i32, i32) {
    %c0_i32 = arith.constant 0 : i32
    %c0_i32_0 = arith.constant 0 : i32
    %c0_i32_1 = arith.constant 0 : i32
    return %c0_i32, %c0_i32_0 : i32, i32
  }
  func.func @transform_3(%arg0: i32) -> (i32, i32) {
    %c0_i32 = arith.constant 0 : i32
    %c0_i32_0 = arith.constant 0 : i32
    %c0_i32_1 = arith.constant 0 : i32
    return %c0_i32, %c0_i32_0 : i32, i32
  }
  func.func @transform_4(%arg0: i32) -> (i32, i32, i32) {
    %c0_i32 = arith.constant 0 : i32
    %c0_i32_0 = arith.constant 0 : i32
    %c0_i32_1 = arith.constant 0 : i32
    return %arg0, %c0_i32, %c0_i32_0 : i32, i32, i32
  }
}

</mosaic_0001>

<llo_original>
// kernel: tile.18
$region0: #{tile.18}
  #allocation0 [shape = 's32[1]{0}', space=sflag, size = 0x4, scoped, tag = 'scoped memory for tile.18']
  %s0 = inlined_call_operand.vmem [shape: f32[16], index: 0, kind: input, shape index: {}]
  %s1 = inlined_call_operand.vmem [shape: f32[16,16], index: 1, kind: output, shape index: {}]
  // Predicated region
  $region2: #{tile.18} parent=0 // pred_check
    _
  $region3: #{tile.18} parent=0 // pred_check_branch
    %3 = sbr.rel (0) target = $region5
  $region4: #{tile.18} parent=0 // pred_region
    _
  $region5: #{tile.18} parent=0 // pred_fallthru
    _
  %v4 = vld [vmem:[%s0] ss:$0 sm:$0xff]
  %5 = vst [vmem:[%s1] sm:$0xff] %v4
  %s6 = scalar_lea.vmem %s1, 8
  %7 = vst [vmem:[%s6] sm:$0xff] %v4

// kernel: tile.19
$region0: #{tile.19}
  %s0 = inlined_call_operand.vmem [shape: f32[16,16], index: 0, kind: input, shape index: {}]
  %s1 = inlined_call_operand.vmem [shape: f32[1,256], index: 1, kind: output, shape index: {}]
  $region1: #{tile.19} parent=0
    #allocation0 [shape = 'u8[8192]{0}', space=vmem, size = 0x2000, scoped, tag = 'scoped mem for output reshape']
    %s2 = smov 3
    %v3 = vld [vmem:[%s0] ss:$8 sm:%s2]
    %vm4 = vcmask 130048
    %5 = vst.msk [vmem:[#allocation0] ss:$8 sm:$0x3] %vm4, %v3
    %s6 = scalar_lea.vmem %s0, 7
    %s7 = smov 3
    %v8 = vld [vmem:[%s6] ss:$8 sm:%s7]
    %9 = vrot.lane.b32.xlu0 %v8, 112
    %v10 = vpop.permute.xlu0 %9
    %vm11 = vcmask 1048448
    %12 = vst.msk [vmem:[#allocation0] ss:$8 sm:$0x3] %vm11, %v10
    %s13 = scalar_lea.vmem %s0, 6
    %s14 = smov 3
    %v15 = vld [vmem:[%s13] ss:$8 sm:%s14]
    %16 = vrot.lane.b32.xlu0 %v15, 96
    %v17 = vpop.permute.xlu0 %16
    %vm18 = vcmask 917248
    %19 = vst.msk [vmem:[#allocation0] ss:$8 sm:$0x3] %vm18, %v17
    %s20 = scalar_lea.vmem %s0, 5
    %s21 = smov 3
    %v22 = vld [vmem:[%s20] ss:$8 sm:%s21]
    %23 = vrot.lane.b32.xlu0 %v22, 80
    %v24 = vpop.permute.xlu0 %23
    %vm25 = vcmask 786048
    %26 = vst.msk [vmem:[#allocation0] ss:$8 sm:$0x3] %vm25, %v24
    %s27 = scalar_lea.vmem %s0, 4
    %s28 = smov 3
    %v29 = vld [vmem:[%s27] ss:$8 sm:%s28]
    %30 = vrot.lane.b32.xlu0 %v29, 64
    %v31 = vpop.permute.xlu0 %30
    %vm32 = vcmask 654848
    %33 = vst.msk [vmem:[#allocation0] ss:$8 sm:$0x3] %vm32, %v31
    %s34 = scalar_lea.vmem %s0, 3
    %s35 = smov 3
    %v36 = vld [vmem:[%s34] ss:$8 sm:%s35]
    %37 = vrot.lane.b32.xlu0 %v36, 48
    %v38 = vpop.permute.xlu0 %37
    %vm39 = vcmask 523648
    %40 = vst.msk [vmem:[#allocation0] ss:$8 sm:$0x3] %vm39, %v38
    %s41 = scalar_lea.vmem %s0, 2
    %s42 = smov 3
    %v43 = vld [vmem:[%s41] ss:$8 sm:%s42]
    %44 = vrot.lane.b32.xlu0 %v43, 32
    %v45 = vpop.permute.xlu0 %44
    %vm46 = vcmask 392448
    %47 = vst.msk [vmem:[#allocation0] ss:$8 sm:$0x3] %vm46, %v45
    %s48 = scalar_lea.vmem %s0, 1
    %s49 = smov 3
    %v50 = vld [vmem:[%s48] ss:$8 sm:%s49]
    %51 = vrot.lane.b32.xlu0 %v50, 16
    %v52 = vpop.permute.xlu0 %51
    %vm53 = vcmask 261248
    %54 = vst.msk [vmem:[#allocation0] ss:$8 sm:$0x3] %vm53, %v52
    %s56 = ssub.s32 2, 1
    %v57 = vld [vmem:[#allocation0] sm:%s56]
    %s59 = ssub.s32 2, 1
    %60 = vst [vmem:[%s1] sm:%s59] %v57
    %s61 = scalar_lea.vmem [#allocation0], 8
    %v62 = vld [vmem:[%s61] sm:%s56]
    %s64 = ssub.s32 2, 1
    %s65 = scalar_lea.vmem %s1, 1
    %66 = vst [vmem:[%s65] sm:%s64] %v62

// kernel: residual_block.5
$region0: #{residual_block.5}
  #allocation0 [shape = 'u32[]', space=smem, size = 0x4, offset = 0x4, fixed_abs, tag = 'smem constant byte address 0x4 - core index']
  #allocation1 [shape = 'u32[72,128]{1,0:T(1,128)}', space=vmem, size = 0x9000, scoped, tag = 'internal scratch']
  %s0 = inlined_call_operand.vmem [shape: f32[2,16,256], index: 0, kind: input, shape index: {}]
  %s1 = inlined_call_operand.vmem [shape: f32[2,16,256], index: 1, kind: input, shape index: {}]
  %s2 = inlined_call_operand.vmem [shape: f32[1,256], index: 2, kind: input, shape index: {}]
  %s3 = inlined_call_operand.vmem [shape: f32[1,256], index: 3, kind: input, shape index: {}]
  %s4 = inlined_call_operand.vmem [shape: f32[2,16,256], index: 4, kind: output, shape index: {}]
  %s5 = sld [smem:[#allocation0]]
  $region49: #{residual_block.5} parent=0
    _
  %s7 = ssub.s32 1, %s5
  %s8 = scalar_select 0, %s7, %s5
  loop: start=0, step=1, limit=4
  $region2: #{residual_block.5} parent=0 // loop_pre_header
    _
  $region3: #{residual_block.5} parent=0 // loop_header
    %s10 = sphi 0, %s14
    %p11 = scmp.ge.s32.totalorder %s10, 4
    %s20 = sphi 0, %s22
    %s23 = sphi 0, %s20
    %s24 = sphi 0, %s23
    %s40 = sphi 0, %s24
    %s46 = sphi 0, %s48
    %s49 = sphi 0, %s46
    %s50 = sphi 0, %s49
    %s66 = sphi 0, %s50
    %s70 = sphi 0, %s70
    %s72 = sphi 0, %s70
    %s73 = sphi 0, %s72
    %s87 = sphi 0, %s73
    %s91 = sphi 0, %s91
    %s93 = sphi 0, %s91
    %s94 = sphi 0, %s93
    %s108 = sphi 0, %s94
    %s114 = sphi 0, %s116
    %s117 = sphi 0, %s114
    %s118 = sphi 0, %s117
    %s134 = sphi 0, %s118
  $region4: #{residual_block.5} parent=0 // loop_header_branch
    %13 = sbr.rel (%p11) target = $region8
  $region5: #{residual_block.5} parent=0 // loop_body
    %s15 = ssub.s32 %s10, 1
    %s16 = ssub.s32 %s10, 2
    %s17 = sadd.s32 %s10, 1
    %s18 = ssub.s32 %s10, %s17
    %p19 = scmp.eq.s32.totalorder %s18, 0
    %s21 = sadd.s32 %s20, 1
    %s22 = scalar_select %p19, %s20, %s21
    %p25 = pneg %p19
    %p26 = scmp.eq.s32.totalorder %s10, 1
    %p27 = por %p25, %p26
    %p28 = scmp.ne.s32.totalorder %s20, %s23
    %p29 = scmp.eq.s32.totalorder %s10, 0
    %p30 = por %p28, %p29
    %p31 = scmp.ne.s32.totalorder %s20, %s23
    %p32 = scmp.eq.s32.totalorder %s15, 1
    %p33 = por %p31, %p32
    %p34 = scmp.ne.s32.totalorder %s23, %s24
    %p35 = scmp.eq.s32.totalorder %s15, 0
    %p36 = por %p34, %p35
    %p37 = scmp.ne.s32.totalorder %s23, %s24
    %p38 = scmp.eq.s32.totalorder %s16, 1
    %p39 = por %p37, %p38
    %p41 = scmp.ne.s32.totalorder %s24, %s40
    %p42 = scmp.eq.s32.totalorder %s16, 0
    %p43 = por %p41, %p42
    %s44 = ssub.s32 %s10, %s17
    %p45 = scmp.eq.s32.totalorder %s44, 0
    %s47 = sadd.s32 %s46, 1
    %s48 = scalar_select %p45, %s46, %s47
    %p51 = pneg %p45
    %p52 = scmp.eq.s32.totalorder %s10, 1
    %p53 = por %p51, %p52
    %p54 = scmp.ne.s32.totalorder %s46, %s49
    %p55 = scmp.eq.s32.totalorder %s10, 0
    %p56 = por %p54, %p55
    %p57 = scmp.ne.s32.totalorder %s46, %s49
    %p58 = scmp.eq.s32.totalorder %s15, 1
    %p59 = por %p57, %p58
    %p60 = scmp.ne.s32.totalorder %s49, %s50
    %p61 = scmp.eq.s32.totalorder %s15, 0
    %p62 = por %p60, %p61
    %p63 = scmp.ne.s32.totalorder %s49, %s50
    %p64 = scmp.eq.s32.totalorder %s16, 1
    %p65 = por %p63, %p64
    %p67 = scmp.ne.s32.totalorder %s50, %s66
    %p68 = scmp.eq.s32.totalorder %s16, 0
    %p69 = por %p67, %p68
    %s71 = sadd.s32 %s70, 1
    %p74 = scmp.eq.s32.totalorder %s10, 1
    %p75 = scmp.ne.s32.totalorder %s70, %s72
    %p76 = scmp.eq.s32.totalorder %s10, 0
    %p77 = por %p75, %p76
    %p78 = scmp.ne.s32.totalorder %s70, %s72
    %p79 = scmp.eq.s32.totalorder %s15, 1
    %p80 = por %p78, %p79
    %p81 = scmp.ne.s32.totalorder %s72, %s73
    %p82 = scmp.eq.s32.totalorder %s15, 0
    %p83 = por %p81, %p82
    %p84 = scmp.ne.s32.totalorder %s72, %s73
    %p85 = scmp.eq.s32.totalorder %s16, 1
    %p86 = por %p84, %p85
    %p88 = scmp.ne.s32.totalorder %s73, %s87
    %p89 = scmp.eq.s32.totalorder %s16, 0
    %p90 = por %p88, %p89
    %s92 = sadd.s32 %s91, 1
    %p95 = scmp.eq.s32.totalorder %s10, 1
    %p96 = scmp.ne.s32.totalorder %s91, %s93
    %p97 = scmp.eq.s32.totalorder %s10, 0
    %p98 = por %p96, %p97
    %p99 = scmp.ne.s32.totalorder %s91, %s93
    %p100 = scmp.eq.s32.totalorder %s15, 1
    %p101 = por %p99, %p100
    %p102 = scmp.ne.s32.totalorder %s93, %s94
    %p103 = scmp.eq.s32.totalorder %s15, 0
    %p104 = por %p102, %p103
    %p105 = scmp.ne.s32.totalorder %s93, %s94
    %p106 = scmp.eq.s32.totalorder %s16, 1
    %p107 = por %p105, %p106
    %p109 = scmp.ne.s32.totalorder %s94, %s108
    %p110 = scmp.eq.s32.totalorder %s16, 0
    %p111 = por %p109, %p110
    %s112 = ssub.s32 %s10, %s17
    %p113 = scmp.eq.s32.totalorder %s112, 0
    %s115 = sadd.s32 %s114, 1
    %s116 = scalar_select %p113, %s114, %s115
    %p119 = pneg %p113
    %p120 = scmp.eq.s32.totalorder %s10, 1
    %p121 = por %p119, %p120
    %p122 = scmp.ne.s32.totalorder %s114, %s117
    %p123 = scmp.eq.s32.totalorder %s10, 0
    %p124 = por %p122, %p123
    %p125 = scmp.ne.s32.totalorder %s114, %s117
    %p126 = scmp.eq.s32.totalorder %s15, 1
    %p127 = por %p125, %p126
    %p128 = scmp.ne.s32.totalorder %s117, %s118
    %p129 = scmp.eq.s32.totalorder %s15, 0
    %p130 = por %p128, %p129
    %p131 = scmp.ne.s32.totalorder %s117, %s118
    %p132 = scmp.eq.s32.totalorder %s16, 1
    %p133 = por %p131, %p132
    %p135 = scmp.ne.s32.totalorder %s118, %s134
    %p136 = scmp.eq.s32.totalorder %s16, 0
    %p137 = por %p135, %p136
    %p138 = scmp.le.s32.totalorder 1, %s10
    %p139 = scmp.lt.s32.totalorder %s10, 3
    %p140 = pnand %p138, %p139
    %p141 = pneg %p140
    // Predicated region
    $region9: #{residual_block.5} parent=5 // pred_check
      _
    $region10: #{residual_block.5} parent=5 // pred_check_branch
      %143 = sbr.rel (%p140) target = $region12
    $region11: #{residual_block.5} parent=5 // pred_region
      %s144 = ssub.s32 %s10, 1
      // Predicated region
      $region13: #{residual_block.5} parent=11 // pred_check
        %p145 = pneg %p83
      $region14: #{residual_block.5} parent=11 // pred_check_branch
        %147 = sbr.rel (%p145) target = $region16
      $region15: #{residual_block.5} parent=11 // pred_region
        _
      $region16: #{residual_block.5} parent=11 // pred_fallthru
        _
      // Predicated region
      $region17: #{residual_block.5} parent=11 // pred_check
        %p148 = pneg %p104
      $region18: #{residual_block.5} parent=11 // pred_check_branch
        %150 = sbr.rel (%p148) target = $region20
      $region19: #{residual_block.5} parent=11 // pred_region
        _
      $region20: #{residual_block.5} parent=11 // pred_fallthru
        _
    $region12: #{residual_block.5} parent=5 // pred_fallthru
      _
    %p151 = scmp.lt.s32.totalorder %s10, 2
    // Predicated region
    $region21: #{residual_block.5} parent=5 // pred_check
      %p152 = pneg %p151
    $region22: #{residual_block.5} parent=5 // pred_check_branch
      %154 = sbr.rel (%p152) target = $region24
    $region23: #{residual_block.5} parent=5 // pred_region
      // Predicated region
      $region25: #{residual_block.5} parent=23 // pred_check
        %p155 = pneg %p30
      $region26: #{residual_block.5} parent=23 // pred_check_branch
        %157 = sbr.rel (%p155) target = $region28
      $region27: #{residual_block.5} parent=23 // pred_region
        %p158 = scmp.lt.s32.totalorder %s10, 1
        %s159 = scalar_select %p158, %s10, 1
        %s160 = smul.addr %s159, 4
        %s161 = smul.addr %s160, 8
        %s162 = scalar_lea.vmem %s0, %s161
      $region28: #{residual_block.5} parent=23 // pred_fallthru
        _
      // Predicated region
      $region29: #{residual_block.5} parent=23 // pred_check
        %p163 = pneg %p56
      $region30: #{residual_block.5} parent=23 // pred_check_branch
        %165 = sbr.rel (%p163) target = $region32
      $region31: #{residual_block.5} parent=23 // pred_region
        %p166 = scmp.lt.s32.totalorder %s10, 1
        %s167 = scalar_select %p166, %s10, 1
        %s168 = smul.addr %s167, 4
        %s169 = smul.addr %s168, 8
        %s170 = scalar_lea.vmem %s1, %s169
      $region32: #{residual_block.5} parent=23 // pred_fallthru
        _
    $region24: #{residual_block.5} parent=5 // pred_fallthru
      _
    %p171 = scmp.le.s32.totalorder 1, %s10
    %p172 = scmp.lt.s32.totalorder %s10, 3
    %p173 = pnand %p171, %p172
    %p174 = pneg %p173
    // Predicated region
    $region33: #{residual_block.5} parent=5 // pred_check
      _
    $region34: #{residual_block.5} parent=5 // pred_check_branch
      %176 = sbr.rel (%p173) target = $region36
    $region35: #{residual_block.5} parent=5 // pred_region
      %s177 = ssub.s32 %s10, 1
      %p178 = scmp.lt.s32.totalorder %s15, 1
      %s179 = scalar_select %p178, %s15, 1
      %s180 = smul.addr %s179, 4
      %s181 = smul.addr %s180, 8
      %s182 = scalar_lea.vmem %s0, %s181
      %p183 = pneg %p36
      %p184 = pneg %p33
      %p185 = scmp.lt.s32.totalorder %s15, 1
      %s186 = scalar_select %p185, %s15, 1
      %s187 = smul.addr %s186, 4
      %s188 = smul.addr %s187, 8
      %s189 = scalar_lea.vmem %s1, %s188
      %p190 = pneg %p62
      %p191 = pneg %p59
      %p192 = pneg %p83
      %p193 = pneg %p80
      %p194 = pneg %p104
      %p195 = pneg %p101
      %p196 = pneg %p130
      %p197 = pneg %p127
      %p198 = scmp.lt.s32.totalorder %s15, 1
      %s199 = scalar_select %p198, %s15, 1
      %s200 = smul.addr %s199, 4
      %s201 = smul.addr %s200, 8
      %s202 = scalar_lea.vmem %s4, %s201
      %p203 = scmp.lt.s32.totalorder %s15, 1
      %s204 = scalar_select %p203, %s15, 1
      %s205 = smul.addr %s204, 4
      %s206 = smul.addr %s205, 8
      %s207 = scalar_lea.vmem %s0, %s206
      %p208 = scmp.lt.s32.totalorder %s15, 1
      %s209 = scalar_select %p208, %s15, 1
      %s210 = smul.addr %s209, 4
      %s211 = smul.addr %s210, 8
      %s212 = scalar_lea.vmem %s1, %s211
      %p213 = scmp.lt.s32.totalorder %s15, 1
      %s214 = scalar_select %p213, %s15, 1
      %s215 = smul.addr %s214, 4
      %s216 = smul.addr %s215, 8
      %s217 = scalar_lea.vmem %s4, %s216
      %v218 = vld [vmem:[%s207] sm:$0xff]
      %v219 = vld [vmem:[%s207 + $0x8] sm:$0xff]
      %v220 = vld [vmem:[%s207 + $0x10] sm:$0xff]
      %v221 = vld [vmem:[%s207 + $0x18] sm:$0xff]
      %v222 = vld [vmem:[%s2] sm:$0x3]
      %v224 = vperm.slane %v222, 0
      %v225 = vperm.slane %v222, 1
      %v228 = vmul.f32 %v218, %v224
      %v229 = vmul.f32 %v219, %v225
      %v230 = vmul.f32 %v220, %v224
      %v231 = vmul.f32 %v221, %v225
      %v232 = vld [vmem:[%s3] sm:$0x3]
      %v234 = vperm.slane %v232, 0
      %v235 = vperm.slane %v232, 1
      %v238 = vadd.f32 %v228, %v234
      %v239 = vadd.f32 %v229, %v235
      %v240 = vadd.f32 %v230, %v234
      %v241 = vadd.f32 %v231, %v235
      %v242 = vld [vmem:[%s212] sm:$0xff]
      %v243 = vld [vmem:[%s212 + $0x8] sm:$0xff]
      %v244 = vld [vmem:[%s212 + $0x10] sm:$0xff]
      %v245 = vld [vmem:[%s212 + $0x18] sm:$0xff]
      %v246 = vadd.f32 %v238, %v242
      %v247 = vadd.f32 %v239, %v243
      %v248 = vadd.f32 %v240, %v244
      %v249 = vadd.f32 %v241, %v245
      %v250 = vmax.f32 %v246, 0.0
      %v251 = vmax.f32 %v247, 0.0
      %v252 = vmax.f32 %v248, 0.0
      %v253 = vmax.f32 %v249, 0.0
      %254 = vst [vmem:[%s217] sm:$0xff] %v250
      %255 = vst [vmem:[%s217 + $0x8] sm:$0xff] %v251
      %256 = vst [vmem:[%s217 + $0x10] sm:$0xff] %v252
      %257 = vst [vmem:[%s217 + $0x18] sm:$0xff] %v253
      %p258 = scmp.lt.s32.totalorder %s15, 1
      %s259 = scalar_select %p258, %s15, 1
      %s260 = smul.addr %s259, 4
      %s261 = smul.addr %s260, 8
      %s262 = scalar_lea.vmem %s4, %s261
      // Predicated region
      $region37: #{residual_block.5} parent=35 // pred_check
        %p263 = pneg %p127
      $region38: #{residual_block.5} parent=35 // pred_check_branch
        %265 = sbr.rel (%p263) target = $region40
      $region39: #{residual_block.5} parent=35 // pred_region
        _
      $region40: #{residual_block.5} parent=35 // pred_fallthru
        _
    $region36: #{residual_block.5} parent=5 // pred_fallthru
      _
    %p266 = scmp.le.s32.totalorder 2, %s10
    // Predicated region
    $region41: #{residual_block.5} parent=5 // pred_check
      %p267 = pneg %p266
    $region42: #{residual_block.5} parent=5 // pred_check_branch
      %269 = sbr.rel (%p267) target = $region44
    $region43: #{residual_block.5} parent=5 // pred_region
      %s270 = ssub.s32 %s10, 2
      // Predicated region
      $region45: #{residual_block.5} parent=43 // pred_check
        %p271 = pneg %p133
      $region46: #{residual_block.5} parent=43 // pred_check_branch
        %273 = sbr.rel (%p271) target = $region48
      $region47: #{residual_block.5} parent=43 // pred_region
        %p274 = scmp.lt.s32.totalorder %s16, 1
        %s275 = scalar_select %p274, %s16, 1
        %s276 = smul.addr %s275, 4
        %s277 = smul.addr %s276, 8
        %s278 = scalar_lea.vmem %s4, %s277
      $region48: #{residual_block.5} parent=43 // pred_fallthru
        _
    $region44: #{residual_block.5} parent=5 // pred_fallthru
      _
  $region6: #{residual_block.5} parent=0 // loop_footer
    %s14 = sadd.s32 1, %s10
  $region7: #{residual_block.5} parent=0 // loop_footer_branch
    %9 = sbr.rel target = $region3
  $region8: #{residual_block.5} parent=0 // loop_exit
    _

// kernel: residual_block.4
$region0: #{residual_block.4}
  #allocation0 [shape = 'u32[]', space=smem, size = 0x4, offset = 0x4, fixed_abs, tag = 'smem constant byte address 0x4 - core index']
  #allocation1 [shape = 'u32[72,128]{1,0:T(1,128)}', space=vmem, size = 0x9000, scoped, tag = 'internal scratch']
  #allocation2 [shape = 'f32[1,18,18,16]{3,2,1,0:T(8,128)}', space=vmem, size = 0x36000, scoped, tag = 'scratch operand']
  %s0 = inlined_call_operand.vmem [shape: f32[2,16,16,16], index: 0, kind: input, shape index: {}]
  %s1 = inlined_call_operand.vmem [shape: f32[1,16], index: 1, kind: input, shape index: {}]
  %s2 = inlined_call_operand.vmem [shape: f32[1,16], index: 2, kind: input, shape index: {}]
  %s3 = inlined_call_operand.vmem [shape: f32[144,16], index: 3, kind: input, shape index: {}]
  %s4 = inlined_call_operand.vmem [shape: f32[2,16,256], index: 4, kind: output, shape index: {0}]
  %s5 = inlined_call_operand.vmem [shape: f32[2,2,16], index: 5, kind: output, shape index: {1}]
  %6 = xla_tuple %s4, %s5
  %s7 = sld [smem:[#allocation0]]
  $region57: #{residual_block.4} parent=0
    _
  %s9 = ssub.s32 1, %s7
  %s10 = scalar_select 0, %s9, %s7
  loop: start=0, step=1, limit=4
  $region2: #{residual_block.4} parent=0 // loop_pre_header
    _
  $region3: #{residual_block.4} parent=0 // loop_header
    %s12 = sphi 0, %s16
    %p13 = scmp.ge.s32.totalorder %s12, 4
    %s22 = sphi 0, %s24
    %s25 = sphi 0, %s22
    %s26 = sphi 0, %s25
    %s42 = sphi 0, %s26
    %s46 = sphi 0, %s46
    %s48 = sphi 0, %s46
    %s49 = sphi 0, %s48
    %s63 = sphi 0, %s49
    %s67 = sphi 0, %s67
    %s69 = sphi 0, %s67
    %s70 = sphi 0, %s69
    %s84 = sphi 0, %s70
    %s88 = sphi 0, %s88
    %s90 = sphi 0, %s88
    %s91 = sphi 0, %s90
    %s105 = sphi 0, %s91
    %s111 = sphi 0, %s113
    %s114 = sphi 0, %s111
    %s115 = sphi 0, %s114
    %s131 = sphi 0, %s115
    %s137 = sphi 0, %s139
    %s140 = sphi 0, %s137
    %s141 = sphi 0, %s140
    %s157 = sphi 0, %s141
  $region4: #{residual_block.4} parent=0 // loop_header_branch
    %15 = sbr.rel (%p13) target = $region8
  $region5: #{residual_block.4} parent=0 // loop_body
    %s17 = ssub.s32 %s12, 1
    %s18 = ssub.s32 %s12, 2
    %s19 = sadd.s32 %s12, 1
    %s20 = ssub.s32 %s12, %s19
    %p21 = scmp.eq.s32.totalorder %s20, 0
    %s23 = sadd.s32 %s22, 1
    %s24 = scalar_select %p21, %s22, %s23
    %p27 = pneg %p21
    %p28 = scmp.eq.s32.totalorder %s12, 1
    %p29 = por %p27, %p28
    %p30 = scmp.ne.s32.totalorder %s22, %s25
    %p31 = scmp.eq.s32.totalorder %s12, 0
    %p32 = por %p30, %p31
    %p33 = scmp.ne.s32.totalorder %s22, %s25
    %p34 = scmp.eq.s32.totalorder %s17, 1
    %p35 = por %p33, %p34
    %p36 = scmp.ne.s32.totalorder %s25, %s26
    %p37 = scmp.eq.s32.totalorder %s17, 0
    %p38 = por %p36, %p37
    %p39 = scmp.ne.s32.totalorder %s25, %s26
    %p40 = scmp.eq.s32.totalorder %s18, 1
    %p41 = por %p39, %p40
    %p43 = scmp.ne.s32.totalorder %s26, %s42
    %p44 = scmp.eq.s32.totalorder %s18, 0
    %p45 = por %p43, %p44
    %s47 = sadd.s32 %s46, 1
    %p50 = scmp.eq.s32.totalorder %s12, 1
    %p51 = scmp.ne.s32.totalorder %s46, %s48
    %p52 = scmp.eq.s32.totalorder %s12, 0
    %p53 = por %p51, %p52
    %p54 = scmp.ne.s32.totalorder %s46, %s48
    %p55 = scmp.eq.s32.totalorder %s17, 1
    %p56 = por %p54, %p55
    %p57 = scmp.ne.s32.totalorder %s48, %s49
    %p58 = scmp.eq.s32.totalorder %s17, 0
    %p59 = por %p57, %p58
    %p60 = scmp.ne.s32.totalorder %s48, %s49
    %p61 = scmp.eq.s32.totalorder %s18, 1
    %p62 = por %p60, %p61
    %p64 = scmp.ne.s32.totalorder %s49, %s63
    %p65 = scmp.eq.s32.totalorder %s18, 0
    %p66 = por %p64, %p65
    %s68 = sadd.s32 %s67, 1
    %p71 = scmp.eq.s32.totalorder %s12, 1
    %p72 = scmp.ne.s32.totalorder %s67, %s69
    %p73 = scmp.eq.s32.totalorder %s12, 0
    %p74 = por %p72, %p73
    %p75 = scmp.ne.s32.totalorder %s67, %s69
    %p76 = scmp.eq.s32.totalorder %s17, 1
    %p77 = por %p75, %p76
    %p78 = scmp.ne.s32.totalorder %s69, %s70
    %p79 = scmp.eq.s32.totalorder %s17, 0
    %p80 = por %p78, %p79
    %p81 = scmp.ne.s32.totalorder %s69, %s70
    %p82 = scmp.eq.s32.totalorder %s18, 1
    %p83 = por %p81, %p82
    %p85 = scmp.ne.s32.totalorder %s70, %s84
    %p86 = scmp.eq.s32.totalorder %s18, 0
    %p87 = por %p85, %p86
    %s89 = sadd.s32 %s88, 1
    %p92 = scmp.eq.s32.totalorder %s12, 1
    %p93 = scmp.ne.s32.totalorder %s88, %s90
    %p94 = scmp.eq.s32.totalorder %s12, 0
    %p95 = por %p93, %p94
    %p96 = scmp.ne.s32.totalorder %s88, %s90
    %p97 = scmp.eq.s32.totalorder %s17, 1
    %p98 = por %p96, %p97
    %p99 = scmp.ne.s32.totalorder %s90, %s91
    %p100 = scmp.eq.s32.totalorder %s17, 0
    %p101 = por %p99, %p100
    %p102 = scmp.ne.s32.totalorder %s90, %s91
    %p103 = scmp.eq.s32.totalorder %s18, 1
    %p104 = por %p102, %p103
    %p106 = scmp.ne.s32.totalorder %s91, %s105
    %p107 = scmp.eq.s32.totalorder %s18, 0
    %p108 = por %p106, %p107
    %s109 = ssub.s32 %s12, %s19
    %p110 = scmp.eq.s32.totalorder %s109, 0
    %s112 = sadd.s32 %s111, 1
    %s113 = scalar_select %p110, %s111, %s112
    %p116 = pneg %p110
    %p117 = scmp.eq.s32.totalorder %s12, 1
    %p118 = por %p116, %p117
    %p119 = scmp.ne.s32.totalorder %s111, %s114
    %p120 = scmp.eq.s32.totalorder %s12, 0
    %p121 = por %p119, %p120
    %p122 = scmp.ne.s32.totalorder %s111, %s114
    %p123 = scmp.eq.s32.totalorder %s17, 1
    %p124 = por %p122, %p123
    %p125 = scmp.ne.s32.totalorder %s114, %s115
    %p126 = scmp.eq.s32.totalorder %s17, 0
    %p127 = por %p125, %p126
    %p128 = scmp.ne.s32.totalorder %s114, %s115
    %p129 = scmp.eq.s32.totalorder %s18, 1
    %p130 = por %p128, %p129
    %p132 = scmp.ne.s32.totalorder %s115, %s131
    %p133 = scmp.eq.s32.totalorder %s18, 0
    %p134 = por %p132, %p133
    %s135 = ssub.s32 %s12, %s19
    %p136 = scmp.eq.s32.totalorder %s135, 0
    %s138 = sadd.s32 %s137, 1
    %s139 = scalar_select %p136, %s137, %s138
    %p142 = pneg %p136
    %p143 = scmp.eq.s32.totalorder %s12, 1
    %p144 = por %p142, %p143
    %p145 = scmp.ne.s32.totalorder %s137, %s140
    %p146 = scmp.eq.s32.totalorder %s12, 0
    %p147 = por %p145, %p146
    %p148 = scmp.ne.s32.totalorder %s137, %s140
    %p149 = scmp.eq.s32.totalorder %s17, 1
    %p150 = por %p148, %p149
    %p151 = scmp.ne.s32.totalorder %s140, %s141
    %p152 = scmp.eq.s32.totalorder %s17, 0
    %p153 = por %p151, %p152
    %p154 = scmp.ne.s32.totalorder %s140, %s141
    %p155 = scmp.eq.s32.totalorder %s18, 1
    %p156 = por %p154, %p155
    %p158 = scmp.ne.s32.totalorder %s141, %s157
    %p159 = scmp.eq.s32.totalorder %s18, 0
    %p160 = por %p158, %p159
    %p161 = scmp.le.s32.totalorder 1, %s12
    %p162 = scmp.lt.s32.totalorder %s12, 3
    %p163 = pnand %p161, %p162
    %p164 = pneg %p163
    // Predicated region
    $region9: #{residual_block.4} parent=5 // pred_check
      _
    $region10: #{residual_block.4} parent=5 // pred_check_branch
      %166 = sbr.rel (%p163) target = $region12
    $region11: #{residual_block.4} parent=5 // pred_region
      %s167 = ssub.s32 %s12, 1
      // Predicated region
      $region13: #{residual_block.4} parent=11 // pred_check
        %p168 = pneg %p59
      $region14: #{residual_block.4} parent=11 // pred_check_branch
        %170 = sbr.rel (%p168) target = $region16
      $region15: #{residual_block.4} parent=11 // pred_region
        _
      $region16: #{residual_block.4} parent=11 // pred_fallthru
        _
      // Predicated region
      $region17: #{residual_block.4} parent=11 // pred_check
        %p171 = pneg %p80
      $region18: #{residual_block.4} parent=11 // pred_check_branch
        %173 = sbr.rel (%p171) target = $region20
      $region19: #{residual_block.4} parent=11 // pred_region
        _
      $region20: #{residual_block.4} parent=11 // pred_fallthru
        _
      // Predicated region
      $region21: #{residual_block.4} parent=11 // pred_check
        %p174 = pneg %p101
      $region22: #{residual_block.4} parent=11 // pred_check_branch
        %176 = sbr.rel (%p174) target = $region24
      $region23: #{residual_block.4} parent=11 // pred_region
        _
      $region24: #{residual_block.4} parent=11 // pred_fallthru
        _
    $region12: #{residual_block.4} parent=5 // pred_fallthru
      _
    %p177 = scmp.lt.s32.totalorder %s12, 2
    // Predicated region
    $region25: #{residual_block.4} parent=5 // pred_check
      %p178 = pneg %p177
    $region26: #{residual_block.4} parent=5 // pred_check_branch
      %180 = sbr.rel (%p178) target = $region28
    $region27: #{residual_block.4} parent=5 // pred_region
      // Predicated region
      $region29: #{residual_block.4} parent=27 // pred_check
        %p181 = pneg %p32
      $region30: #{residual_block.4} parent=27 // pred_check_branch
        %183 = sbr.rel (%p181) target = $region32
      $region31: #{residual_block.4} parent=27 // pred_region
        %p184 = scmp.lt.s32.totalorder %s12, 1
        %s185 = scalar_select %p184, %s12, 1
        %s186 = smul.addr %s185, 32
        %s187 = smul.addr %s186, 8
        %s188 = scalar_lea.vmem %s0, %s187
      $region32: #{residual_block.4} parent=27 // pred_fallthru
        _
    $region28: #{residual_block.4} parent=5 // pred_fallthru
      _
    %p189 = scmp.le.s32.totalorder 1, %s12
    %p190 = scmp.lt.s32.totalorder %s12, 3
    %p191 = pnand %p189, %p190
    %p192 = pneg %p191
    // Predicated region
    $region33: #{residual_block.4} parent=5 // pred_check
      _
    $region34: #{residual_block.4} parent=5 // pred_check_branch
      %194 = sbr.rel (%p191) target = $region36
    $region35: #{residual_block.4} parent=5 // pred_region
      %s195 = ssub.s32 %s12, 1
      %p196 = scmp.lt.s32.totalorder %s17, 1
      %s197 = scalar_select %p196, %s17, 1
      %s198 = smul.addr %s197, 32
      %s199 = smul.addr %s198, 8
      %s200 = scalar_lea.vmem %s0, %s199
      %p201 = pneg %p38
      %p202 = pneg %p35
      %p203 = pneg %p59
      %p204 = pneg %p56
      %p205 = pneg %p80
      %p206 = pneg %p77
      %p207 = pneg %p101
      %p208 = pneg %p98
      %p209 = pneg %p127
      %p210 = pneg %p124
      %p211 = scmp.lt.s32.totalorder %s17, 1
      %s212 = scalar_select %p211, %s17, 1
      %s213 = smul.addr %s212, 4
      %s214 = smul.addr %s213, 8
      %s215 = scalar_lea.vmem %s4, %s214
      %p216 = pneg %p153
      %p217 = pneg %p150
      %p218 = scmp.lt.s32.totalorder %s17, 1
      %s219 = scalar_select %p218, %s17, 1
      %s220 = smul.addr %s219, 2
      %s221 = scalar_lea.vmem %s5, %s220
      %p222 = scmp.lt.s32.totalorder %s17, 1
      %s223 = scalar_select %p222, %s17, 1
      %s224 = smul.addr %s223, 32
      %s225 = smul.addr %s224, 8
      %s226 = scalar_lea.vmem %s0, %s225
      %p227 = scmp.lt.s32.totalorder %s17, 1
      %s228 = scalar_select %p227, %s17, 1
      %s229 = smul.addr %s228, 4
      %s230 = smul.addr %s229, 8
      %s231 = scalar_lea.vmem %s4, %s230
      %p232 = scmp.lt.s32.totalorder %s17, 1
      %s233 = scalar_select %p232, %s17, 1
      %s234 = smul.addr %s233, 2
      %s235 = scalar_lea.vmem %s5, %s234
      %v236 = vld [vmem:[%s226] sm:$0xff]
      %v237 = vld [vmem:[%s226 + $0x8] sm:$0xff]
      %v238 = vld [vmem:[%s226 + $0x10] sm:$0xff]
      %v239 = vld [vmem:[%s226 + $0x18] sm:$0xff]
      %v240 = vld [vmem:[%s226 + $0x20] sm:$0xff]
      %v241 = vld [vmem:[%s226 + $0x28] sm:$0xff]
      %v242 = vld [vmem:[%s226 + $0x30] sm:$0xff]
      %v243 = vld [vmem:[%s226 + $0x38] sm:$0xff]
      %v244 = vld [vmem:[%s226 + $0x40] sm:$0xff]
      %v245 = vld [vmem:[%s226 + $0x48] sm:$0xff]
      %v246 = vld [vmem:[%s226 + $0x50] sm:$0xff]
      %v247 = vld [vmem:[%s226 + $0x58] sm:$0xff]
      %v248 = vld [vmem:[%s226 + $0x60] sm:$0xff]
      %v249 = vld [vmem:[%s226 + $0x68] sm:$0xff]
      %v250 = vld [vmem:[%s226 + $0x70] sm:$0xff]
      %v251 = vld [vmem:[%s226 + $0x78] sm:$0xff]
      %v252 = vld [vmem:[%s226 + $0x80] sm:$0xff]
      %v253 = vld [vmem:[%s226 + $0x88] sm:$0xff]
      %v254 = vld [vmem:[%s226 + $0x90] sm:$0xff]
      %v255 = vld [vmem:[%s226 + $0x98] sm:$0xff]
      %v256 = vld [vmem:[%s226 + $0xa0] sm:$0xff]
      %v257 = vld [vmem:[%s226 + $0xa8] sm:$0xff]
      %v258 = vld [vmem:[%s226 + $0xb0] sm:$0xff]
      %v259 = vld [vmem:[%s226 + $0xb8] sm:$0xff]
      %v260 = vld [vmem:[%s226 + $0xc0] sm:$0xff]
      %v261 = vld [vmem:[%s226 + $0xc8] sm:$0xff]
      %v262 = vld [vmem:[%s226 + $0xd0] sm:$0xff]
      %v263 = vld [vmem:[%s226 + $0xd8] sm:$0xff]
      %v264 = vld [vmem:[%s226 + $0xe0] sm:$0xff]
      %v265 = vld [vmem:[%s226 + $0xe8] sm:$0xff]
      %v266 = vld [vmem:[%s226 + $0xf0] sm:$0xff]
      %v267 = vld [vmem:[%s226 + $0xf8] sm:$0xff]
      %v268 = vld [vmem:[%s1] sm:$0x1]
      %v270 = vperm.slane %v268, 0
      %v272 = vmul.f32 %v236, %v270
      %v273 = vmul.f32 %v237, %v270
      %v274 = vmul.f32 %v238, %v270
      %v275 = vmul.f32 %v239, %v270
      %v276 = vmul.f32 %v240, %v270
      %v277 = vmul.f32 %v241, %v270
      %v278 = vmul.f32 %v242, %v270
      %v279 = vmul.f32 %v243, %v270
      %v280 = vmul.f32 %v244, %v270
      %v281 = vmul.f32 %v245, %v270
      %v282 = vmul.f32 %v246, %v270
      %v283 = vmul.f32 %v247, %v270
      %v284 = vmul.f32 %v248, %v270
      %v285 = vmul.f32 %v249, %v270
      %v286 = vmul.f32 %v250, %v270
      %v287 = vmul.f32 %v251, %v270
      %v288 = vmul.f32 %v252, %v270
      %v289 = vmul.f32 %v253, %v270
      %v290 = vmul.f32 %v254, %v270
      %v291 = vmul.f32 %v255, %v270
      %v292 = vmul.f32 %v256, %v270
      %v293 = vmul.f32 %v257, %v270
      %v294 = vmul.f32 %v258, %v270
      %v295 = vmul.f32 %v259, %v270
      %v296 = vmul.f32 %v260, %v270
      %v297 = vmul.f32 %v261, %v270
      %v298 = vmul.f32 %v262, %v270
      %v299 = vmul.f32 %v263, %v270
      %v300 = vmul.f32 %v264, %v270
      %v301 = vmul.f32 %v265, %v270
      %v302 = vmul.f32 %v266, %v270
      %v303 = vmul.f32 %v267, %v270
      %v304 = vld [vmem:[%s2] sm:$0x1]
      %v306 = vperm.slane %v304, 0
      %v308 = vadd.f32 %v272, %v306
      %v309 = vadd.f32 %v273, %v306
      %v310 = vadd.f32 %v274, %v306
      %v311 = vadd.f32 %v275, %v306
      %v312 = vadd.f32 %v276, %v306
      %v313 = vadd.f32 %v277, %v306
      %v314 = vadd.f32 %v278, %v306
      %v315 = vadd.f32 %v279, %v306
      %v316 = vadd.f32 %v280, %v306
      %v317 = vadd.f32 %v281, %v306
      %v318 = vadd.f32 %v282, %v306
      %v319 = vadd.f32 %v283, %v306
      %v320 = vadd.f32 %v284, %v306
      %v321 = vadd.f32 %v285, %v306
      %v322 = vadd.f32 %v286, %v306
      %v323 = vadd.f32 %v287, %v306
      %v324 = vadd.f32 %v288, %v306
      %v325 = vadd.f32 %v289, %v306
      %v326 = vadd.f32 %v290, %v306
      %v327 = vadd.f32 %v291, %v306
      %v328 = vadd.f32 %v292, %v306
      %v329 = vadd.f32 %v293, %v306
      %v330 = vadd.f32 %v294, %v306
      %v331 = vadd.f32 %v295, %v306
      %v332 = vadd.f32 %v296, %v306
      %v333 = vadd.f32 %v297, %v306
      %v334 = vadd.f32 %v298, %v306
      %v335 = vadd.f32 %v299, %v306
      %v336 = vadd.f32 %v300, %v306
      %v337 = vadd.f32 %v301, %v306
      %v338 = vadd.f32 %v302, %v306
      %v339 = vadd.f32 %v303, %v306
      %v340 = vmax.f32 %v308, 0.0
      %v341 = vmax.f32 %v309, 0.0
      %v342 = vmax.f32 %v310, 0.0
      %v343 = vmax.f32 %v311, 0.0
      %v344 = vmax.f32 %v312, 0.0
      %v345 = vmax.f32 %v313, 0.0
      %v346 = vmax.f32 %v314, 0.0
      %v347 = vmax.f32 %v315, 0.0
      %v348 = vmax.f32 %v316, 0.0
      %v349 = vmax.f32 %v317, 0.0
      %v350 = vmax.f32 %v318, 0.0
      %v351 = vmax.f32 %v319, 0.0
      %v352 = vmax.f32 %v320, 0.0
      %v353 = vmax.f32 %v321, 0.0
      %v354 = vmax.f32 %v322, 0.0
      %v355 = vmax.f32 %v323, 0.0
      %v356 = vmax.f32 %v324, 0.0
      %v357 = vmax.f32 %v325, 0.0
      %v358 = vmax.f32 %v326, 0.0
      %v359 = vmax.f32 %v327, 0.0
      %v360 = vmax.f32 %v328, 0.0
      %v361 = vmax.f32 %v329, 0.0
      %v362 = vmax.f32 %v330, 0.0
      %v363 = vmax.f32 %v331, 0.0
      %v364 = vmax.f32 %v332, 0.0
      %v365 = vmax.f32 %v333, 0.0
      %v366 = vmax.f32 %v334, 0.0
      %v367 = vmax.f32 %v335, 0.0
      %v368 = vmax.f32 %v336, 0.0
      %v369 = vmax.f32 %v337, 0.0
      %v370 = vmax.f32 %v338, 0.0
      %v371 = vmax.f32 %v339, 0.0
      %vm372 = vcmask 130048
      %373 = vst.msk [vmem:[#allocation2] sm:$0xff] %vm372, 0.0
      %374 = vst.msk [vmem:[#allocation2 + $0x8] sm:$0xff] %vm372, 0.0
      %vm375 = vcmask 123904
      %376 = vst.msk [vmem:[#allocation2 + $0x10] sm:$0x3] %vm375, 0.0
      %s377 = scalar_lea.vmem [#allocation2], 408
      %378 = vst.msk [vmem:[%s377] sm:$0xff] %vm372, 0.0
      %379 = vst.msk [vmem:[%s377 + $0x8] sm:$0xff] %vm372, 0.0
      %380 = vst.msk [vmem:[%s377 + $0x10] sm:$0x3] %vm375, 0.0
      %vm381 = vcmask 122880
      %382 = vst.msk [vmem:[#allocation2] sm:$0x1] %vm381, 0.0
      %383 = vst.msk [vmem:[#allocation2 + $0x18] sm:$0x1] %vm381, 0.0
      %384 = vst.msk [vmem:[#allocation2 + $0x30] sm:$0x1] %vm381, 0.0
      %385 = vst.msk [vmem:[#allocation2 + $0x48] sm:$0x1] %vm381, 0.0
      %386 = vst.msk [vmem:[#allocation2 + $0x60] sm:$0x1] %vm381, 0.0
      %387 = vst.msk [vmem:[#allocation2 + $0x78] sm:$0x1] %vm381, 0.0
      %388 = vst.msk [vmem:[#allocation2 + $0x90] sm:$0x1] %vm381, 0.0
      %389 = vst.msk [vmem:[#allocation2 + $0xa8] sm:$0x1] %vm381, 0.0
      %390 = vst.msk [vmem:[#allocation2 + $0xc0] sm:$0x1] %vm381, 0.0
      %391 = vst.msk [vmem:[#allocation2 + $0xd8] sm:$0x1] %vm381, 0.0
      %392 = vst.msk [vmem:[#allocation2 + $0xf0] sm:$0x1] %vm381, 0.0
      %393 = vst.msk [vmem:[#allocation2 + $0x108] sm:$0x1] %vm381, 0.0
      %394 = vst.msk [vmem:[#allocation2 + $0x120] sm:$0x1] %vm381, 0.0
      %395 = vst.msk [vmem:[#allocation2 + $0x138] sm:$0x1] %vm381, 0.0
      %396 = vst.msk [vmem:[#allocation2 + $0x150] sm:$0x1] %vm381, 0.0
      %397 = vst.msk [vmem:[#allocation2 + $0x168] sm:$0x1] %vm381, 0.0
      %398 = vst.msk [vmem:[#allocation2 + $0x180] sm:$0x1] %vm381, 0.0
      %399 = vst.msk [vmem:[#allocation2 + $0x198] sm:$0x1] %vm381, 0.0
      %400 = vst.msk [vmem:[#allocation2 + $0x11] sm:$0x1] %vm381, 0.0
      %401 = vst.msk [vmem:[#allocation2 + $0x29] sm:$0x1] %vm381, 0.0
      %402 = vst.msk [vmem:[#allocation2 + $0x41] sm:$0x1] %vm381, 0.0
      %403 = vst.msk [vmem:[#allocation2 + $0x59] sm:$0x1] %vm381, 0.0
      %404 = vst.msk [vmem:[#allocation2 + $0x71] sm:$0x1] %vm381, 0.0
      %405 = vst.msk [vmem:[#allocation2 + $0x89] sm:$0x1] %vm381, 0.0
      %406 = vst.msk [vmem:[#allocation2 + $0xa1] sm:$0x1] %vm381, 0.0
      %407 = vst.msk [vmem:[#allocation2 + $0xb9] sm:$0x1] %vm381, 0.0
      %408 = vst.msk [vmem:[#allocation2 + $0xd1] sm:$0x1] %vm381, 0.0
      %409 = vst.msk [vmem:[#allocation2 + $0xe9] sm:$0x1] %vm381, 0.0
      %410 = vst.msk [vmem:[#allocation2 + $0x101] sm:$0x1] %vm381, 0.0
      %411 = vst.msk [vmem:[#allocation2 + $0x119] sm:$0x1] %vm381, 0.0
      %412 = vst.msk [vmem:[#allocation2 + $0x131] sm:$0x1] %vm381, 0.0
      %413 = vst.msk [vmem:[#allocation2 + $0x149] sm:$0x1] %vm381, 0.0
      %414 = vst.msk [vmem:[#allocation2 + $0x161] sm:$0x1] %vm381, 0.0
      %415 = vst.msk [vmem:[#allocation2 + $0x179] sm:$0x1] %vm381, 0.0
      %416 = vst.msk [vmem:[#allocation2 + $0x191] sm:$0x1] %vm381, 0.0
      %417 = vst.msk [vmem:[#allocation2 + $0x1a9] sm:$0x1] %vm381, 0.0
      %s418 = scalar_lea.vmem [#allocation2], 24
      %419 = vst.msk [vmem:[%s418 + $0x1] sm:$0xff] %vm372, %v340
      %420 = vst.msk [vmem:[%s418 + $0x9] sm:$0xff] %vm372, %v341
      %421 = vst.msk [vmem:[%s418 + $0x19] sm:$0xff] %vm372, %v342
      %422 = vst.msk [vmem:[%s418 + $0x21] sm:$0xff] %vm372, %v343
      %423 = vst.msk [vmem:[%s418 + $0x31] sm:$0xff] %vm372, %v344
      %424 = vst.msk [vmem:[%s418 + $0x39] sm:$0xff] %vm372, %v345
      %425 = vst.msk [vmem:[%s418 + $0x49] sm:$0xff] %vm372, %v346
      %426 = vst.msk [vmem:[%s418 + $0x51] sm:$0xff] %vm372, %v347
      %427 = vst.msk [vmem:[%s418 + $0x61] sm:$0xff] %vm372, %v348
      %428 = vst.msk [vmem:[%s418 + $0x69] sm:$0xff] %vm372, %v349
      %429 = vst.msk [vmem:[%s418 + $0x79] sm:$0xff] %vm372, %v350
      %430 = vst.msk [vmem:[%s418 + $0x81] sm:$0xff] %vm372, %v351
      %431 = vst.msk [vmem:[%s418 + $0x91] sm:$0xff] %vm372, %v352
      %432 = vst.msk [vmem:[%s418 + $0x99] sm:$0xff] %vm372, %v353
      %433 = vst.msk [vmem:[%s418 + $0xa9] sm:$0xff] %vm372, %v354
      %434 = vst.msk [vmem:[%s418 + $0xb1] sm:$0xff] %vm372, %v355
      %435 = vst.msk [vmem:[%s418 + $0xc1] sm:$0xff] %vm372, %v356
      %436 = vst.msk [vmem:[%s418 + $0xc9] sm:$0xff] %vm372, %v357
      %437 = vst.msk [vmem:[%s418 + $0xd9] sm:$0xff] %vm372, %v358
      %438 = vst.msk [vmem:[%s418 + $0xe1] sm:$0xff] %vm372, %v359
      %439 = vst.msk [vmem:[%s418 + $0xf1] sm:$0xff] %vm372, %v360
      %440 = vst.msk [vmem:[%s418 + $0xf9] sm:$0xff] %vm372, %v361
      %441 = vst.msk [vmem:[%s418 + $0x109] sm:$0xff] %vm372, %v362
      %442 = vst.msk [vmem:[%s418 + $0x111] sm:$0xff] %vm372, %v363
      %443 = vst.msk [vmem:[%s418 + $0x121] sm:$0xff] %vm372, %v364
      %444 = vst.msk [vmem:[%s418 + $0x129] sm:$0xff] %vm372, %v365
      %445 = vst.msk [vmem:[%s418 + $0x139] sm:$0xff] %vm372, %v366
      %446 = vst.msk [vmem:[%s418 + $0x141] sm:$0xff] %vm372, %v367
      %447 = vst.msk [vmem:[%s418 + $0x151] sm:$0xff] %vm372, %v368
      %448 = vst.msk [vmem:[%s418 + $0x159] sm:$0xff] %vm372, %v369
      %449 = vst.msk [vmem:[%s418 + $0x169] sm:$0xff] %vm372, %v370
      %450 = vst.msk [vmem:[%s418 + $0x171] sm:$0xff] %vm372, %v371
      %v451 = vld [vmem:[#allocation2] sm:$0xff]
      %v452 = vld [vmem:[#allocation2 + $0x8] sm:$0xff]
      %v453 = vld [vmem:[#allocation2 + $0x10] sm:$0x3]
      %v454 = vld [vmem:[#allocation2 + $0x18] sm:$0xff]
      %v455 = vld [vmem:[#allocation2 + $0x20] sm:$0xff]
      %v456 = vld [vmem:[#allocation2 + $0x28] sm:$0x3]
      %v457 = vld [vmem:[#allocation2 + $0x30] sm:$0xff]
      %v458 = vld [vmem:[#allocation2 + $0x38] sm:$0xff]
      %v459 = vld [vmem:[#allocation2 + $0x40] sm:$0x3]
      %v460 = vld [vmem:[#allocation2 + $0x48] sm:$0xff]
      %v461 = vld [vmem:[#allocation2 + $0x50] sm:$0xff]
      %v462 = vld [vmem:[#allocation2 + $0x58] sm:$0x3]
      %v463 = vld [vmem:[#allocation2 + $0x60] sm:$0xff]
      %v464 = vld [vmem:[#allocation2 + $0x68] sm:$0xff]
      %v465 = vld [vmem:[#allocation2 + $0x70] sm:$0x3]
      %v466 = vld [vmem:[#allocation2 + $0x78] sm:$0xff]
      %v467 = vld [vmem:[#allocation2 + $0x80] sm:$0xff]
      %v468 = vld [vmem:[#allocation2 + $0x88] sm:$0x3]
      %v469 = vld [vmem:[#allocation2 + $0x90] sm:$0xff]
      %v470 = vld [vmem:[#allocation2 + $0x98] sm:$0xff]
      %v471 = vld [vmem:[#allocation2 + $0xa0] sm:$0x3]
      %v472 = vld [vmem:[#allocation2 + $0xa8] sm:$0xff]
      %v473 = vld [vmem:[#allocation2 + $0xb0] sm:$0xff]
      %v474 = vld [vmem:[#allocation2 + $0xb8] sm:$0x3]
      %v475 = vld [vmem:[#allocation2 + $0xc0] sm:$0xff]
      %v476 = vld [vmem:[#allocation2 + $0xc8] sm:$0xff]
      %v477 = vld [vmem:[#allocation2 + $0xd0] sm:$0x3]
      %v478 = vld [vmem:[#allocation2 + $0xd8] sm:$0xff]
      %v479 = vld [vmem:[#allocation2 + $0xe0] sm:$0xff]
      %v480 = vld [vmem:[#allocation2 + $0xe8] sm:$0x3]
      %v481 = vld [vmem:[#allocation2 + $0xf0] sm:$0xff]
      %v482 = vld [vmem:[#allocation2 + $0xf8] sm:$0xff]
      %v483 = vld [vmem:[#allocation2 + $0x100] sm:$0x3]
      %v484 = vld [vmem:[#allocation2 + $0x108] sm:$0xff]
      %v485 = vld [vmem:[#allocation2 + $0x110] sm:$0xff]
      %v486 = vld [vmem:[#allocation2 + $0x118] sm:$0x3]
      %v487 = vld [vmem:[#allocation2 + $0x120] sm:$0xff]
      %v488 = vld [vmem:[#allocation2 + $0x128] sm:$0xff]
      %v489 = vld [vmem:[#allocation2 + $0x130] sm:$0x3]
      %v490 = vld [vmem:[#allocation2 + $0x138] sm:$0xff]
      %v491 = vld [vmem:[#allocation2 + $0x140] sm:$0xff]
      %v492 = vld [vmem:[#allocation2 + $0x148] sm:$0x3]
      %v493 = vld [vmem:[#allocation2 + $0x150] sm:$0xff]
      %v494 = vld [vmem:[#allocation2 + $0x158] sm:$0xff]
      %v495 = vld [vmem:[#allocation2 + $0x160] sm:$0x3]
      %v496 = vld [vmem:[#allocation2 + $0x168] sm:$0xff]
      %v497 = vld [vmem:[#allocation2 + $0x170] sm:$0xff]
      %v498 = vld [vmem:[#allocation2 + $0x178] sm:$0x3]
      %v499 = vld [vmem:[#allocation2 + $0x180] sm:$0xff]
      %v500 = vld [vmem:[#allocation2 + $0x188] sm:$0xff]
      %v501 = vld [vmem:[#allocation2 + $0x190] sm:$0x3]
      %v502 = vld [vmem:[#allocation2 + $0x198] sm:$0xff]
      %v503 = vld [vmem:[#allocation2 + $0x1a0] sm:$0xff]
      %v504 = vld [vmem:[#allocation2 + $0x1a8] sm:$0x3]
      %vm553 = vcmask 1046528
      %v554 = vrot.slane %v451, 1
      %v555 = vrot.slane %v452, 1
      %v556 = vsel %vm553, %v554, %v555
      %v557 = vrot.slane %v453, 1
      %v558 = vsel %vm553, %v555, %v557
      %v559 = vrot.slane %v454, 1
      %v560 = vrot.slane %v455, 1
      %v561 = vsel %vm553, %v559, %v560
      %v562 = vrot.slane %v456, 1
      %v563 = vsel %vm553, %v560, %v562
      %v564 = vrot.slane %v457, 1
      %v565 = vrot.slane %v458, 1
      %v566 = vsel %vm553, %v564, %v565
      %v567 = vrot.slane %v459, 1
      %v568 = vsel %vm553, %v565, %v567
      %v569 = vrot.slane %v460, 1
      %v570 = vrot.slane %v461, 1
      %v571 = vsel %vm553, %v569, %v570
      %v572 = vrot.slane %v462, 1
      %v573 = vsel %vm553, %v570, %v572
      %v574 = vrot.slane %v463, 1
      %v575 = vrot.slane %v464, 1
      %v576 = vsel %vm553, %v574, %v575
      %v577 = vrot.slane %v465, 1
      %v578 = vsel %vm553, %v575, %v577
      %v579 = vrot.slane %v466, 1
      %v580 = vrot.slane %v467, 1
      %v581 = vsel %vm553, %v579, %v580
      %v582 = vrot.slane %v468, 1
      %v583 = vsel %vm553, %v580, %v582
      %v584 = vrot.slane %v469, 1
      %v585 = vrot.slane %v470, 1
      %v586 = vsel %vm553, %v584, %v585
      %v587 = vrot.slane %v471, 1
      %v588 = vsel %vm553, %v585, %v587
      %v589 = vrot.slane %v472, 1
      %v590 = vrot.slane %v473, 1
      %v591 = vsel %vm553, %v589, %v590
      %v592 = vrot.slane %v474, 1
      %v593 = vsel %vm553, %v590, %v592
      %v594 = vrot.slane %v475, 1
      %v595 = vrot.slane %v476, 1
      %v596 = vsel %vm553, %v594, %v595
      %v597 = vrot.slane %v477, 1
      %v598 = vsel %vm553, %v595, %v597
      %v599 = vrot.slane %v478, 1
      %v600 = vrot.slane %v479, 1
      %v601 = vsel %vm553, %v599, %v600
      %v602 = vrot.slane %v480, 1
      %v603 = vsel %vm553, %v600, %v602
      %v604 = vrot.slane %v481, 1
      %v605 = vrot.slane %v482, 1
      %v606 = vsel %vm553, %v604, %v605
      %v607 = vrot.slane %v483, 1
      %v608 = vsel %vm553, %v605, %v607
      %v609 = vrot.slane %v484, 1
      %v610 = vrot.slane %v485, 1
      %v611 = vsel %vm553, %v609, %v610
      %v612 = vrot.slane %v486, 1
      %v613 = vsel %vm553, %v610, %v612
      %v614 = vrot.slane %v487, 1
      %v615 = vrot.slane %v488, 1
      %v616 = vsel %vm553, %v614, %v615
      %v617 = vrot.slane %v489, 1
      %v618 = vsel %vm553, %v615, %v617
      %v619 = vrot.slane %v490, 1
      %v620 = vrot.slane %v491, 1
      %v621 = vsel %vm553, %v619, %v620
      %v622 = vrot.slane %v492, 1
      %v623 = vsel %vm553, %v620, %v622
      %v624 = vrot.slane %v493, 1
      %v625 = vrot.slane %v494, 1
      %v626 = vsel %vm553, %v624, %v625
      %v627 = vrot.slane %v495, 1
      %v628 = vsel %vm553, %v625, %v627
      %v629 = vrot.slane %v496, 1
      %v630 = vrot.slane %v497, 1
      %v631 = vsel %vm553, %v629, %v630
      %v632 = vrot.slane %v498, 1
      %v633 = vsel %vm553, %v630, %v632
      %vm634 = vcmask 1045504
      %v635 = vrot.slane %v451, 2
      %v636 = vrot.slane %v452, 2
      %v637 = vsel %vm634, %v635, %v636
      %v638 = vrot.slane %v453, 2
      %v639 = vsel %vm634, %v636, %v638
      %v640 = vrot.slane %v454, 2
      %v641 = vrot.slane %v455, 2
      %v642 = vsel %vm634, %v640, %v641
      %v643 = vrot.slane %v456, 2
      %v644 = vsel %vm634, %v641, %v643
      %v645 = vrot.slane %v457, 2
      %v646 = vrot.slane %v458, 2
      %v647 = vsel %vm634, %v645, %v646
      %v648 = vrot.slane %v459, 2
      %v649 = vsel %vm634, %v646, %v648
      %v650 = vrot.slane %v460, 2
      %v651 = vrot.slane %v461, 2
      %v652 = vsel %vm634, %v650, %v651
      %v653 = vrot.slane %v462, 2
      %v654 = vsel %vm634, %v651, %v653
      %v655 = vrot.slane %v463, 2
      %v656 = vrot.slane %v464, 2
      %v657 = vsel %vm634, %v655, %v656
      %v658 = vrot.slane %v465, 2
      %v659 = vsel %vm634, %v656, %v658
      %v660 = vrot.slane %v466, 2
      %v661 = vrot.slane %v467, 2
      %v662 = vsel %vm634, %v660, %v661
      %v663 = vrot.slane %v468, 2
      %v664 = vsel %vm634, %v661, %v663
      %v665 = vrot.slane %v469, 2
      %v666 = vrot.slane %v470, 2
      %v667 = vsel %vm634, %v665, %v666
      %v668 = vrot.slane %v471, 2
      %v669 = vsel %vm634, %v666, %v668
      %v670 = vrot.slane %v472, 2
      %v671 = vrot.slane %v473, 2
      %v672 = vsel %vm634, %v670, %v671
      %v673 = vrot.slane %v474, 2
      %v674 = vsel %vm634, %v671, %v673
      %v675 = vrot.slane %v475, 2
      %v676 = vrot.slane %v476, 2
      %v677 = vsel %vm634, %v675, %v676
      %v678 = vrot.slane %v477, 2
      %v679 = vsel %vm634, %v676, %v678
      %v680 = vrot.slane %v478, 2
      %v681 = vrot.slane %v479, 2
      %v682 = vsel %vm634, %v680, %v681
      %v683 = vrot.slane %v480, 2
      %v684 = vsel %vm634, %v681, %v683
      %v685 = vrot.slane %v481, 2
      %v686 = vrot.slane %v482, 2
      %v687 = vsel %vm634, %v685, %v686
      %v688 = vrot.slane %v483, 2
      %v689 = vsel %vm634, %v686, %v688
      %v690 = vrot.slane %v484, 2
      %v691 = vrot.slane %v485, 2
      %v692 = vsel %vm634, %v690, %v691
      %v693 = vrot.slane %v486, 2
      %v694 = vsel %vm634, %v691, %v693
      %v695 = vrot.slane %v487, 2
      %v696 = vrot.slane %v488, 2
      %v697 = vsel %vm634, %v695, %v696
      %v698 = vrot.slane %v489, 2
      %v699 = vsel %vm634, %v696, %v698
      %v700 = vrot.slane %v490, 2
      %v701 = vrot.slane %v491, 2
      %v702 = vsel %vm634, %v700, %v701
      %v703 = vrot.slane %v492, 2
      %v704 = vsel %vm634, %v701, %v703
      %v705 = vrot.slane %v493, 2
      %v706 = vrot.slane %v494, 2
      %v707 = vsel %vm634, %v705, %v706
      %v708 = vrot.slane %v495, 2
      %v709 = vsel %vm634, %v706, %v708
      %v710 = vrot.slane %v496, 2
      %v711 = vrot.slane %v497, 2
      %v712 = vsel %vm634, %v710, %v711
      %v713 = vrot.slane %v498, 2
      %v714 = vsel %vm634, %v711, %v713
      %v718 = vrot.slane %v499, 1
      %v719 = vrot.slane %v500, 1
      %v720 = vsel %vm553, %v718, %v719
      %v721 = vrot.slane %v501, 1
      %v722 = vsel %vm553, %v719, %v721
      %v723 = vrot.slane %v499, 2
      %v724 = vrot.slane %v500, 2
      %v725 = vsel %vm634, %v723, %v724
      %v726 = vrot.slane %v501, 2
      %v727 = vsel %vm634, %v724, %v726
      %v731 = vrot.slane %v502, 1
      %v732 = vrot.slane %v503, 1
      %v733 = vsel %vm553, %v731, %v732
      %v734 = vrot.slane %v504, 1
      %v735 = vsel %vm553, %v732, %v734
      %v736 = vrot.slane %v502, 2
      %v737 = vrot.slane %v503, 2
      %v738 = vsel %vm634, %v736, %v737
      %v739 = vrot.slane %v504, 2
      %v740 = vsel %vm634, %v737, %v739
      %741 = vrot.lane.b32.xlu0 %v556, 16
      %v742 = vpop.permute.xlu0 %741
      %743 = vrot.lane.b32.xlu0 %v558, 16
      %v744 = vpop.permute.xlu0 %743
      %745 = vrot.lane.b32.xlu0 %v561, 16
      %v746 = vpop.permute.xlu0 %745
      %747 = vrot.lane.b32.xlu0 %v563, 16
      %v748 = vpop.permute.xlu0 %747
      %749 = vrot.lane.b32.xlu0 %v566, 16
      %v750 = vpop.permute.xlu0 %749
      %751 = vrot.lane.b32.xlu0 %v568, 16
      %v752 = vpop.permute.xlu0 %751
      %753 = vrot.lane.b32.xlu0 %v571, 16
      %v754 = vpop.permute.xlu0 %753
      %755 = vrot.lane.b32.xlu0 %v573, 16
      %v756 = vpop.permute.xlu0 %755
      %757 = vrot.lane.b32.xlu0 %v576, 16
      %v758 = vpop.permute.xlu0 %757
      %759 = vrot.lane.b32.xlu0 %v578, 16
      %v760 = vpop.permute.xlu0 %759
      %761 = vrot.lane.b32.xlu0 %v581, 16
      %v762 = vpop.permute.xlu0 %761
      %763 = vrot.lane.b32.xlu0 %v583, 16
      %v764 = vpop.permute.xlu0 %763
      %765 = vrot.lane.b32.xlu0 %v586, 16
      %v766 = vpop.permute.xlu0 %765
      %767 = vrot.lane.b32.xlu0 %v588, 16
      %v768 = vpop.permute.xlu0 %767
      %769 = vrot.lane.b32.xlu0 %v591, 16
      %v770 = vpop.permute.xlu0 %769
      %771 = vrot.lane.b32.xlu0 %v593, 16
      %v772 = vpop.permute.xlu0 %771
      %773 = vrot.lane.b32.xlu0 %v596, 16
      %v774 = vpop.permute.xlu0 %773
      %775 = vrot.lane.b32.xlu0 %v598, 16
      %v776 = vpop.permute.xlu0 %775
      %777 = vrot.lane.b32.xlu0 %v601, 16
      %v778 = vpop.permute.xlu0 %777
      %779 = vrot.lane.b32.xlu0 %v603, 16
      %v780 = vpop.permute.xlu0 %779
      %781 = vrot.lane.b32.xlu0 %v606, 16
      %v782 = vpop.permute.xlu0 %781
      %783 = vrot.lane.b32.xlu0 %v608, 16
      %v784 = vpop.permute.xlu0 %783
      %785 = vrot.lane.b32.xlu0 %v611, 16
      %v786 = vpop.permute.xlu0 %785
      %787 = vrot.lane.b32.xlu0 %v613, 16
      %v788 = vpop.permute.xlu0 %787
      %789 = vrot.lane.b32.xlu0 %v616, 16
      %v790 = vpop.permute.xlu0 %789
      %791 = vrot.lane.b32.xlu0 %v618, 16
      %v792 = vpop.permute.xlu0 %791
      %793 = vrot.lane.b32.xlu0 %v621, 16
      %v794 = vpop.permute.xlu0 %793
      %795 = vrot.lane.b32.xlu0 %v623, 16
      %v796 = vpop.permute.xlu0 %795
      %797 = vrot.lane.b32.xlu0 %v626, 16
      %v798 = vpop.permute.xlu0 %797
      %799 = vrot.lane.b32.xlu0 %v628, 16
      %v800 = vpop.permute.xlu0 %799
      %801 = vrot.lane.b32.xlu0 %v631, 16
      %v802 = vpop.permute.xlu0 %801
      %803 = vrot.lane.b32.xlu0 %v633, 16
      %v804 = vpop.permute.xlu0 %803
      %837 = vrot.lane.b32.xlu0 %v637, 32
      %v838 = vpop.permute.xlu0 %837
      %839 = vrot.lane.b32.xlu0 %v639, 32
      %v840 = vpop.permute.xlu0 %839
      %841 = vrot.lane.b32.xlu0 %v642, 32
      %v842 = vpop.permute.xlu0 %841
      %843 = vrot.lane.b32.xlu0 %v644, 32
      %v844 = vpop.permute.xlu0 %843
      %845 = vrot.lane.b32.xlu0 %v647, 32
      %v846 = vpop.permute.xlu0 %845
      %847 = vrot.lane.b32.xlu0 %v649, 32
      %v848 = vpop.permute.xlu0 %847
      %849 = vrot.lane.b32.xlu0 %v652, 32
      %v850 = vpop.permute.xlu0 %849
      %851 = vrot.lane.b32.xlu0 %v654, 32
      %v852 = vpop.permute.xlu0 %851
      %853 = vrot.lane.b32.xlu0 %v657, 32
      %v854 = vpop.permute.xlu0 %853
      %855 = vrot.lane.b32.xlu0 %v659, 32
      %v856 = vpop.permute.xlu0 %855
      %857 = vrot.lane.b32.xlu0 %v662, 32
      %v858 = vpop.permute.xlu0 %857
      %859 = vrot.lane.b32.xlu0 %v664, 32
      %v860 = vpop.permute.xlu0 %859
      %861 = vrot.lane.b32.xlu0 %v667, 32
      %v862 = vpop.permute.xlu0 %861
      %863 = vrot.lane.b32.xlu0 %v669, 32
      %v864 = vpop.permute.xlu0 %863
      %865 = vrot.lane.b32.xlu0 %v672, 32
      %v866 = vpop.permute.xlu0 %865
      %867 = vrot.lane.b32.xlu0 %v674, 32
      %v868 = vpop.permute.xlu0 %867
      %869 = vrot.lane.b32.xlu0 %v677, 32
      %v870 = vpop.permute.xlu0 %869
      %871 = vrot.lane.b32.xlu0 %v679, 32
      %v872 = vpop.permute.xlu0 %871
      %873 = vrot.lane.b32.xlu0 %v682, 32
      %v874 = vpop.permute.xlu0 %873
      %875 = vrot.lane.b32.xlu0 %v684, 32
      %v876 = vpop.permute.xlu0 %875
      %877 = vrot.lane.b32.xlu0 %v687, 32
      %v878 = vpop.permute.xlu0 %877
      %879 = vrot.lane.b32.xlu0 %v689, 32
      %v880 = vpop.permute.xlu0 %879
      %881 = vrot.lane.b32.xlu0 %v692, 32
      %v882 = vpop.permute.xlu0 %881
      %883 = vrot.lane.b32.xlu0 %v694, 32
      %v884 = vpop.permute.xlu0 %883
      %885 = vrot.lane.b32.xlu0 %v697, 32
      %v886 = vpop.permute.xlu0 %885
      %887 = vrot.lane.b32.xlu0 %v699, 32
      %v888 = vpop.permute.xlu0 %887
      %889 = vrot.lane.b32.xlu0 %v702, 32
      %v890 = vpop.permute.xlu0 %889
      %891 = vrot.lane.b32.xlu0 %v704, 32
      %v892 = vpop.permute.xlu0 %891
      %893 = vrot.lane.b32.xlu0 %v707, 32
      %v894 = vpop.permute.xlu0 %893
      %895 = vrot.lane.b32.xlu0 %v709, 32
      %v896 = vpop.permute.xlu0 %895
      %897 = vrot.lane.b32.xlu0 %v712, 32
      %v898 = vpop.permute.xlu0 %897
      %899 = vrot.lane.b32.xlu0 %v714, 32
      %v900 = vpop.permute.xlu0 %899
      %933 = vrot.lane.b32.xlu0 %v454, 48
      %v934 = vpop.permute.xlu0 %933
      %935 = vrot.lane.b32.xlu0 %v455, 48
      %v936 = vpop.permute.xlu0 %935
      %937 = vrot.lane.b32.xlu0 %v457, 48
      %v938 = vpop.permute.xlu0 %937
      %939 = vrot.lane.b32.xlu0 %v458, 48
      %v940 = vpop.permute.xlu0 %939
      %941 = vrot.lane.b32.xlu0 %v460, 48
      %v942 = vpop.permute.xlu0 %941
      %943 = vrot.lane.b32.xlu0 %v461, 48
      %v944 = vpop.permute.xlu0 %943
      %945 = vrot.lane.b32.xlu0 %v463, 48
      %v946 = vpop.permute.xlu0 %945
      %947 = vrot.lane.b32.xlu0 %v464, 48
      %v948 = vpop.permute.xlu0 %947
      %949 = vrot.lane.b32.xlu0 %v466, 48
      %v950 = vpop.permute.xlu0 %949
      %951 = vrot.lane.b32.xlu0 %v467, 48
      %v952 = vpop.permute.xlu0 %951
      %953 = vrot.lane.b32.xlu0 %v469, 48
      %v954 = vpop.permute.xlu0 %953
      %955 = vrot.lane.b32.xlu0 %v470, 48
      %v956 = vpop.permute.xlu0 %955
      %957 = vrot.lane.b32.xlu0 %v472, 48
      %v958 = vpop.permute.xlu0 %957
      %959 = vrot.lane.b32.xlu0 %v473, 48
      %v960 = vpop.permute.xlu0 %959
      %961 = vrot.lane.b32.xlu0 %v475, 48
      %v962 = vpop.permute.xlu0 %961
      %963 = vrot.lane.b32.xlu0 %v476, 48
      %v964 = vpop.permute.xlu0 %963
      %965 = vrot.lane.b32.xlu0 %v478, 48
      %v966 = vpop.permute.xlu0 %965
      %967 = vrot.lane.b32.xlu0 %v479, 48
      %v968 = vpop.permute.xlu0 %967
      %969 = vrot.lane.b32.xlu0 %v481, 48
      %v970 = vpop.permute.xlu0 %969
      %971 = vrot.lane.b32.xlu0 %v482, 48
      %v972 = vpop.permute.xlu0 %971
      %973 = vrot.lane.b32.xlu0 %v484, 48
      %v974 = vpop.permute.xlu0 %973
      %975 = vrot.lane.b32.xlu0 %v485, 48
      %v976 = vpop.permute.xlu0 %975
      %977 = vrot.lane.b32.xlu0 %v487, 48
      %v978 = vpop.permute.xlu0 %977
      %979 = vrot.lane.b32.xlu0 %v488, 48
      %v980 = vpop.permute.xlu0 %979
      %981 = vrot.lane.b32.xlu0 %v490, 48
      %v982 = vpop.permute.xlu0 %981
      %983 = vrot.lane.b32.xlu0 %v491, 48
      %v984 = vpop.permute.xlu0 %983
      %985 = vrot.lane.b32.xlu0 %v493, 48
      %v986 = vpop.permute.xlu0 %985
      %987 = vrot.lane.b32.xlu0 %v494, 48
      %v988 = vpop.permute.xlu0 %987
      %989 = vrot.lane.b32.xlu0 %v496, 48
      %v990 = vpop.permute.xlu0 %989
      %991 = vrot.lane.b32.xlu0 %v497, 48
      %v992 = vpop.permute.xlu0 %991
      %993 = vrot.lane.b32.xlu0 %v499, 48
      %v994 = vpop.permute.xlu0 %993
      %995 = vrot.lane.b32.xlu0 %v500, 48
      %v996 = vpop.permute.xlu0 %995
      %1029 = vrot.lane.b32.xlu0 %v561, 64
      %v1030 = vpop.permute.xlu0 %1029
      %1031 = vrot.lane.b32.xlu0 %v563, 64
      %v1032 = vpop.permute.xlu0 %1031
      %1033 = vrot.lane.b32.xlu0 %v566, 64
      %v1034 = vpop.permute.xlu0 %1033
      %1035 = vrot.lane.b32.xlu0 %v568, 64
      %v1036 = vpop.permute.xlu0 %1035
      %1037 = vrot.lane.b32.xlu0 %v571, 64
      %v1038 = vpop.permute.xlu0 %1037
      %1039 = vrot.lane.b32.xlu0 %v573, 64
      %v1040 = vpop.permute.xlu0 %1039
      %1041 = vrot.lane.b32.xlu0 %v576, 64
      %v1042 = vpop.permute.xlu0 %1041
      %1043 = vrot.lane.b32.xlu0 %v578, 64
      %v1044 = vpop.permute.xlu0 %1043
      %1045 = vrot.lane.b32.xlu0 %v581, 64
      %v1046 = vpop.permute.xlu0 %1045
      %1047 = vrot.lane.b32.xlu0 %v583, 64
      %v1048 = vpop.permute.xlu0 %1047
      %1049 = vrot.lane.b32.xlu0 %v586, 64
      %v1050 = vpop.permute.xlu0 %1049
      %1051 = vrot.lane.b32.xlu0 %v588, 64
      %v1052 = vpop.permute.xlu0 %1051
      %1053 = vrot.lane.b32.xlu0 %v591, 64
      %v1054 = vpop.permute.xlu0 %1053
      %1055 = vrot.lane.b32.xlu0 %v593, 64
      %v1056 = vpop.permute.xlu0 %1055
      %1057 = vrot.lane.b32.xlu0 %v596, 64
      %v1058 = vpop.permute.xlu0 %1057
      %1059 = vrot.lane.b32.xlu0 %v598, 64
      %v1060 = vpop.permute.xlu0 %1059
      %1061 = vrot.lane.b32.xlu0 %v601, 64
      %v1062 = vpop.permute.xlu0 %1061
      %1063 = vrot.lane.b32.xlu0 %v603, 64
      %v1064 = vpop.permute.xlu0 %1063
      %1065 = vrot.lane.b32.xlu0 %v606, 64
      %v1066 = vpop.permute.xlu0 %1065
      %1067 = vrot.lane.b32.xlu0 %v608, 64
      %v1068 = vpop.permute.xlu0 %1067
      %1069 = vrot.lane.b32.xlu0 %v611, 64
      %v1070 = vpop.permute.xlu0 %1069
      %1071 = vrot.lane.b32.xlu0 %v613, 64
      %v1072 = vpop.permute.xlu0 %1071
      %1073 = vrot.lane.b32.xlu0 %v616, 64
      %v1074 = vpop.permute.xlu0 %1073
      %1075 = vrot.lane.b32.xlu0 %v618, 64
      %v1076 = vpop.permute.xlu0 %1075
      %1077 = vrot.lane.b32.xlu0 %v621, 64
      %v1078 = vpop.permute.xlu0 %1077
      %1079 = vrot.lane.b32.xlu0 %v623, 64
      %v1080 = vpop.permute.xlu0 %1079
      %1081 = vrot.lane.b32.xlu0 %v626, 64
      %v1082 = vpop.permute.xlu0 %1081
      %1083 = vrot.lane.b32.xlu0 %v628, 64
      %v1084 = vpop.permute.xlu0 %1083
      %1085 = vrot.lane.b32.xlu0 %v631, 64
      %v1086 = vpop.permute.xlu0 %1085
      %1087 = vrot.lane.b32.xlu0 %v633, 64
      %v1088 = vpop.permute.xlu0 %1087
      %1089 = vrot.lane.b32.xlu0 %v720, 64
      %v1090 = vpop.permute.xlu0 %1089
      %1091 = vrot.lane.b32.xlu0 %v722, 64
      %v1092 = vpop.permute.xlu0 %1091
      %1125 = vrot.lane.b32.xlu0 %v642, 80
      %v1126 = vpop.permute.xlu0 %1125
      %1127 = vrot.lane.b32.xlu0 %v644, 80
      %v1128 = vpop.permute.xlu0 %1127
      %1129 = vrot.lane.b32.xlu0 %v647, 80
      %v1130 = vpop.permute.xlu0 %1129
      %1131 = vrot.lane.b32.xlu0 %v649, 80
      %v1132 = vpop.permute.xlu0 %1131
      %1133 = vrot.lane.b32.xlu0 %v652, 80
      %v1134 = vpop.permute.xlu0 %1133
      %1135 = vrot.lane.b32.xlu0 %v654, 80
      %v1136 = vpop.permute.xlu0 %1135
      %1137 = vrot.lane.b32.xlu0 %v657, 80
      %v1138 = vpop.permute.xlu0 %1137
      %1139 = vrot.lane.b32.xlu0 %v659, 80
      %v1140 = vpop.permute.xlu0 %1139
      %1141 = vrot.lane.b32.xlu0 %v662, 80
      %v1142 = vpop.permute.xlu0 %1141
      %1143 = vrot.lane.b32.xlu0 %v664, 80
      %v1144 = vpop.permute.xlu0 %1143
      %1145 = vrot.lane.b32.xlu0 %v667, 80
      %v1146 = vpop.permute.xlu0 %1145
      %1147 = vrot.lane.b32.xlu0 %v669, 80
      %v1148 = vpop.permute.xlu0 %1147
      %1149 = vrot.lane.b32.xlu0 %v672, 80
      %v1150 = vpop.permute.xlu0 %1149
      %1151 = vrot.lane.b32.xlu0 %v674, 80
      %v1152 = vpop.permute.xlu0 %1151
      %1153 = vrot.lane.b32.xlu0 %v677, 80
      %v1154 = vpop.permute.xlu0 %1153
      %1155 = vrot.lane.b32.xlu0 %v679, 80
      %v1156 = vpop.permute.xlu0 %1155
      %1157 = vrot.lane.b32.xlu0 %v682, 80
      %v1158 = vpop.permute.xlu0 %1157
      %1159 = vrot.lane.b32.xlu0 %v684, 80
      %v1160 = vpop.permute.xlu0 %1159
      %1161 = vrot.lane.b32.xlu0 %v687, 80
      %v1162 = vpop.permute.xlu0 %1161
      %1163 = vrot.lane.b32.xlu0 %v689, 80
      %v1164 = vpop.permute.xlu0 %1163
      %1165 = vrot.lane.b32.xlu0 %v692, 80
      %v1166 = vpop.permute.xlu0 %1165
      %1167 = vrot.lane.b32.xlu0 %v694, 80
      %v1168 = vpop.permute.xlu0 %1167
      %1169 = vrot.lane.b32.xlu0 %v697, 80
      %v1170 = vpop.permute.xlu0 %1169
      %1171 = vrot.lane.b32.xlu0 %v699, 80
      %v1172 = vpop.permute.xlu0 %1171
      %1173 = vrot.lane.b32.xlu0 %v702, 80
      %v1174 = vpop.permute.xlu0 %1173
      %1175 = vrot.lane.b32.xlu0 %v704, 80
      %v1176 = vpop.permute.xlu0 %1175
      %1177 = vrot.lane.b32.xlu0 %v707, 80
      %v1178 = vpop.permute.xlu0 %1177
      %1179 = vrot.lane.b32.xlu0 %v709, 80
      %v1180 = vpop.permute.xlu0 %1179
      %1181 = vrot.lane.b32.xlu0 %v712, 80
      %v1182 = vpop.permute.xlu0 %1181
      %1183 = vrot.lane.b32.xlu0 %v714, 80
      %v1184 = vpop.permute.xlu0 %1183
      %1185 = vrot.lane.b32.xlu0 %v725, 80
      %v1186 = vpop.permute.xlu0 %1185
      %1187 = vrot.lane.b32.xlu0 %v727, 80
      %v1188 = vpop.permute.xlu0 %1187
      %1221 = vrot.lane.b32.xlu0 %v457, 96
      %v1222 = vpop.permute.xlu0 %1221
      %1223 = vrot.lane.b32.xlu0 %v458, 96
      %v1224 = vpop.permute.xlu0 %1223
      %1225 = vrot.lane.b32.xlu0 %v460, 96
      %v1226 = vpop.permute.xlu0 %1225
      %1227 = vrot.lane.b32.xlu0 %v461, 96
      %v1228 = vpop.permute.xlu0 %1227
      %1229 = vrot.lane.b32.xlu0 %v463, 96
      %v1230 = vpop.permute.xlu0 %1229
      %1231 = vrot.lane.b32.xlu0 %v464, 96
      %v1232 = vpop.permute.xlu0 %1231
      %1233 = vrot.lane.b32.xlu0 %v466, 96
      %v1234 = vpop.permute.xlu0 %1233
      %1235 = vrot.lane.b32.xlu0 %v467, 96
      %v1236 = vpop.permute.xlu0 %1235
      %1237 = vrot.lane.b32.xlu0 %v469, 96
      %v1238 = vpop.permute.xlu0 %1237
      %1239 = vrot.lane.b32.xlu0 %v470, 96
      %v1240 = vpop.permute.xlu0 %1239
      %1241 = vrot.lane.b32.xlu0 %v472, 96
      %v1242 = vpop.permute.xlu0 %1241
      %1243 = vrot.lane.b32.xlu0 %v473, 96
      %v1244 = vpop.permute.xlu0 %1243
      %1245 = vrot.lane.b32.xlu0 %v475, 96
      %v1246 = vpop.permute.xlu0 %1245
      %1247 = vrot.lane.b32.xlu0 %v476, 96
      %v1248 = vpop.permute.xlu0 %1247
      %1249 = vrot.lane.b32.xlu0 %v478, 96
      %v1250 = vpop.permute.xlu0 %1249
      %1251 = vrot.lane.b32.xlu0 %v479, 96
      %v1252 = vpop.permute.xlu0 %1251
      %1253 = vrot.lane.b32.xlu0 %v481, 96
      %v1254 = vpop.permute.xlu0 %1253
      %1255 = vrot.lane.b32.xlu0 %v482, 96
      %v1256 = vpop.permute.xlu0 %1255
      %1257 = vrot.lane.b32.xlu0 %v484, 96
      %v1258 = vpop.permute.xlu0 %1257
      %1259 = vrot.lane.b32.xlu0 %v485, 96
      %v1260 = vpop.permute.xlu0 %1259
      %1261 = vrot.lane.b32.xlu0 %v487, 96
      %v1262 = vpop.permute.xlu0 %1261
      %1263 = vrot.lane.b32.xlu0 %v488, 96
      %v1264 = vpop.permute.xlu0 %1263
      %1265 = vrot.lane.b32.xlu0 %v490, 96
      %v1266 = vpop.permute.xlu0 %1265
      %1267 = vrot.lane.b32.xlu0 %v491, 96
      %v1268 = vpop.permute.xlu0 %1267
      %1269 = vrot.lane.b32.xlu0 %v493, 96
      %v1270 = vpop.permute.xlu0 %1269
      %1271 = vrot.lane.b32.xlu0 %v494, 96
      %v1272 = vpop.permute.xlu0 %1271
      %1273 = vrot.lane.b32.xlu0 %v496, 96
      %v1274 = vpop.permute.xlu0 %1273
      %1275 = vrot.lane.b32.xlu0 %v497, 96
      %v1276 = vpop.permute.xlu0 %1275
      %1277 = vrot.lane.b32.xlu0 %v499, 96
      %v1278 = vpop.permute.xlu0 %1277
      %1279 = vrot.lane.b32.xlu0 %v500, 96
      %v1280 = vpop.permute.xlu0 %1279
      %1281 = vrot.lane.b32.xlu0 %v502, 96
      %v1282 = vpop.permute.xlu0 %1281
      %1283 = vrot.lane.b32.xlu0 %v503, 96
      %v1284 = vpop.permute.xlu0 %1283
      %1317 = vrot.lane.b32.xlu0 %v566, 112
      %v1318 = vpop.permute.xlu0 %1317
      %1319 = vrot.lane.b32.xlu0 %v568, 112
      %v1320 = vpop.permute.xlu0 %1319
      %1321 = vrot.lane.b32.xlu0 %v571, 112
      %v1322 = vpop.permute.xlu0 %1321
      %1323 = vrot.lane.b32.xlu0 %v573, 112
      %v1324 = vpop.permute.xlu0 %1323
      %1325 = vrot.lane.b32.xlu0 %v576, 112
      %v1326 = vpop.permute.xlu0 %1325
      %1327 = vrot.lane.b32.xlu0 %v578, 112
      %v1328 = vpop.permute.xlu0 %1327
      %1329 = vrot.lane.b32.xlu0 %v581, 112
      %v1330 = vpop.permute.xlu0 %1329
      %1331 = vrot.lane.b32.xlu0 %v583, 112
      %v1332 = vpop.permute.xlu0 %1331
      %1333 = vrot.lane.b32.xlu0 %v586, 112
      %v1334 = vpop.permute.xlu0 %1333
      %1335 = vrot.lane.b32.xlu0 %v588, 112
      %v1336 = vpop.permute.xlu0 %1335
      %1337 = vrot.lane.b32.xlu0 %v591, 112
      %v1338 = vpop.permute.xlu0 %1337
      %1339 = vrot.lane.b32.xlu0 %v593, 112
      %v1340 = vpop.permute.xlu0 %1339
      %1341 = vrot.lane.b32.xlu0 %v596, 112
      %v1342 = vpop.permute.xlu0 %1341
      %1343 = vrot.lane.b32.xlu0 %v598, 112
      %v1344 = vpop.permute.xlu0 %1343
      %1345 = vrot.lane.b32.xlu0 %v601, 112
      %v1346 = vpop.permute.xlu0 %1345
      %1347 = vrot.lane.b32.xlu0 %v603, 112
      %v1348 = vpop.permute.xlu0 %1347
      %1349 = vrot.lane.b32.xlu0 %v606, 112
      %v1350 = vpop.permute.xlu0 %1349
      %1351 = vrot.lane.b32.xlu0 %v608, 112
      %v1352 = vpop.permute.xlu0 %1351
      %1353 = vrot.lane.b32.xlu0 %v611, 112
      %v1354 = vpop.permute.xlu0 %1353
      %1355 = vrot.lane.b32.xlu0 %v613, 112
      %v1356 = vpop.permute.xlu0 %1355
      %1357 = vrot.lane.b32.xlu0 %v616, 112
      %v1358 = vpop.permute.xlu0 %1357
      %1359 = vrot.lane.b32.xlu0 %v618, 112
      %v1360 = vpop.permute.xlu0 %1359
      %1361 = vrot.lane.b32.xlu0 %v621, 112
      %v1362 = vpop.permute.xlu0 %1361
      %1363 = vrot.lane.b32.xlu0 %v623, 112
      %v1364 = vpop.permute.xlu0 %1363
      %1365 = vrot.lane.b32.xlu0 %v626, 112
      %v1366 = vpop.permute.xlu0 %1365
      %1367 = vrot.lane.b32.xlu0 %v628, 112
      %v1368 = vpop.permute.xlu0 %1367
      %1369 = vrot.lane.b32.xlu0 %v631, 112
      %v1370 = vpop.permute.xlu0 %1369
      %1371 = vrot.lane.b32.xlu0 %v633, 112
      %v1372 = vpop.permute.xlu0 %1371
      %1373 = vrot.lane.b32.xlu0 %v720, 112
      %v1374 = vpop.permute.xlu0 %1373
      %1375 = vrot.lane.b32.xlu0 %v722, 112
      %v1376 = vpop.permute.xlu0 %1375
      %1377 = vrot.lane.b32.xlu0 %v733, 112
      %v1378 = vpop.permute.xlu0 %1377
      %1379 = vrot.lane.b32.xlu0 %v735, 112
      %v1380 = vpop.permute.xlu0 %1379
      %v1413 = vsel %vm372, %v451, %v742
      %v1414 = vsel %vm372, %v452, %v744
      %v1415 = vsel %vm372, %v454, %v746
      %v1416 = vsel %vm372, %v455, %v748
      %v1417 = vsel %vm372, %v457, %v750
      %v1418 = vsel %vm372, %v458, %v752
      %v1419 = vsel %vm372, %v460, %v754
      %v1420 = vsel %vm372, %v461, %v756
      %v1421 = vsel %vm372, %v463, %v758
      %v1422 = vsel %vm372, %v464, %v760
      %v1423 = vsel %vm372, %v466, %v762
      %v1424 = vsel %vm372, %v467, %v764
      %v1425 = vsel %vm372, %v469, %v766
      %v1426 = vsel %vm372, %v470, %v768
      %v1427 = vsel %vm372, %v472, %v770
      %v1428 = vsel %vm372, %v473, %v772
      %v1429 = vsel %vm372, %v475, %v774
      %v1430 = vsel %vm372, %v476, %v776
      %v1431 = vsel %vm372, %v478, %v778
      %v1432 = vsel %vm372, %v479, %v780
      %v1433 = vsel %vm372, %v481, %v782
      %v1434 = vsel %vm372, %v482, %v784
      %v1435 = vsel %vm372, %v484, %v786
      %v1436 = vsel %vm372, %v485, %v788
      %v1437 = vsel %vm372, %v487, %v790
      %v1438 = vsel %vm372, %v488, %v792
      %v1439 = vsel %vm372, %v490, %v794
      %v1440 = vsel %vm372, %v491, %v796
      %v1441 = vsel %vm372, %v493, %v798
      %v1442 = vsel %vm372, %v494, %v800
      %v1443 = vsel %vm372, %v496, %v802
      %v1444 = vsel %vm372, %v497, %v804
      %vm1445 = vcmask 261120
      %v1446 = vsel %vm1445, %v1413, %v838
      %v1447 = vsel %vm1445, %v1414, %v840
      %v1448 = vsel %vm1445, %v1415, %v842
      %v1449 = vsel %vm1445, %v1416, %v844
      %v1450 = vsel %vm1445, %v1417, %v846
      %v1451 = vsel %vm1445, %v1418, %v848
      %v1452 = vsel %vm1445, %v1419, %v850
      %v1453 = vsel %vm1445, %v1420, %v852
      %v1454 = vsel %vm1445, %v1421, %v854
      %v1455 = vsel %vm1445, %v1422, %v856
      %v1456 = vsel %vm1445, %v1423, %v858
      %v1457 = vsel %vm1445, %v1424, %v860
      %v1458 = vsel %vm1445, %v1425, %v862
      %v1459 = vsel %vm1445, %v1426, %v864
      %v1460 = vsel %vm1445, %v1427, %v866
      %v1461 = vsel %vm1445, %v1428, %v868
      %v1462 = vsel %vm1445, %v1429, %v870
      %v1463 = vsel %vm1445, %v1430, %v872
      %v1464 = vsel %vm1445, %v1431, %v874
      %v1465 = vsel %vm1445, %v1432, %v876
      %v1466 = vsel %vm1445, %v1433, %v878
      %v1467 = vsel %vm1445, %v1434, %v880
      %v1468 = vsel %vm1445, %v1435, %v882
      %v1469 = vsel %vm1445, %v1436, %v884
      %v1470 = vsel %vm1445, %v1437, %v886
      %v1471 = vsel %vm1445, %v1438, %v888
      %v1472 = vsel %vm1445, %v1439, %v890
      %v1473 = vsel %vm1445, %v1440, %v892
      %v1474 = vsel %vm1445, %v1441, %v894
      %v1475 = vsel %vm1445, %v1442, %v896
      %v1476 = vsel %vm1445, %v1443, %v898
      %v1477 = vsel %vm1445, %v1444, %v900
      %vm1478 = vcmask 392192
      %v1479 = vsel %vm1478, %v1446, %v934
      %v1480 = vsel %vm1478, %v1447, %v936
      %v1481 = vsel %vm1478, %v1448, %v938
      %v1482 = vsel %vm1478, %v1449, %v940
      %v1483 = vsel %vm1478, %v1450, %v942
      %v1484 = vsel %vm1478, %v1451, %v944
      %v1485 = vsel %vm1478, %v1452, %v946
      %v1486 = vsel %vm1478, %v1453, %v948
      %v1487 = vsel %vm1478, %v1454, %v950
      %v1488 = vsel %vm1478, %v1455, %v952
      %v1489 = vsel %vm1478, %v1456, %v954
      %v1490 = vsel %vm1478, %v1457, %v956
      %v1491 = vsel %vm1478, %v1458, %v958
      %v1492 = vsel %vm1478, %v1459, %v960
      %v1493 = vsel %vm1478, %v1460, %v962
      %v1494 = vsel %vm1478, %v1461, %v964
      %v1495 = vsel %vm1478, %v1462, %v966
      %v1496 = vsel %vm1478, %v1463, %v968
      %v1497 = vsel %vm1478, %v1464, %v970
      %v1498 = vsel %vm1478, %v1465, %v972
      %v1499 = vsel %vm1478, %v1466, %v974
      %v1500 = vsel %vm1478, %v1467, %v976
      %v1501 = vsel %vm1478, %v1468, %v978
      %v1502 = vsel %vm1478, %v1469, %v980
      %v1503 = vsel %vm1478, %v1470, %v982
      %v1504 = vsel %vm1478, %v1471, %v984
      %v1505 = vsel %vm1478, %v1472, %v986
      %v1506 = vsel %vm1478, %v1473, %v988
      %v1507 = vsel %vm1478, %v1474, %v990
      %v1508 = vsel %vm1478, %v1475, %v992
      %v1509 = vsel %vm1478, %v1476, %v994
      %v1510 = vsel %vm1478, %v1477, %v996
      %vm1511 = vcmask 523264
      %v1512 = vsel %vm1511, %v1479, %v1030
      %v1513 = vsel %vm1511, %v1480, %v1032
      %v1514 = vsel %vm1511, %v1481, %v1034
      %v1515 = vsel %vm1511, %v1482, %v1036
      %v1516 = vsel %vm1511, %v1483, %v1038
      %v1517 = vsel %vm1511, %v1484, %v1040
      %v1518 = vsel %vm1511, %v1485, %v1042
      %v1519 = vsel %vm1511, %v1486, %v1044
      %v1520 = vsel %vm1511, %v1487, %v1046
      %v1521 = vsel %vm1511, %v1488, %v1048
      %v1522 = vsel %vm1511, %v1489, %v1050
      %v1523 = vsel %vm1511, %v1490, %v1052
      %v1524 = vsel %vm1511, %v1491, %v1054
      %v1525 = vsel %vm1511, %v1492, %v1056
      %v1526 = vsel %vm1511, %v1493, %v1058
      %v1527 = vsel %vm1511, %v1494, %v1060
      %v1528 = vsel %vm1511, %v1495, %v1062
      %v1529 = vsel %vm1511, %v1496, %v1064
      %v1530 = vsel %vm1511, %v1497, %v1066
      %v1531 = vsel %vm1511, %v1498, %v1068
      %v1532 = vsel %vm1511, %v1499, %v1070
      %v1533 = vsel %vm1511, %v1500, %v1072
      %v1534 = vsel %vm1511, %v1501, %v1074
      %v1535 = vsel %vm1511, %v1502, %v1076
      %v1536 = vsel %vm1511, %v1503, %v1078
      %v1537 = vsel %vm1511, %v1504, %v1080
      %v1538 = vsel %vm1511, %v1505, %v1082
      %v1539 = vsel %vm1511, %v1506, %v1084
      %v1540 = vsel %vm1511, %v1507, %v1086
      %v1541 = vsel %vm1511, %v1508, %v1088
      %v1542 = vsel %vm1511, %v1509, %v1090
      %v1543 = vsel %vm1511, %v1510, %v1092
      %vm1544 = vcmask 654336
      %v1545 = vsel %vm1544, %v1512, %v1126
      %v1546 = vsel %vm1544, %v1513, %v1128
      %v1547 = vsel %vm1544, %v1514, %v1130
      %v1548 = vsel %vm1544, %v1515, %v1132
      %v1549 = vsel %vm1544, %v1516, %v1134
      %v1550 = vsel %vm1544, %v1517, %v1136
      %v1551 = vsel %vm1544, %v1518, %v1138
      %v1552 = vsel %vm1544, %v1519, %v1140
      %v1553 = vsel %vm1544, %v1520, %v1142
      %v1554 = vsel %vm1544, %v1521, %v1144
      %v1555 = vsel %vm1544, %v1522, %v1146
      %v1556 = vsel %vm1544, %v1523, %v1148
      %v1557 = vsel %vm1544, %v1524, %v1150
      %v1558 = vsel %vm1544, %v1525, %v1152
      %v1559 = vsel %vm1544, %v1526, %v1154
      %v1560 = vsel %vm1544, %v1527, %v1156
      %v1561 = vsel %vm1544, %v1528, %v1158
      %v1562 = vsel %vm1544, %v1529, %v1160
      %v1563 = vsel %vm1544, %v1530, %v1162
      %v1564 = vsel %vm1544, %v1531, %v1164
      %v1565 = vsel %vm1544, %v1532, %v1166
      %v1566 = vsel %vm1544, %v1533, %v1168
      %v1567 = vsel %vm1544, %v1534, %v1170
      %v1568 = vsel %vm1544, %v1535, %v1172
      %v1569 = vsel %vm1544, %v1536, %v1174
      %v1570 = vsel %vm1544, %v1537, %v1176
      %v1571 = vsel %vm1544, %v1538, %v1178
      %v1572 = vsel %vm1544, %v1539, %v1180
      %v1573 = vsel %vm1544, %v1540, %v1182
      %v1574 = vsel %vm1544, %v1541, %v1184
      %v1575 = vsel %vm1544, %v1542, %v1186
      %v1576 = vsel %vm1544, %v1543, %v1188
      %vm1577 = vcmask 785408
      %v1578 = vsel %vm1577, %v1545, %v1222
      %v1579 = vsel %vm1577, %v1546, %v1224
      %v1580 = vsel %vm1577, %v1547, %v1226
      %v1581 = vsel %vm1577, %v1548, %v1228
      %v1582 = vsel %vm1577, %v1549, %v1230
      %v1583 = vsel %vm1577, %v1550, %v1232
      %v1584 = vsel %vm1577, %v1551, %v1234
      %v1585 = vsel %vm1577, %v1552, %v1236
      %v1586 = vsel %vm1577, %v1553, %v1238
      %v1587 = vsel %vm1577, %v1554, %v1240
      %v1588 = vsel %vm1577, %v1555, %v1242
      %v1589 = vsel %vm1577, %v1556, %v1244
      %v1590 = vsel %vm1577, %v1557, %v1246
      %v1591 = vsel %vm1577, %v1558, %v1248
      %v1592 = vsel %vm1577, %v1559, %v1250
      %v1593 = vsel %vm1577, %v1560, %v1252
      %v1594 = vsel %vm1577, %v1561, %v1254
      %v1595 = vsel %vm1577, %v1562, %v1256
      %v1596 = vsel %vm1577, %v1563, %v1258
      %v1597 = vsel %vm1577, %v1564, %v1260
      %v1598 = vsel %vm1577, %v1565, %v1262
      %v1599 = vsel %vm1577, %v1566, %v1264
      %v1600 = vsel %vm1577, %v1567, %v1266
      %v1601 = vsel %vm1577, %v1568, %v1268
      %v1602 = vsel %vm1577, %v1569, %v1270
      %v1603 = vsel %vm1577, %v1570, %v1272
      %v1604 = vsel %vm1577, %v1571, %v1274
      %v1605 = vsel %vm1577, %v1572, %v1276
      %v1606 = vsel %vm1577, %v1573, %v1278
      %v1607 = vsel %vm1577, %v1574, %v1280
      %v1608 = vsel %vm1577, %v1575, %v1282
      %v1609 = vsel %vm1577, %v1576, %v1284
      %vm1610 = vcmask 916480
      %v1611 = vsel %vm1610, %v1578, %v1318
      %v1612 = vsel %vm1610, %v1579, %v1320
      %v1613 = vsel %vm1610, %v1580, %v1322
      %v1614 = vsel %vm1610, %v1581, %v1324
      %v1615 = vsel %vm1610, %v1582, %v1326
      %v1616 = vsel %vm1610, %v1583, %v1328
      %v1617 = vsel %vm1610, %v1584, %v1330
      %v1618 = vsel %vm1610, %v1585, %v1332
      %v1619 = vsel %vm1610, %v1586, %v1334
      %v1620 = vsel %vm1610, %v1587, %v1336
      %v1621 = vsel %vm1610, %v1588, %v1338
      %v1622 = vsel %vm1610, %v1589, %v1340
      %v1623 = vsel %vm1610, %v1590, %v1342
      %v1624 = vsel %vm1610, %v1591, %v1344
      %v1625 = vsel %vm1610, %v1592, %v1346
      %v1626 = vsel %vm1610, %v1593, %v1348
      %v1627 = vsel %vm1610, %v1594, %v1350
      %v1628 = vsel %vm1610, %v1595, %v1352
      %v1629 = vsel %vm1610, %v1596, %v1354
      %v1630 = vsel %vm1610, %v1597, %v1356
      %v1631 = vsel %vm1610, %v1598, %v1358
      %v1632 = vsel %vm1610, %v1599, %v1360
      %v1633 = vsel %vm1610, %v1600, %v1362
      %v1634 = vsel %vm1610, %v1601, %v1364
      %v1635 = vsel %vm1610, %v1602, %v1366
      %v1636 = vsel %vm1610, %v1603, %v1368
      %v1637 = vsel %vm1610, %v1604, %v1370
      %v1638 = vsel %vm1610, %v1605, %v1372
      %v1639 = vsel %vm1610, %v1606, %v1374
      %v1640 = vsel %vm1610, %v1607, %v1376
      %v1641 = vsel %vm1610, %v1608, %v1378
      %v1642 = vsel %vm1610, %v1609, %v1380
      %v1643 = vld [vmem:[%s3] sm:$0xff]
      %v1644 = vld [vmem:[%s3 + $0x8] sm:$0xff]
      %v1645 = vld [vmem:[%s3 + $0x10] sm:$0xff]
      %v1646 = vld [vmem:[%s3 + $0x18] sm:$0xff]
      %v1647 = vld [vmem:[%s3 + $0x20] sm:$0xff]
      %v1648 = vld [vmem:[%s3 + $0x28] sm:$0xff]
      %v1649 = vld [vmem:[%s3 + $0x30] sm:$0xff]
      %v1650 = vld [vmem:[%s3 + $0x38] sm:$0xff]
      %v1651 = vld [vmem:[%s3 + $0x40] sm:$0xff]
      %v1652 = vld [vmem:[%s3 + $0x48] sm:$0xff]
      %v1653 = vld [vmem:[%s3 + $0x50] sm:$0xff]
      %v1654 = vld [vmem:[%s3 + $0x58] sm:$0xff]
      %v1655 = vld [vmem:[%s3 + $0x60] sm:$0xff]
      %v1656 = vld [vmem:[%s3 + $0x68] sm:$0xff]
      %v1657 = vld [vmem:[%s3 + $0x70] sm:$0xff]
      %v1658 = vld [vmem:[%s3 + $0x78] sm:$0xff]
      %v1659 = vld [vmem:[%s3 + $0x80] sm:$0xff]
      %v1660 = vld [vmem:[%s3 + $0x88] sm:$0xff]
      %v1661 = vsel %vm372, %v647, 0
      %v1663 = vsel %vm372, %v649, 0
      %v1665 = vsel %vm372, %v652, 0
      %v1667 = vsel %vm372, %v654, 0
      %v1669 = vsel %vm372, %v657, 0
      %v1671 = vsel %vm372, %v659, 0
      %v1673 = vsel %vm372, %v662, 0
      %v1675 = vsel %vm372, %v664, 0
      %v1677 = vsel %vm372, %v667, 0
      %v1679 = vsel %vm372, %v669, 0
      %v1681 = vsel %vm372, %v672, 0
      %v1683 = vsel %vm372, %v674, 0
      %v1685 = vsel %vm372, %v677, 0
      %v1687 = vsel %vm372, %v679, 0
      %v1689 = vsel %vm372, %v682, 0
      %v1691 = vsel %vm372, %v684, 0
      %v1693 = vsel %vm372, %v687, 0
      %v1695 = vsel %vm372, %v689, 0
      %v1697 = vsel %vm372, %v692, 0
      %v1699 = vsel %vm372, %v694, 0
      %v1701 = vsel %vm372, %v697, 0
      %v1703 = vsel %vm372, %v699, 0
      %v1705 = vsel %vm372, %v702, 0
      %v1707 = vsel %vm372, %v704, 0
      %v1709 = vsel %vm372, %v707, 0
      %v1711 = vsel %vm372, %v709, 0
      %v1713 = vsel %vm372, %v712, 0
      %v1715 = vsel %vm372, %v714, 0
      %v1717 = vsel %vm372, %v725, 0
      %v1719 = vsel %vm372, %v727, 0
      %v1721 = vsel %vm372, %v738, 0
      %v1723 = vsel %vm372, %v740, 0
      %1725 = vmatpush.msra.mxu0 %v1658
      %1726 = vmatpush.msra.mxu0 %v1657
      %1727 = vmatpush.msra.mxu0 %v1656
      %1728 = vmatpush.msra.mxu0 %v1655
      %1729 = vmatpush.msra.mxu0 %v1654
      %1730 = vmatpush.msra.mxu0 %v1653
      %1731 = vmatpush.msra.mxu0 %v1652
      %1732 = vmatpush.msra.mxu0 %v1651
      %1733 = vmatpush.msra.mxu0 %v1650
      %1734 = vmatpush.msra.mxu0 %v1649
      %1735 = vmatpush.msra.mxu0 %v1648
      %1736 = vmatpush.msra.mxu0 %v1647
      %1737 = vmatpush.msra.mxu0 %v1646
      %1738 = vmatpush.msra.mxu0 %v1645
      %1739 = vmatpush.msra.mxu0 %v1644
      %1740 = vmatpush.msra.mxu0 %v1643
      %1741 = vmatmul.f32.gmra.mxu0 %v1611
      %v1742 = vpop.f32.mrf.mxu0
      %v1743 = vadd.f32 0.0, %v1742
      %1744 = vmatmul.f32.gmra.mxu0 %v1612
      %v1745 = vpop.f32.mrf.mxu0
      %v1746 = vadd.f32 0.0, %v1745
      %1747 = vmatmul.f32.gmra.mxu0 %v1613
      %v1748 = vpop.f32.mrf.mxu0
      %v1749 = vadd.f32 0.0, %v1748
      %1750 = vmatmul.f32.gmra.mxu0 %v1614
      %v1751 = vpop.f32.mrf.mxu0
      %v1752 = vadd.f32 0.0, %v1751
      %1753 = vmatmul.f32.gmra.mxu0 %v1615
      %v1754 = vpop.f32.mrf.mxu0
      %v1755 = vadd.f32 0.0, %v1754
      %1756 = vmatmul.f32.gmra.mxu0 %v1616
      %v1757 = vpop.f32.mrf.mxu0
      %v1758 = vadd.f32 0.0, %v1757
      %1759 = vmatmul.f32.gmra.mxu0 %v1617
      %v1760 = vpop.f32.mrf.mxu0
      %v1761 = vadd.f32 0.0, %v1760
      %1762 = vmatmul.f32.gmra.mxu0 %v1618
      %v1763 = vpop.f32.mrf.mxu0
      %v1764 = vadd.f32 0.0, %v1763
      %1765 = vmatmul.f32.gmra.mxu0 %v1619
      %v1766 = vpop.f32.mrf.mxu0
      %v1767 = vadd.f32 0.0, %v1766
      %1768 = vmatmul.f32.gmra.mxu0 %v1620
      %v1769 = vpop.f32.mrf.mxu0
      %v1770 = vadd.f32 0.0, %v1769
      %1771 = vmatmul.f32.gmra.mxu0 %v1621
      %v1772 = vpop.f32.mrf.mxu0
      %v1773 = vadd.f32 0.0, %v1772
      %1774 = vmatmul.f32.gmra.mxu0 %v1622
      %v1775 = vpop.f32.mrf.mxu0
      %v1776 = vadd.f32 0.0, %v1775
      %1777 = vmatmul.f32.gmra.mxu0 %v1623
      %v1778 = vpop.f32.mrf.mxu0
      %v1779 = vadd.f32 0.0, %v1778
      %1780 = vmatmul.f32.gmra.mxu0 %v1624
      %v1781 = vpop.f32.mrf.mxu0
      %v1782 = vadd.f32 0.0, %v1781
      %1783 = vmatmul.f32.gmra.mxu0 %v1625
      %v1784 = vpop.f32.mrf.mxu0
      %v1785 = vadd.f32 0.0, %v1784
      %1786 = vmatmul.f32.gmra.mxu0 %v1626
      %v1787 = vpop.f32.mrf.mxu0
      %v1788 = vadd.f32 0.0, %v1787
      %1789 = vmatmul.f32.gmra.mxu0 %v1627
      %v1790 = vpop.f32.mrf.mxu0
      %v1791 = vadd.f32 0.0, %v1790
      %1792 = vmatmul.f32.gmra.mxu0 %v1628
      %v1793 = vpop.f32.mrf.mxu0
      %v1794 = vadd.f32 0.0, %v1793
      %1795 = vmatmul.f32.gmra.mxu0 %v1629
      %v1796 = vpop.f32.mrf.mxu0
      %v1797 = vadd.f32 0.0, %v1796
      %1798 = vmatmul.f32.gmra.mxu0 %v1630
      %v1799 = vpop.f32.mrf.mxu0
      %v1800 = vadd.f32 0.0, %v1799
      %1801 = vmatmul.f32.gmra.mxu0 %v1631
      %v1802 = vpop.f32.mrf.mxu0
      %v1803 = vadd.f32 0.0, %v1802
      %1804 = vmatmul.f32.gmra.mxu0 %v1632
      %v1805 = vpop.f32.mrf.mxu0
      %v1806 = vadd.f32 0.0, %v1805
      %1807 = vmatmul.f32.gmra.mxu0 %v1633
      %v1808 = vpop.f32.mrf.mxu0
      %v1809 = vadd.f32 0.0, %v1808
      %1810 = vmatmul.f32.gmra.mxu0 %v1634
      %v1811 = vpop.f32.mrf.mxu0
      %v1812 = vadd.f32 0.0, %v1811
      %1813 = vmatmul.f32.gmra.mxu0 %v1635
      %v1814 = vpop.f32.mrf.mxu0
      %v1815 = vadd.f32 0.0, %v1814
      %1816 = vmatmul.f32.gmra.mxu0 %v1636
      %v1817 = vpop.f32.mrf.mxu0
      %v1818 = vadd.f32 0.0, %v1817
      %1819 = vmatmul.f32.gmra.mxu0 %v1637
      %v1820 = vpop.f32.mrf.mxu0
      %v1821 = vadd.f32 0.0, %v1820
      %1822 = vmatmul.f32.gmra.mxu0 %v1638
      %v1823 = vpop.f32.mrf.mxu0
      %v1824 = vadd.f32 0.0, %v1823
      %1825 = vmatmul.f32.gmra.mxu0 %v1639
      %v1826 = vpop.f32.mrf.mxu0
      %v1827 = vadd.f32 0.0, %v1826
      %1828 = vmatmul.f32.gmra.mxu0 %v1640
      %v1829 = vpop.f32.mrf.mxu0
      %v1830 = vadd.f32 0.0, %v1829
      %1831 = vmatmul.f32.gmra.mxu0 %v1641
      %v1832 = vpop.f32.mrf.mxu0
      %v1833 = vadd.f32 0.0, %v1832
      %1834 = vmatmul.f32.gmra.mxu0 %v1642
      %v1835 = vpop.f32.mrf.mxu0
      %v1836 = vadd.f32 0.0, %v1835
      %1837 = vdwg.mxu0
      %1838 = vmatpush.msra.mxu0 0.0
      %1839 = vmatpush.msra.mxu0 0.0
      %1840 = vmatpush.msra.mxu0 0.0
      %1841 = vmatpush.msra.mxu0 0.0
      %1842 = vmatpush.msra.mxu0 0.0
      %1843 = vmatpush.msra.mxu0 0.0
      %1844 = vmatpush.msra.mxu0 0.0
      %1845 = vmatpush.msra.mxu0 0.0
      %1846 = vmatpush.msra.mxu0 0.0
      %1847 = vmatpush.msra.mxu0 0.0
      %1848 = vmatpush.msra.mxu0 0.0
      %1849 = vmatpush.msra.mxu0 0.0
      %1850 = vmatpush.msra.mxu0 0.0
      %1851 = vmatpush.msra.mxu0 0.0
      %1852 = vmatpush.msra.mxu0 %v1660
      %1853 = vmatpush.msra.mxu0 %v1659
      %1854 = vmatmul.f32.gmra.mxu0 %v1661
      %v1855 = vpop.f32.mrf.mxu0
      %v1856 = vadd.f32 %v1743, %v1855
      %1857 = vmatmul.f32.gmra.mxu0 %v1663
      %v1858 = vpop.f32.mrf.mxu0
      %v1859 = vadd.f32 %v1746, %v1858
      %1860 = vmatmul.f32.gmra.mxu0 %v1665
      %v1861 = vpop.f32.mrf.mxu0
      %v1862 = vadd.f32 %v1749, %v1861
      %1863 = vmatmul.f32.gmra.mxu0 %v1667
      %v1864 = vpop.f32.mrf.mxu0
      %v1865 = vadd.f32 %v1752, %v1864
      %1866 = vmatmul.f32.gmra.mxu0 %v1669
      %v1867 = vpop.f32.mrf.mxu0
      %v1868 = vadd.f32 %v1755, %v1867
      %1869 = vmatmul.f32.gmra.mxu0 %v1671
      %v1870 = vpop.f32.mrf.mxu0
      %v1871 = vadd.f32 %v1758, %v1870
      %1872 = vmatmul.f32.gmra.mxu0 %v1673
      %v1873 = vpop.f32.mrf.mxu0
      %v1874 = vadd.f32 %v1761, %v1873
      %1875 = vmatmul.f32.gmra.mxu0 %v1675
      %v1876 = vpop.f32.mrf.mxu0
      %v1877 = vadd.f32 %v1764, %v1876
      %1878 = vmatmul.f32.gmra.mxu0 %v1677
      %v1879 = vpop.f32.mrf.mxu0
      %v1880 = vadd.f32 %v1767, %v1879
      %1881 = vmatmul.f32.gmra.mxu0 %v1679
      %v1882 = vpop.f32.mrf.mxu0
      %v1883 = vadd.f32 %v1770, %v1882
      %1884 = vmatmul.f32.gmra.mxu0 %v1681
      %v1885 = vpop.f32.mrf.mxu0
      %v1886 = vadd.f32 %v1773, %v1885
      %1887 = vmatmul.f32.gmra.mxu0 %v1683
      %v1888 = vpop.f32.mrf.mxu0
      %v1889 = vadd.f32 %v1776, %v1888
      %1890 = vmatmul.f32.gmra.mxu0 %v1685
      %v1891 = vpop.f32.mrf.mxu0
      %v1892 = vadd.f32 %v1779, %v1891
      %1893 = vmatmul.f32.gmra.mxu0 %v1687
      %v1894 = vpop.f32.mrf.mxu0
      %v1895 = vadd.f32 %v1782, %v1894
      %1896 = vmatmul.f32.gmra.mxu0 %v1689
      %v1897 = vpop.f32.mrf.mxu0
      %v1898 = vadd.f32 %v1785, %v1897
      %1899 = vmatmul.f32.gmra.mxu0 %v1691
      %v1900 = vpop.f32.mrf.mxu0
      %v1901 = vadd.f32 %v1788, %v1900
      %1902 = vmatmul.f32.gmra.mxu0 %v1693
      %v1903 = vpop.f32.mrf.mxu0
      %v1904 = vadd.f32 %v1791, %v1903
      %1905 = vmatmul.f32.gmra.mxu0 %v1695
      %v1906 = vpop.f32.mrf.mxu0
      %v1907 = vadd.f32 %v1794, %v1906
      %1908 = vmatmul.f32.gmra.mxu0 %v1697
      %v1909 = vpop.f32.mrf.mxu0
      %v1910 = vadd.f32 %v1797, %v1909
      %1911 = vmatmul.f32.gmra.mxu0 %v1699
      %v1912 = vpop.f32.mrf.mxu0
      %v1913 = vadd.f32 %v1800, %v1912
      %1914 = vmatmul.f32.gmra.mxu0 %v1701
      %v1915 = vpop.f32.mrf.mxu0
      %v1916 = vadd.f32 %v1803, %v1915
      %1917 = vmatmul.f32.gmra.mxu0 %v1703
      %v1918 = vpop.f32.mrf.mxu0
      %v1919 = vadd.f32 %v1806, %v1918
      %1920 = vmatmul.f32.gmra.mxu0 %v1705
      %v1921 = vpop.f32.mrf.mxu0
      %v1922 = vadd.f32 %v1809, %v1921
      %1923 = vmatmul.f32.gmra.mxu0 %v1707
      %v1924 = vpop.f32.mrf.mxu0
      %v1925 = vadd.f32 %v1812, %v1924
      %1926 = vmatmul.f32.gmra.mxu0 %v1709
      %v1927 = vpop.f32.mrf.mxu0
      %v1928 = vadd.f32 %v1815, %v1927
      %1929 = vmatmul.f32.gmra.mxu0 %v1711
      %v1930 = vpop.f32.mrf.mxu0
      %v1931 = vadd.f32 %v1818, %v1930
      %1932 = vmatmul.f32.gmra.mxu0 %v1713
      %v1933 = vpop.f32.mrf.mxu0
      %v1934 = vadd.f32 %v1821, %v1933
      %1935 = vmatmul.f32.gmra.mxu0 %v1715
      %v1936 = vpop.f32.mrf.mxu0
      %v1937 = vadd.f32 %v1824, %v1936
      %1938 = vmatmul.f32.gmra.mxu0 %v1717
      %v1939 = vpop.f32.mrf.mxu0
      %v1940 = vadd.f32 %v1827, %v1939
      %1941 = vmatmul.f32.gmra.mxu0 %v1719
      %v1942 = vpop.f32.mrf.mxu0
      %v1943 = vadd.f32 %v1830, %v1942
      %1944 = vmatmul.f32.gmra.mxu0 %v1721
      %v1945 = vpop.f32.mrf.mxu0
      %v1946 = vadd.f32 %v1833, %v1945
      %1947 = vmatmul.f32.gmra.mxu0 %v1723
      %v1948 = vpop.f32.mrf.mxu0
      %v1949 = vadd.f32 %v1836, %v1948
      %1950 = vdwg.mxu0
      %v1951 = vsel %vm372, %v1856, 0.0
      %v1952 = vsel %vm372, %v1859, 0.0
      %v1953 = vadd.f32 %v1951, %v1952
      %v1954 = vsel %vm372, %v1862, 0.0
      %v1955 = vadd.f32 %v1953, %v1954
      %v1956 = vsel %vm372, %v1865, 0.0
      %v1957 = vadd.f32 %v1955, %v1956
      %v1958 = vsel %vm372, %v1868, 0.0
      %v1959 = vadd.f32 %v1957, %v1958
      %v1960 = vsel %vm372, %v1871, 0.0
      %v1961 = vadd.f32 %v1959, %v1960
      %v1962 = vsel %vm372, %v1874, 0.0
      %v1963 = vadd.f32 %v1961, %v1962
      %v1964 = vsel %vm372, %v1877, 0.0
      %v1965 = vadd.f32 %v1963, %v1964
      %v1966 = vsel %vm372, %v1880, 0.0
      %v1967 = vadd.f32 %v1965, %v1966
      %v1968 = vsel %vm372, %v1883, 0.0
      %v1969 = vadd.f32 %v1967, %v1968
      %v1970 = vsel %vm372, %v1886, 0.0
      %v1971 = vadd.f32 %v1969, %v1970
      %v1972 = vsel %vm372, %v1889, 0.0
      %v1973 = vadd.f32 %v1971, %v1972
      %v1974 = vsel %vm372, %v1892, 0.0
      %v1975 = vadd.f32 %v1973, %v1974
      %v1976 = vsel %vm372, %v1895, 0.0
      %v1977 = vadd.f32 %v1975, %v1976
      %v1978 = vsel %vm372, %v1898, 0.0
      %v1979 = vadd.f32 %v1977, %v1978
      %v1980 = vsel %vm372, %v1901, 0.0
      %v1981 = vadd.f32 %v1979, %v1980
      %v1982 = vsel %vm372, %v1904, 0.0
      %v1983 = vadd.f32 %v1981, %v1982
      %v1984 = vsel %vm372, %v1907, 0.0
      %v1985 = vadd.f32 %v1983, %v1984
      %v1986 = vsel %vm372, %v1910, 0.0
      %v1987 = vadd.f32 %v1985, %v1986
      %v1988 = vsel %vm372, %v1913, 0.0
      %v1989 = vadd.f32 %v1987, %v1988
      %v1990 = vsel %vm372, %v1916, 0.0
      %v1991 = vadd.f32 %v1989, %v1990
      %v1992 = vsel %vm372, %v1919, 0.0
      %v1993 = vadd.f32 %v1991, %v1992
      %v1994 = vsel %vm372, %v1922, 0.0
      %v1995 = vadd.f32 %v1993, %v1994
      %v1996 = vsel %vm372, %v1925, 0.0
      %v1997 = vadd.f32 %v1995, %v1996
      %v1998 = vsel %vm372, %v1928, 0.0
      %v1999 = vadd.f32 %v1997, %v1998
      %v2000 = vsel %vm372, %v1931, 0.0
      %v2001 = vadd.f32 %v1999, %v2000
      %v2002 = vsel %vm372, %v1934, 0.0
      %v2003 = vadd.f32 %v2001, %v2002
      %v2004 = vsel %vm372, %v1937, 0.0
      %v2005 = vadd.f32 %v2003, %v2004
      %v2006 = vsel %vm372, %v1940, 0.0
      %v2007 = vadd.f32 %v2005, %v2006
      %v2008 = vsel %vm372, %v1943, 0.0
      %v2009 = vadd.f32 %v2007, %v2008
      %v2010 = vsel %vm372, %v1946, 0.0
      %v2011 = vadd.f32 %v2009, %v2010
      %v2012 = vsel %vm372, %v1949, 0.0
      %v2013 = vadd.f32 %v2011, %v2012
      %v2014 = vrot.slane %v2013, 4
      %v2015 = vadd.f32 %v2013, %v2014
      %v2016 = vrot.slane %v2015, 2
      %v2017 = vadd.f32 %v2015, %v2016
      %v2018 = vrot.slane %v2017, 1
      %v2019 = vadd.f32 %v2017, %v2018
      %v2020 = vmul.f32 %v1856, %v1856
      %v2021 = vmul.f32 %v1859, %v1859
      %v2022 = vmul.f32 %v1862, %v1862
      %v2023 = vmul.f32 %v1865, %v1865
      %v2024 = vmul.f32 %v1868, %v1868
      %v2025 = vmul.f32 %v1871, %v1871
      %v2026 = vmul.f32 %v1874, %v1874
      %v2027 = vmul.f32 %v1877, %v1877
      %v2028 = vmul.f32 %v1880, %v1880
      %v2029 = vmul.f32 %v1883, %v1883
      %v2030 = vmul.f32 %v1886, %v1886
      %v2031 = vmul.f32 %v1889, %v1889
      %v2032 = vmul.f32 %v1892, %v1892
      %v2033 = vmul.f32 %v1895, %v1895
      %v2034 = vmul.f32 %v1898, %v1898
      %v2035 = vmul.f32 %v1901, %v1901
      %v2036 = vmul.f32 %v1904, %v1904
      %v2037 = vmul.f32 %v1907, %v1907
      %v2038 = vmul.f32 %v1910, %v1910
      %v2039 = vmul.f32 %v1913, %v1913
      %v2040 = vmul.f32 %v1916, %v1916
      %v2041 = vmul.f32 %v1919, %v1919
      %v2042 = vmul.f32 %v1922, %v1922
      %v2043 = vmul.f32 %v1925, %v1925
      %v2044 = vmul.f32 %v1928, %v1928
      %v2045 = vmul.f32 %v1931, %v1931
      %v2046 = vmul.f32 %v1934, %v1934
      %v2047 = vmul.f32 %v1937, %v1937
      %v2048 = vmul.f32 %v1940, %v1940
      %v2049 = vmul.f32 %v1943, %v1943
      %v2050 = vmul.f32 %v1946, %v1946
      %v2051 = vmul.f32 %v1949, %v1949
      %v2052 = vsel %vm372, %v2020, 0.0
      %v2053 = vsel %vm372, %v2021, 0.0
      %v2054 = vadd.f32 %v2052, %v2053
      %v2055 = vsel %vm372, %v2022, 0.0
      %v2056 = vadd.f32 %v2054, %v2055
      %v2057 = vsel %vm372, %v2023, 0.0
      %v2058 = vadd.f32 %v2056, %v2057
      %v2059 = vsel %vm372, %v2024, 0.0
      %v2060 = vadd.f32 %v2058, %v2059
      %v2061 = vsel %vm372, %v2025, 0.0
      %v2062 = vadd.f32 %v2060, %v2061
      %v2063 = vsel %vm372, %v2026, 0.0
      %v2064 = vadd.f32 %v2062, %v2063
      %v2065 = vsel %vm372, %v2027, 0.0
      %v2066 = vadd.f32 %v2064, %v2065
      %v2067 = vsel %vm372, %v2028, 0.0
      %v2068 = vadd.f32 %v2066, %v2067
      %v2069 = vsel %vm372, %v2029, 0.0
      %v2070 = vadd.f32 %v2068, %v2069
      %v2071 = vsel %vm372, %v2030, 0.0
      %v2072 = vadd.f32 %v2070, %v2071
      %v2073 = vsel %vm372, %v2031, 0.0
      %v2074 = vadd.f32 %v2072, %v2073
      %v2075 = vsel %vm372, %v2032, 0.0
      %v2076 = vadd.f32 %v2074, %v2075
      %v2077 = vsel %vm372, %v2033, 0.0
      %v2078 = vadd.f32 %v2076, %v2077
      %v2079 = vsel %vm372, %v2034, 0.0
      %v2080 = vadd.f32 %v2078, %v2079
      %v2081 = vsel %vm372, %v2035, 0.0
      %v2082 = vadd.f32 %v2080, %v2081
      %v2083 = vsel %vm372, %v2036, 0.0
      %v2084 = vadd.f32 %v2082, %v2083
      %v2085 = vsel %vm372, %v2037, 0.0
      %v2086 = vadd.f32 %v2084, %v2085
      %v2087 = vsel %vm372, %v2038, 0.0
      %v2088 = vadd.f32 %v2086, %v2087
      %v2089 = vsel %vm372, %v2039, 0.0
      %v2090 = vadd.f32 %v2088, %v2089
      %v2091 = vsel %vm372, %v2040, 0.0
      %v2092 = vadd.f32 %v2090, %v2091
      %v2093 = vsel %vm372, %v2041, 0.0
      %v2094 = vadd.f32 %v2092, %v2093
      %v2095 = vsel %vm372, %v2042, 0.0
      %v2096 = vadd.f32 %v2094, %v2095
      %v2097 = vsel %vm372, %v2043, 0.0
      %v2098 = vadd.f32 %v2096, %v2097
      %v2099 = vsel %vm372, %v2044, 0.0
      %v2100 = vadd.f32 %v2098, %v2099
      %v2101 = vsel %vm372, %v2045, 0.0
      %v2102 = vadd.f32 %v2100, %v2101
      %v2103 = vsel %vm372, %v2046, 0.0
      %v2104 = vadd.f32 %v2102, %v2103
      %v2105 = vsel %vm372, %v2047, 0.0
      %v2106 = vadd.f32 %v2104, %v2105
      %v2107 = vsel %vm372, %v2048, 0.0
      %v2108 = vadd.f32 %v2106, %v2107
      %v2109 = vsel %vm372, %v2049, 0.0
      %v2110 = vadd.f32 %v2108, %v2109
      %v2111 = vsel %vm372, %v2050, 0.0
      %v2112 = vadd.f32 %v2110, %v2111
      %v2113 = vsel %vm372, %v2051, 0.0
      %v2114 = vadd.f32 %v2112, %v2113
      %v2115 = vrot.slane %v2114, 4
      %v2116 = vadd.f32 %v2114, %v2115
      %v2117 = vrot.slane %v2116, 2
      %v2118 = vadd.f32 %v2116, %v2117
      %v2119 = vrot.slane %v2118, 1
      %v2120 = vadd.f32 %v2118, %v2119
      %vm2121 = vcmask 1040384
      %v2122 = vsel %vm2121, %v2019, %v2120
      %2123 = vst.msk [vmem:[%s235] sm:$0x3] %vm375, %v2122
      %v2140 = vrot.slane %v1862, 7
      %vm2141 = vcmask 1041409
      %v2142 = vsel %vm2141, %v2140, %v1856
      %v2143 = vrot.slane %v1868, 6
      %vm2144 = vcmask 1042434
      %v2145 = vsel %vm2144, %v2143, %v2142
      %v2146 = vrot.slane %v1874, 5
      %vm2147 = vcmask 1043459
      %v2148 = vsel %vm2147, %v2146, %v2145
      %v2149 = vrot.slane %v1880, 4
      %vm2150 = vcmask 1044484
      %v2151 = vsel %vm2150, %v2149, %v2148
      %v2152 = vrot.slane %v1886, 3
      %vm2153 = vcmask 1045509
      %v2154 = vsel %vm2153, %v2152, %v2151
      %v2155 = vrot.slane %v1892, 2
      %vm2156 = vcmask 1046534
      %v2157 = vsel %vm2156, %v2155, %v2154
      %v2158 = vrot.slane %v1898, 1
      %vm2159 = vcmask 1047559
      %v2160 = vsel %vm2159, %v2158, %v2157
      %v2161 = vrot.slane %v1910, 7
      %v2162 = vsel %vm2141, %v2161, %v1904
      %v2163 = vrot.slane %v1916, 6
      %v2164 = vsel %vm2144, %v2163, %v2162
      %v2165 = vrot.slane %v1922, 5
      %v2166 = vsel %vm2147, %v2165, %v2164
      %v2167 = vrot.slane %v1928, 4
      %v2168 = vsel %vm2150, %v2167, %v2166
      %v2169 = vrot.slane %v1934, 3
      %v2170 = vsel %vm2153, %v2169, %v2168
      %v2171 = vrot.slane %v1940, 2
      %v2172 = vsel %vm2156, %v2171, %v2170
      %v2173 = vrot.slane %v1946, 1
      %v2174 = vsel %vm2159, %v2173, %v2172
      %v2177 = vrot.slane %v1856, 1
      %v2178 = vsel %vm2141, %v1862, %v2177
      %v2179 = vrot.slane %v1868, 7
      %v2180 = vsel %vm2144, %v2179, %v2178
      %v2181 = vrot.slane %v1874, 6
      %v2182 = vsel %vm2147, %v2181, %v2180
      %v2183 = vrot.slane %v1880, 5
      %v2184 = vsel %vm2150, %v2183, %v2182
      %v2185 = vrot.slane %v1886, 4
      %v2186 = vsel %vm2153, %v2185, %v2184
      %v2187 = vrot.slane %v1892, 3
      %v2188 = vsel %vm2156, %v2187, %v2186
      %v2189 = vrot.slane %v1898, 2
      %v2190 = vsel %vm2159, %v2189, %v2188
      %v2191 = vrot.slane %v1904, 1
      %v2192 = vsel %vm2141, %v1910, %v2191
      %v2193 = vrot.slane %v1916, 7
      %v2194 = vsel %vm2144, %v2193, %v2192
      %v2195 = vrot.slane %v1922, 6
      %v2196 = vsel %vm2147, %v2195, %v2194
      %v2197 = vrot.slane %v1928, 5
      %v2198 = vsel %vm2150, %v2197, %v2196
      %v2199 = vrot.slane %v1934, 4
      %v2200 = vsel %vm2153, %v2199, %v2198
      %v2201 = vrot.slane %v1940, 3
      %v2202 = vsel %vm2156, %v2201, %v2200
      %v2203 = vrot.slane %v1946, 2
      %v2204 = vsel %vm2159, %v2203, %v2202
      %2205 = vrot.lane.b32.xlu0 %v2190, 16
      %v2206 = vpop.permute.xlu0 %2205
      %2207 = vrot.lane.b32.xlu0 %v2204, 16
      %v2208 = vpop.permute.xlu0 %2207
      %v2211 = vrot.slane %v1856, 2
      %v2212 = vrot.slane %v1862, 1
      %v2213 = vsel %vm2141, %v2212, %v2211
      %v2214 = vsel %vm2144, %v1868, %v2213
      %v2215 = vrot.slane %v1874, 7
      %v2216 = vsel %vm2147, %v2215, %v2214
      %v2217 = vrot.slane %v1880, 6
      %v2218 = vsel %vm2150, %v2217, %v2216
      %v2219 = vrot.slane %v1886, 5
      %v2220 = vsel %vm2153, %v2219, %v2218
      %v2221 = vrot.slane %v1892, 4
      %v2222 = vsel %vm2156, %v2221, %v2220
      %v2223 = vrot.slane %v1898, 3
      %v2224 = vsel %vm2159, %v2223, %v2222
      %v2225 = vrot.slane %v1904, 2
      %v2226 = vrot.slane %v1910, 1
      %v2227 = vsel %vm2141, %v2226, %v2225
      %v2228 = vsel %vm2144, %v1916, %v2227
      %v2229 = vrot.slane %v1922, 7
      %v2230 = vsel %vm2147, %v2229, %v2228
      %v2231 = vrot.slane %v1928, 6
      %v2232 = vsel %vm2150, %v2231, %v2230
      %v2233 = vrot.slane %v1934, 5
      %v2234 = vsel %vm2153, %v2233, %v2232
      %v2235 = vrot.slane %v1940, 4
      %v2236 = vsel %vm2156, %v2235, %v2234
      %v2237 = vrot.slane %v1946, 3
      %v2238 = vsel %vm2159, %v2237, %v2236
      %2239 = vrot.lane.b32.xlu0 %v2224, 32
      %v2240 = vpop.permute.xlu0 %2239
      %2241 = vrot.lane.b32.xlu0 %v2238, 32
      %v2242 = vpop.permute.xlu0 %2241
      %v2245 = vrot.slane %v1856, 3
      %v2246 = vrot.slane %v1862, 2
      %v2247 = vsel %vm2141, %v2246, %v2245
      %v2248 = vrot.slane %v1868, 1
      %v2249 = vsel %vm2144, %v2248, %v2247
      %v2250 = vsel %vm2147, %v1874, %v2249
      %v2251 = vrot.slane %v1880, 7
      %v2252 = vsel %vm2150, %v2251, %v2250
      %v2253 = vrot.slane %v1886, 6
      %v2254 = vsel %vm2153, %v2253, %v2252
      %v2255 = vrot.slane %v1892, 5
      %v2256 = vsel %vm2156, %v2255, %v2254
      %v2257 = vrot.slane %v1898, 4
      %v2258 = vsel %vm2159, %v2257, %v2256
      %v2259 = vrot.slane %v1904, 3
      %v2260 = vrot.slane %v1910, 2
      %v2261 = vsel %vm2141, %v2260, %v2259
      %v2262 = vrot.slane %v1916, 1
      %v2263 = vsel %vm2144, %v2262, %v2261
      %v2264 = vsel %vm2147, %v1922, %v2263
      %v2265 = vrot.slane %v1928, 7
      %v2266 = vsel %vm2150, %v2265, %v2264
      %v2267 = vrot.slane %v1934, 6
      %v2268 = vsel %vm2153, %v2267, %v2266
      %v2269 = vrot.slane %v1940, 5
      %v2270 = vsel %vm2156, %v2269, %v2268
      %v2271 = vrot.slane %v1946, 4
      %v2272 = vsel %vm2159, %v2271, %v2270
      %2273 = vrot.lane.b32.xlu0 %v2258, 48
      %v2274 = vpop.permute.xlu0 %2273
      %2275 = vrot.lane.b32.xlu0 %v2272, 48
      %v2276 = vpop.permute.xlu0 %2275
      %v2279 = vrot.slane %v1856, 4
      %v2280 = vrot.slane %v1862, 3
      %v2281 = vsel %vm2141, %v2280, %v2279
      %v2282 = vrot.slane %v1868, 2
      %v2283 = vsel %vm2144, %v2282, %v2281
      %v2284 = vrot.slane %v1874, 1
      %v2285 = vsel %vm2147, %v2284, %v2283
      %v2286 = vsel %vm2150, %v1880, %v2285
      %v2287 = vrot.slane %v1886, 7
      %v2288 = vsel %vm2153, %v2287, %v2286
      %v2289 = vrot.slane %v1892, 6
      %v2290 = vsel %vm2156, %v2289, %v2288
      %v2291 = vrot.slane %v1898, 5
      %v2292 = vsel %vm2159, %v2291, %v2290
      %v2293 = vrot.slane %v1904, 4
      %v2294 = vrot.slane %v1910, 3
      %v2295 = vsel %vm2141, %v2294, %v2293
      %v2296 = vrot.slane %v1916, 2
      %v2297 = vsel %vm2144, %v2296, %v2295
      %v2298 = vrot.slane %v1922, 1
      %v2299 = vsel %vm2147, %v2298, %v2297
      %v2300 = vsel %vm2150, %v1928, %v2299
      %v2301 = vrot.slane %v1934, 7
      %v2302 = vsel %vm2153, %v2301, %v2300
      %v2303 = vrot.slane %v1940, 6
      %v2304 = vsel %vm2156, %v2303, %v2302
      %v2305 = vrot.slane %v1946, 5
      %v2306 = vsel %vm2159, %v2305, %v2304
      %2307 = vrot.lane.b32.xlu0 %v2292, 64
      %v2308 = vpop.permute.xlu0 %2307
      %2309 = vrot.lane.b32.xlu0 %v2306, 64
      %v2310 = vpop.permute.xlu0 %2309
      %v2313 = vrot.slane %v1856, 5
      %v2314 = vrot.slane %v1862, 4
      %v2315 = vsel %vm2141, %v2314, %v2313
      %v2316 = vrot.slane %v1868, 3
      %v2317 = vsel %vm2144, %v2316, %v2315
      %v2318 = vrot.slane %v1874, 2
      %v2319 = vsel %vm2147, %v2318, %v2317
      %v2320 = vrot.slane %v1880, 1
      %v2321 = vsel %vm2150, %v2320, %v2319
      %v2322 = vsel %vm2153, %v1886, %v2321
      %v2323 = vrot.slane %v1892, 7
      %v2324 = vsel %vm2156, %v2323, %v2322
      %v2325 = vrot.slane %v1898, 6
      %v2326 = vsel %vm2159, %v2325, %v2324
      %v2327 = vrot.slane %v1904, 5
      %v2328 = vrot.slane %v1910, 4
      %v2329 = vsel %vm2141, %v2328, %v2327
      %v2330 = vrot.slane %v1916, 3
      %v2331 = vsel %vm2144, %v2330, %v2329
      %v2332 = vrot.slane %v1922, 2
      %v2333 = vsel %vm2147, %v2332, %v2331
      %v2334 = vrot.slane %v1928, 1
      %v2335 = vsel %vm2150, %v2334, %v2333
      %v2336 = vsel %vm2153, %v1934, %v2335
      %v2337 = vrot.slane %v1940, 7
      %v2338 = vsel %vm2156, %v2337, %v2336
      %v2339 = vrot.slane %v1946, 6
      %v2340 = vsel %vm2159, %v2339, %v2338
      %2341 = vrot.lane.b32.xlu0 %v2326, 80
      %v2342 = vpop.permute.xlu0 %2341
      %2343 = vrot.lane.b32.xlu0 %v2340, 80
      %v2344 = vpop.permute.xlu0 %2343
      %v2347 = vrot.slane %v1856, 6
      %v2348 = vrot.slane %v1862, 5
      %v2349 = vsel %vm2141, %v2348, %v2347
      %v2350 = vrot.slane %v1868, 4
      %v2351 = vsel %vm2144, %v2350, %v2349
      %v2352 = vrot.slane %v1874, 3
      %v2353 = vsel %vm2147, %v2352, %v2351
      %v2354 = vrot.slane %v1880, 2
      %v2355 = vsel %vm2150, %v2354, %v2353
      %v2356 = vrot.slane %v1886, 1
      %v2357 = vsel %vm2153, %v2356, %v2355
      %v2358 = vsel %vm2156, %v1892, %v2357
      %v2359 = vrot.slane %v1898, 7
      %v2360 = vsel %vm2159, %v2359, %v2358
      %v2361 = vrot.slane %v1904, 6
      %v2362 = vrot.slane %v1910, 5
      %v2363 = vsel %vm2141, %v2362, %v2361
      %v2364 = vrot.slane %v1916, 4
      %v2365 = vsel %vm2144, %v2364, %v2363
      %v2366 = vrot.slane %v1922, 3
      %v2367 = vsel %vm2147, %v2366, %v2365
      %v2368 = vrot.slane %v1928, 2
      %v2369 = vsel %vm2150, %v2368, %v2367
      %v2370 = vrot.slane %v1934, 1
      %v2371 = vsel %vm2153, %v2370, %v2369
      %v2372 = vsel %vm2156, %v1940, %v2371
      %v2373 = vrot.slane %v1946, 7
      %v2374 = vsel %vm2159, %v2373, %v2372
      %2375 = vrot.lane.b32.xlu0 %v2360, 96
      %v2376 = vpop.permute.xlu0 %2375
      %2377 = vrot.lane.b32.xlu0 %v2374, 96
      %v2378 = vpop.permute.xlu0 %2377
      %v2381 = vrot.slane %v1856, 7
      %v2382 = vrot.slane %v1862, 6
      %v2383 = vsel %vm2141, %v2382, %v2381
      %v2384 = vrot.slane %v1868, 5
      %v2385 = vsel %vm2144, %v2384, %v2383
      %v2386 = vrot.slane %v1874, 4
      %v2387 = vsel %vm2147, %v2386, %v2385
      %v2388 = vrot.slane %v1880, 3
      %v2389 = vsel %vm2150, %v2388, %v2387
      %v2390 = vrot.slane %v1886, 2
      %v2391 = vsel %vm2153, %v2390, %v2389
      %v2392 = vrot.slane %v1892, 1
      %v2393 = vsel %vm2156, %v2392, %v2391
      %v2394 = vsel %vm2159, %v1898, %v2393
      %v2395 = vrot.slane %v1904, 7
      %v2396 = vrot.slane %v1910, 6
      %v2397 = vsel %vm2141, %v2396, %v2395
      %v2398 = vrot.slane %v1916, 5
      %v2399 = vsel %vm2144, %v2398, %v2397
      %v2400 = vrot.slane %v1922, 4
      %v2401 = vsel %vm2147, %v2400, %v2399
      %v2402 = vrot.slane %v1928, 3
      %v2403 = vsel %vm2150, %v2402, %v2401
      %v2404 = vrot.slane %v1934, 2
      %v2405 = vsel %vm2153, %v2404, %v2403
      %v2406 = vrot.slane %v1940, 1
      %v2407 = vsel %vm2156, %v2406, %v2405
      %v2408 = vsel %vm2159, %v1946, %v2407
      %2409 = vrot.lane.b32.xlu0 %v2394, 112
      %v2410 = vpop.permute.xlu0 %2409
      %2411 = vrot.lane.b32.xlu0 %v2408, 112
      %v2412 = vpop.permute.xlu0 %2411
      %v2431 = vrot.slane %v1865, 7
      %v2432 = vsel %vm2141, %v2431, %v1859
      %v2433 = vrot.slane %v1871, 6
      %v2434 = vsel %vm2144, %v2433, %v2432
      %v2435 = vrot.slane %v1877, 5
      %v2436 = vsel %vm2147, %v2435, %v2434
      %v2437 = vrot.slane %v1883, 4
      %v2438 = vsel %vm2150, %v2437, %v2436
      %v2439 = vrot.slane %v1889, 3
      %v2440 = vsel %vm2153, %v2439, %v2438
      %v2441 = vrot.slane %v1895, 2
      %v2442 = vsel %vm2156, %v2441, %v2440
      %v2443 = vrot.slane %v1901, 1
      %v2444 = vsel %vm2159, %v2443, %v2442
      %v2445 = vrot.slane %v1913, 7
      %v2446 = vsel %vm2141, %v2445, %v1907
      %v2447 = vrot.slane %v1919, 6
      %v2448 = vsel %vm2144, %v2447, %v2446
      %v2449 = vrot.slane %v1925, 5
      %v2450 = vsel %vm2147, %v2449, %v2448
      %v2451 = vrot.slane %v1931, 4
      %v2452 = vsel %vm2150, %v2451, %v2450
      %v2453 = vrot.slane %v1937, 3
      %v2454 = vsel %vm2153, %v2453, %v2452
      %v2455 = vrot.slane %v1943, 2
      %v2456 = vsel %vm2156, %v2455, %v2454
      %v2457 = vrot.slane %v1949, 1
      %v2458 = vsel %vm2159, %v2457, %v2456
      %v2461 = vrot.slane %v1859, 1
      %v2462 = vsel %vm2141, %v1865, %v2461
      %v2463 = vrot.slane %v1871, 7
      %v2464 = vsel %vm2144, %v2463, %v2462
      %v2465 = vrot.slane %v1877, 6
      %v2466 = vsel %vm2147, %v2465, %v2464
      %v2467 = vrot.slane %v1883, 5
      %v2468 = vsel %vm2150, %v2467, %v2466
      %v2469 = vrot.slane %v1889, 4
      %v2470 = vsel %vm2153, %v2469, %v2468
      %v2471 = vrot.slane %v1895, 3
      %v2472 = vsel %vm2156, %v2471, %v2470
      %v2473 = vrot.slane %v1901, 2
      %v2474 = vsel %vm2159, %v2473, %v2472
      %v2475 = vrot.slane %v1907, 1
      %v2476 = vsel %vm2141, %v1913, %v2475
      %v2477 = vrot.slane %v1919, 7
      %v2478 = vsel %vm2144, %v2477, %v2476
      %v2479 = vrot.slane %v1925, 6
      %v2480 = vsel %vm2147, %v2479, %v2478
      %v2481 = vrot.slane %v1931, 5
      %v2482 = vsel %vm2150, %v2481, %v2480
      %v2483 = vrot.slane %v1937, 4
      %v2484 = vsel %vm2153, %v2483, %v2482
      %v2485 = vrot.slane %v1943, 3
      %v2486 = vsel %vm2156, %v2485, %v2484
      %v2487 = vrot.slane %v1949, 2
      %v2488 = vsel %vm2159, %v2487, %v2486
      %2489 = vrot.lane.b32.xlu0 %v2474, 16
      %v2490 = vpop.permute.xlu0 %2489
      %2491 = vrot.lane.b32.xlu0 %v2488, 16
      %v2492 = vpop.permute.xlu0 %2491
      %v2495 = vrot.slane %v1859, 2
      %v2496 = vrot.slane %v1865, 1
      %v2497 = vsel %vm2141, %v2496, %v2495
      %v2498 = vsel %vm2144, %v1871, %v2497
      %v2499 = vrot.slane %v1877, 7
      %v2500 = vsel %vm2147, %v2499, %v2498
      %v2501 = vrot.slane %v1883, 6
      %v2502 = vsel %vm2150, %v2501, %v2500
      %v2503 = vrot.slane %v1889, 5
      %v2504 = vsel %vm2153, %v2503, %v2502
      %v2505 = vrot.slane %v1895, 4
      %v2506 = vsel %vm2156, %v2505, %v2504
      %v2507 = vrot.slane %v1901, 3
      %v2508 = vsel %vm2159, %v2507, %v2506
      %v2509 = vrot.slane %v1907, 2
      %v2510 = vrot.slane %v1913, 1
      %v2511 = vsel %vm2141, %v2510, %v2509
      %v2512 = vsel %vm2144, %v1919, %v2511
      %v2513 = vrot.slane %v1925, 7
      %v2514 = vsel %vm2147, %v2513, %v2512
      %v2515 = vrot.slane %v1931, 6
      %v2516 = vsel %vm2150, %v2515, %v2514
      %v2517 = vrot.slane %v1937, 5
      %v2518 = vsel %vm2153, %v2517, %v2516
      %v2519 = vrot.slane %v1943, 4
      %v2520 = vsel %vm2156, %v2519, %v2518
      %v2521 = vrot.slane %v1949, 3
      %v2522 = vsel %vm2159, %v2521, %v2520
      %2523 = vrot.lane.b32.xlu0 %v2508, 32
      %v2524 = vpop.permute.xlu0 %2523
      %2525 = vrot.lane.b32.xlu0 %v2522, 32
      %v2526 = vpop.permute.xlu0 %2525
      %v2529 = vrot.slane %v1859, 3
      %v2530 = vrot.slane %v1865, 2
      %v2531 = vsel %vm2141, %v2530, %v2529
      %v2532 = vrot.slane %v1871, 1
      %v2533 = vsel %vm2144, %v2532, %v2531
      %v2534 = vsel %vm2147, %v1877, %v2533
      %v2535 = vrot.slane %v1883, 7
      %v2536 = vsel %vm2150, %v2535, %v2534
      %v2537 = vrot.slane %v1889, 6
      %v2538 = vsel %vm2153, %v2537, %v2536
      %v2539 = vrot.slane %v1895, 5
      %v2540 = vsel %vm2156, %v2539, %v2538
      %v2541 = vrot.slane %v1901, 4
      %v2542 = vsel %vm2159, %v2541, %v2540
      %v2543 = vrot.slane %v1907, 3
      %v2544 = vrot.slane %v1913, 2
      %v2545 = vsel %vm2141, %v2544, %v2543
      %v2546 = vrot.slane %v1919, 1
      %v2547 = vsel %vm2144, %v2546, %v2545
      %v2548 = vsel %vm2147, %v1925, %v2547
      %v2549 = vrot.slane %v1931, 7
      %v2550 = vsel %vm2150, %v2549, %v2548
      %v2551 = vrot.slane %v1937, 6
      %v2552 = vsel %vm2153, %v2551, %v2550
      %v2553 = vrot.slane %v1943, 5
      %v2554 = vsel %vm2156, %v2553, %v2552
      %v2555 = vrot.slane %v1949, 4
      %v2556 = vsel %vm2159, %v2555, %v2554
      %2557 = vrot.lane.b32.xlu0 %v2542, 48
      %v2558 = vpop.permute.xlu0 %2557
      %2559 = vrot.lane.b32.xlu0 %v2556, 48
      %v2560 = vpop.permute.xlu0 %2559
      %v2563 = vrot.slane %v1859, 4
      %v2564 = vrot.slane %v1865, 3
      %v2565 = vsel %vm2141, %v2564, %v2563
      %v2566 = vrot.slane %v1871, 2
      %v2567 = vsel %vm2144, %v2566, %v2565
      %v2568 = vrot.slane %v1877, 1
      %v2569 = vsel %vm2147, %v2568, %v2567
      %v2570 = vsel %vm2150, %v1883, %v2569
      %v2571 = vrot.slane %v1889, 7
      %v2572 = vsel %vm2153, %v2571, %v2570
      %v2573 = vrot.slane %v1895, 6
      %v2574 = vsel %vm2156, %v2573, %v2572
      %v2575 = vrot.slane %v1901, 5
      %v2576 = vsel %vm2159, %v2575, %v2574
      %v2577 = vrot.slane %v1907, 4
      %v2578 = vrot.slane %v1913, 3
      %v2579 = vsel %vm2141, %v2578, %v2577
      %v2580 = vrot.slane %v1919, 2
      %v2581 = vsel %vm2144, %v2580, %v2579
      %v2582 = vrot.slane %v1925, 1
      %v2583 = vsel %vm2147, %v2582, %v2581
      %v2584 = vsel %vm2150, %v1931, %v2583
      %v2585 = vrot.slane %v1937, 7
      %v2586 = vsel %vm2153, %v2585, %v2584
      %v2587 = vrot.slane %v1943, 6
      %v2588 = vsel %vm2156, %v2587, %v2586
      %v2589 = vrot.slane %v1949, 5
      %v2590 = vsel %vm2159, %v2589, %v2588
      %2591 = vrot.lane.b32.xlu0 %v2576, 64
      %v2592 = vpop.permute.xlu0 %2591
      %2593 = vrot.lane.b32.xlu0 %v2590, 64
      %v2594 = vpop.permute.xlu0 %2593
      %v2597 = vrot.slane %v1859, 5
      %v2598 = vrot.slane %v1865, 4
      %v2599 = vsel %vm2141, %v2598, %v2597
      %v2600 = vrot.slane %v1871, 3
      %v2601 = vsel %vm2144, %v2600, %v2599
      %v2602 = vrot.slane %v1877, 2
      %v2603 = vsel %vm2147, %v2602, %v2601
      %v2604 = vrot.slane %v1883, 1
      %v2605 = vsel %vm2150, %v2604, %v2603
      %v2606 = vsel %vm2153, %v1889, %v2605
      %v2607 = vrot.slane %v1895, 7
      %v2608 = vsel %vm2156, %v2607, %v2606
      %v2609 = vrot.slane %v1901, 6
      %v2610 = vsel %vm2159, %v2609, %v2608
      %v2611 = vrot.slane %v1907, 5
      %v2612 = vrot.slane %v1913, 4
      %v2613 = vsel %vm2141, %v2612, %v2611
      %v2614 = vrot.slane %v1919, 3
      %v2615 = vsel %vm2144, %v2614, %v2613
      %v2616 = vrot.slane %v1925, 2
      %v2617 = vsel %vm2147, %v2616, %v2615
      %v2618 = vrot.slane %v1931, 1
      %v2619 = vsel %vm2150, %v2618, %v2617
      %v2620 = vsel %vm2153, %v1937, %v2619
      %v2621 = vrot.slane %v1943, 7
      %v2622 = vsel %vm2156, %v2621, %v2620
      %v2623 = vrot.slane %v1949, 6
      %v2624 = vsel %vm2159, %v2623, %v2622
      %2625 = vrot.lane.b32.xlu0 %v2610, 80
      %v2626 = vpop.permute.xlu0 %2625
      %2627 = vrot.lane.b32.xlu0 %v2624, 80
      %v2628 = vpop.permute.xlu0 %2627
      %v2631 = vrot.slane %v1859, 6
      %v2632 = vrot.slane %v1865, 5
      %v2633 = vsel %vm2141, %v2632, %v2631
      %v2634 = vrot.slane %v1871, 4
      %v2635 = vsel %vm2144, %v2634, %v2633
      %v2636 = vrot.slane %v1877, 3
      %v2637 = vsel %vm2147, %v2636, %v2635
      %v2638 = vrot.slane %v1883, 2
      %v2639 = vsel %vm2150, %v2638, %v2637
      %v2640 = vrot.slane %v1889, 1
      %v2641 = vsel %vm2153, %v2640, %v2639
      %v2642 = vsel %vm2156, %v1895, %v2641
      %v2643 = vrot.slane %v1901, 7
      %v2644 = vsel %vm2159, %v2643, %v2642
      %v2645 = vrot.slane %v1907, 6
      %v2646 = vrot.slane %v1913, 5
      %v2647 = vsel %vm2141, %v2646, %v2645
      %v2648 = vrot.slane %v1919, 4
      %v2649 = vsel %vm2144, %v2648, %v2647
      %v2650 = vrot.slane %v1925, 3
      %v2651 = vsel %vm2147, %v2650, %v2649
      %v2652 = vrot.slane %v1931, 2
      %v2653 = vsel %vm2150, %v2652, %v2651
      %v2654 = vrot.slane %v1937, 1
      %v2655 = vsel %vm2153, %v2654, %v2653
      %v2656 = vsel %vm2156, %v1943, %v2655
      %v2657 = vrot.slane %v1949, 7
      %v2658 = vsel %vm2159, %v2657, %v2656
      %2659 = vrot.lane.b32.xlu0 %v2644, 96
      %v2660 = vpop.permute.xlu0 %2659
      %2661 = vrot.lane.b32.xlu0 %v2658, 96
      %v2662 = vpop.permute.xlu0 %2661
      %v2665 = vrot.slane %v1859, 7
      %v2666 = vrot.slane %v1865, 6
      %v2667 = vsel %vm2141, %v2666, %v2665
      %v2668 = vrot.slane %v1871, 5
      %v2669 = vsel %vm2144, %v2668, %v2667
      %v2670 = vrot.slane %v1877, 4
      %v2671 = vsel %vm2147, %v2670, %v2669
      %v2672 = vrot.slane %v1883, 3
      %v2673 = vsel %vm2150, %v2672, %v2671
      %v2674 = vrot.slane %v1889, 2
      %v2675 = vsel %vm2153, %v2674, %v2673
      %v2676 = vrot.slane %v1895, 1
      %v2677 = vsel %vm2156, %v2676, %v2675
      %v2678 = vsel %vm2159, %v1901, %v2677
      %v2679 = vrot.slane %v1907, 7
      %v2680 = vrot.slane %v1913, 6
      %v2681 = vsel %vm2141, %v2680, %v2679
      %v2682 = vrot.slane %v1919, 5
      %v2683 = vsel %vm2144, %v2682, %v2681
      %v2684 = vrot.slane %v1925, 4
      %v2685 = vsel %vm2147, %v2684, %v2683
      %v2686 = vrot.slane %v1931, 3
      %v2687 = vsel %vm2150, %v2686, %v2685
      %v2688 = vrot.slane %v1937, 2
      %v2689 = vsel %vm2153, %v2688, %v2687
      %v2690 = vrot.slane %v1943, 1
      %v2691 = vsel %vm2156, %v2690, %v2689
      %v2692 = vsel %vm2159, %v1949, %v2691
      %2693 = vrot.lane.b32.xlu0 %v2678, 112
      %v2694 = vpop.permute.xlu0 %2693
      %2695 = vrot.lane.b32.xlu0 %v2692, 112
      %v2696 = vpop.permute.xlu0 %2695
      %v2699 = vsel %vm372, %v2160, %v2206
      %v2700 = vsel %vm372, %v2174, %v2208
      %v2701 = vsel %vm1445, %v2699, %v2240
      %v2702 = vsel %vm1445, %v2700, %v2242
      %v2703 = vsel %vm1478, %v2701, %v2274
      %v2704 = vsel %vm1478, %v2702, %v2276
      %v2705 = vsel %vm1511, %v2703, %v2308
      %v2706 = vsel %vm1511, %v2704, %v2310
      %v2707 = vsel %vm1544, %v2705, %v2342
      %v2708 = vsel %vm1544, %v2706, %v2344
      %v2709 = vsel %vm1577, %v2707, %v2376
      %v2710 = vsel %vm1577, %v2708, %v2378
      %v2711 = vsel %vm1610, %v2709, %v2410
      %v2712 = vsel %vm1610, %v2710, %v2412
      %v2713 = vsel %vm372, %v2444, %v2490
      %v2714 = vsel %vm372, %v2458, %v2492
      %v2715 = vsel %vm1445, %v2713, %v2524
      %v2716 = vsel %vm1445, %v2714, %v2526
      %v2717 = vsel %vm1478, %v2715, %v2558
      %v2718 = vsel %vm1478, %v2716, %v2560
      %v2719 = vsel %vm1511, %v2717, %v2592
      %v2720 = vsel %vm1511, %v2718, %v2594
      %v2721 = vsel %vm1544, %v2719, %v2626
      %v2722 = vsel %vm1544, %v2720, %v2628
      %v2723 = vsel %vm1577, %v2721, %v2660
      %v2724 = vsel %vm1577, %v2722, %v2662
      %v2725 = vsel %vm1610, %v2723, %v2694
      %v2726 = vsel %vm1610, %v2724, %v2696
      %2727 = vst [vmem:[%s231] sm:$0xff] %v2711
      %2728 = vst [vmem:[%s231 + $0x8] sm:$0xff] %v2725
      %2729 = vst [vmem:[%s231 + $0x10] sm:$0xff] %v2712
      %2730 = vst [vmem:[%s231 + $0x18] sm:$0xff] %v2726
      %p2731 = scmp.lt.s32.totalorder %s17, 1
      %s2732 = scalar_select %p2731, %s17, 1
      %s2733 = smul.addr %s2732, 4
      %s2734 = smul.addr %s2733, 8
      %s2735 = scalar_lea.vmem %s4, %s2734
      %p2736 = scmp.lt.s32.totalorder %s17, 1
      %s2737 = scalar_select %p2736, %s17, 1
      %s2738 = smul.addr %s2737, 2
      %s2739 = scalar_lea.vmem %s5, %s2738
      // Predicated region
      $region37: #{residual_block.4} parent=35 // pred_check
        %p2740 = pneg %p124
      $region38: #{residual_block.4} parent=35 // pred_check_branch
        %2742 = sbr.rel (%p2740) target = $region40
      $region39: #{residual_block.4} parent=35 // pred_region
        _
      $region40: #{residual_block.4} parent=35 // pred_fallthru
        _
      // Predicated region
      $region41: #{residual_block.4} parent=35 // pred_check
        %p2743 = pneg %p150
      $region42: #{residual_block.4} parent=35 // pred_check_branch
        %2745 = sbr.rel (%p2743) target = $region44
      $region43: #{residual_block.4} parent=35 // pred_region
        _
      $region44: #{residual_block.4} parent=35 // pred_fallthru
        _
    $region36: #{residual_block.4} parent=5 // pred_fallthru
      _
    %p2746 = scmp.le.s32.totalorder 2, %s12
    // Predicated region
    $region45: #{residual_block.4} parent=5 // pred_check
      %p2747 = pneg %p2746
    $region46: #{residual_block.4} parent=5 // pred_check_branch
      %2749 = sbr.rel (%p2747) target = $region48
    $region47: #{residual_block.4} parent=5 // pred_region
      %s2750 = ssub.s32 %s12, 2
      // Predicated region
      $region49: #{residual_block.4} parent=47 // pred_check
        %p2751 = pneg %p130
      $region50: #{residual_block.4} parent=47 // pred_check_branch
        %2753 = sbr.rel (%p2751) target = $region52
      $region51: #{residual_block.4} parent=47 // pred_region
        %p2754 = scmp.lt.s32.totalorder %s18, 1
        %s2755 = scalar_select %p2754, %s18, 1
        %s2756 = smul.addr %s2755, 4
        %s2757 = smul.addr %s2756, 8
        %s2758 = scalar_lea.vmem %s4, %s2757
      $region52: #{residual_block.4} parent=47 // pred_fallthru
        _
      // Predicated region
      $region53: #{residual_block.4} parent=47 // pred_check
        %p2759 = pneg %p156
      $region54: #{residual_block.4} parent=47 // pred_check_branch
        %2761 = sbr.rel (%p2759) target = $region56
      $region55: #{residual_block.4} parent=47 // pred_region
        %p2762 = scmp.lt.s32.totalorder %s18, 1
        %s2763 = scalar_select %p2762, %s18, 1
        %s2764 = smul.addr %s2763, 2
        %s2765 = scalar_lea.vmem %s5, %s2764
      $region56: #{residual_block.4} parent=47 // pred_fallthru
        _
    $region48: #{residual_block.4} parent=5 // pred_fallthru
      _
  $region6: #{residual_block.4} parent=0 // loop_footer
    %s16 = sadd.s32 1, %s12
  $region7: #{residual_block.4} parent=0 // loop_footer_branch
    %11 = sbr.rel target = $region3
  $region8: #{residual_block.4} parent=0 // loop_exit
    _

// kernel: residual_block.3
$region0: #{residual_block.3}
  #allocation0 [shape = 'u32[]', space=smem, size = 0x4, offset = 0x4, fixed_abs, tag = 'smem constant byte address 0x4 - core index']
  #allocation1 [shape = 'u32[72,128]{1,0:T(1,128)}', space=vmem, size = 0x9000, scoped, tag = 'internal scratch']
  #allocation2 [shape = 'f32[1,18,18,16]{3,2,1,0:T(8,128)}', space=vmem, size = 0x36000, scoped, tag = 'scratch operand']
  %s0 = inlined_call_operand.vmem [shape: f32[2,16,16,16], index: 0, kind: input, shape index: {}]
  %s1 = inlined_call_operand.vmem [shape: f32[144,16], index: 1, kind: input, shape index: {}]
  %s2 = inlined_call_operand.vmem [shape: f32[2,16,256], index: 2, kind: output, shape index: {0}]
  %s3 = inlined_call_operand.vmem [shape: f32[2,2,16], index: 3, kind: output, shape index: {1}]
  %4 = xla_tuple %s2, %s3
  %s5 = sld [smem:[#allocation0]]
  $region49: #{residual_block.3} parent=0
    _
  %s7 = ssub.s32 1, %s5
  %s8 = scalar_select 0, %s7, %s5
  loop: start=0, step=1, limit=4
  $region2: #{residual_block.3} parent=0 // loop_pre_header
    _
  $region3: #{residual_block.3} parent=0 // loop_header
    %s10 = sphi 0, %s14
    %p11 = scmp.ge.s32.totalorder %s10, 4
    %s20 = sphi 0, %s22
    %s23 = sphi 0, %s20
    %s24 = sphi 0, %s23
    %s40 = sphi 0, %s24
    %s44 = sphi 0, %s44
    %s46 = sphi 0, %s44
    %s47 = sphi 0, %s46
    %s61 = sphi 0, %s47
    %s67 = sphi 0, %s69
    %s70 = sphi 0, %s67
    %s71 = sphi 0, %s70
    %s87 = sphi 0, %s71
    %s93 = sphi 0, %s95
    %s96 = sphi 0, %s93
    %s97 = sphi 0, %s96
    %s113 = sphi 0, %s97
  $region4: #{residual_block.3} parent=0 // loop_header_branch
    %13 = sbr.rel (%p11) target = $region8
  $region5: #{residual_block.3} parent=0 // loop_body
    %s15 = ssub.s32 %s10, 1
    %s16 = ssub.s32 %s10, 2
    %s17 = sadd.s32 %s10, 1
    %s18 = ssub.s32 %s10, %s17
    %p19 = scmp.eq.s32.totalorder %s18, 0
    %s21 = sadd.s32 %s20, 1
    %s22 = scalar_select %p19, %s20, %s21
    %p25 = pneg %p19
    %p26 = scmp.eq.s32.totalorder %s10, 1
    %p27 = por %p25, %p26
    %p28 = scmp.ne.s32.totalorder %s20, %s23
    %p29 = scmp.eq.s32.totalorder %s10, 0
    %p30 = por %p28, %p29
    %p31 = scmp.ne.s32.totalorder %s20, %s23
    %p32 = scmp.eq.s32.totalorder %s15, 1
    %p33 = por %p31, %p32
    %p34 = scmp.ne.s32.totalorder %s23, %s24
    %p35 = scmp.eq.s32.totalorder %s15, 0
    %p36 = por %p34, %p35
    %p37 = scmp.ne.s32.totalorder %s23, %s24
    %p38 = scmp.eq.s32.totalorder %s16, 1
    %p39 = por %p37, %p38
    %p41 = scmp.ne.s32.totalorder %s24, %s40
    %p42 = scmp.eq.s32.totalorder %s16, 0
    %p43 = por %p41, %p42
    %s45 = sadd.s32 %s44, 1
    %p48 = scmp.eq.s32.totalorder %s10, 1
    %p49 = scmp.ne.s32.totalorder %s44, %s46
    %p50 = scmp.eq.s32.totalorder %s10, 0
    %p51 = por %p49, %p50
    %p52 = scmp.ne.s32.totalorder %s44, %s46
    %p53 = scmp.eq.s32.totalorder %s15, 1
    %p54 = por %p52, %p53
    %p55 = scmp.ne.s32.totalorder %s46, %s47
    %p56 = scmp.eq.s32.totalorder %s15, 0
    %p57 = por %p55, %p56
    %p58 = scmp.ne.s32.totalorder %s46, %s47
    %p59 = scmp.eq.s32.totalorder %s16, 1
    %p60 = por %p58, %p59
    %p62 = scmp.ne.s32.totalorder %s47, %s61
    %p63 = scmp.eq.s32.totalorder %s16, 0
    %p64 = por %p62, %p63
    %s65 = ssub.s32 %s10, %s17
    %p66 = scmp.eq.s32.totalorder %s65, 0
    %s68 = sadd.s32 %s67, 1
    %s69 = scalar_select %p66, %s67, %s68
    %p72 = pneg %p66
    %p73 = scmp.eq.s32.totalorder %s10, 1
    %p74 = por %p72, %p73
    %p75 = scmp.ne.s32.totalorder %s67, %s70
    %p76 = scmp.eq.s32.totalorder %s10, 0
    %p77 = por %p75, %p76
    %p78 = scmp.ne.s32.totalorder %s67, %s70
    %p79 = scmp.eq.s32.totalorder %s15, 1
    %p80 = por %p78, %p79
    %p81 = scmp.ne.s32.totalorder %s70, %s71
    %p82 = scmp.eq.s32.totalorder %s15, 0
    %p83 = por %p81, %p82
    %p84 = scmp.ne.s32.totalorder %s70, %s71
    %p85 = scmp.eq.s32.totalorder %s16, 1
    %p86 = por %p84, %p85
    %p88 = scmp.ne.s32.totalorder %s71, %s87
    %p89 = scmp.eq.s32.totalorder %s16, 0
    %p90 = por %p88, %p89
    %s91 = ssub.s32 %s10, %s17
    %p92 = scmp.eq.s32.totalorder %s91, 0
    %s94 = sadd.s32 %s93, 1
    %s95 = scalar_select %p92, %s93, %s94
    %p98 = pneg %p92
    %p99 = scmp.eq.s32.totalorder %s10, 1
    %p100 = por %p98, %p99
    %p101 = scmp.ne.s32.totalorder %s93, %s96
    %p102 = scmp.eq.s32.totalorder %s10, 0
    %p103 = por %p101, %p102
    %p104 = scmp.ne.s32.totalorder %s93, %s96
    %p105 = scmp.eq.s32.totalorder %s15, 1
    %p106 = por %p104, %p105
    %p107 = scmp.ne.s32.totalorder %s96, %s97
    %p108 = scmp.eq.s32.totalorder %s15, 0
    %p109 = por %p107, %p108
    %p110 = scmp.ne.s32.totalorder %s96, %s97
    %p111 = scmp.eq.s32.totalorder %s16, 1
    %p112 = por %p110, %p111
    %p114 = scmp.ne.s32.totalorder %s97, %s113
    %p115 = scmp.eq.s32.totalorder %s16, 0
    %p116 = por %p114, %p115
    %p117 = scmp.le.s32.totalorder 1, %s10
    %p118 = scmp.lt.s32.totalorder %s10, 3
    %p119 = pnand %p117, %p118
    %p120 = pneg %p119
    // Predicated region
    $region9: #{residual_block.3} parent=5 // pred_check
      _
    $region10: #{residual_block.3} parent=5 // pred_check_branch
      %122 = sbr.rel (%p119) target = $region12
    $region11: #{residual_block.3} parent=5 // pred_region
      %s123 = ssub.s32 %s10, 1
      // Predicated region
      $region13: #{residual_block.3} parent=11 // pred_check
        %p124 = pneg %p57
      $region14: #{residual_block.3} parent=11 // pred_check_branch
        %126 = sbr.rel (%p124) target = $region16
      $region15: #{residual_block.3} parent=11 // pred_region
        _
      $region16: #{residual_block.3} parent=11 // pred_fallthru
        _
    $region12: #{residual_block.3} parent=5 // pred_fallthru
      _
    %p127 = scmp.lt.s32.totalorder %s10, 2
    // Predicated region
    $region17: #{residual_block.3} parent=5 // pred_check
      %p128 = pneg %p127
    $region18: #{residual_block.3} parent=5 // pred_check_branch
      %130 = sbr.rel (%p128) target = $region20
    $region19: #{residual_block.3} parent=5 // pred_region
      // Predicated region
      $region21: #{residual_block.3} parent=19 // pred_check
        %p131 = pneg %p30
      $region22: #{residual_block.3} parent=19 // pred_check_branch
        %133 = sbr.rel (%p131) target = $region24
      $region23: #{residual_block.3} parent=19 // pred_region
        %p134 = scmp.lt.s32.totalorder %s10, 1
        %s135 = scalar_select %p134, %s10, 1
        %s136 = smul.addr %s135, 32
        %s137 = smul.addr %s136, 8
        %s138 = scalar_lea.vmem %s0, %s137
      $region24: #{residual_block.3} parent=19 // pred_fallthru
        _
    $region20: #{residual_block.3} parent=5 // pred_fallthru
      _
    %p139 = scmp.le.s32.totalorder 1, %s10
    %p140 = scmp.lt.s32.totalorder %s10, 3
    %p141 = pnand %p139, %p140
    %p142 = pneg %p141
    // Predicated region
    $region25: #{residual_block.3} parent=5 // pred_check
      _
    $region26: #{residual_block.3} parent=5 // pred_check_branch
      %144 = sbr.rel (%p141) target = $region28
    $region27: #{residual_block.3} parent=5 // pred_region
      %s145 = ssub.s32 %s10, 1
      %p146 = scmp.lt.s32.totalorder %s15, 1
      %s147 = scalar_select %p146, %s15, 1
      %s148 = smul.addr %s147, 32
      %s149 = smul.addr %s148, 8
      %s150 = scalar_lea.vmem %s0, %s149
      %p151 = pneg %p36
      %p152 = pneg %p33
      %p153 = pneg %p57
      %p154 = pneg %p54
      %p155 = pneg %p83
      %p156 = pneg %p80
      %p157 = scmp.lt.s32.totalorder %s15, 1
      %s158 = scalar_select %p157, %s15, 1
      %s159 = smul.addr %s158, 4
      %s160 = smul.addr %s159, 8
      %s161 = scalar_lea.vmem %s2, %s160
      %p162 = pneg %p109
      %p163 = pneg %p106
      %p164 = scmp.lt.s32.totalorder %s15, 1
      %s165 = scalar_select %p164, %s15, 1
      %s166 = smul.addr %s165, 2
      %s167 = scalar_lea.vmem %s3, %s166
      %p168 = scmp.lt.s32.totalorder %s15, 1
      %s169 = scalar_select %p168, %s15, 1
      %s170 = smul.addr %s169, 32
      %s171 = smul.addr %s170, 8
      %s172 = scalar_lea.vmem %s0, %s171
      %p173 = scmp.lt.s32.totalorder %s15, 1
      %s174 = scalar_select %p173, %s15, 1
      %s175 = smul.addr %s174, 4
      %s176 = smul.addr %s175, 8
      %s177 = scalar_lea.vmem %s2, %s176
      %p178 = scmp.lt.s32.totalorder %s15, 1
      %s179 = scalar_select %p178, %s15, 1
      %s180 = smul.addr %s179, 2
      %s181 = scalar_lea.vmem %s3, %s180
      %vm182 = vcmask 130048
      %183 = vst.msk [vmem:[#allocation2] sm:$0xff] %vm182, 0.0
      %184 = vst.msk [vmem:[#allocation2 + $0x8] sm:$0xff] %vm182, 0.0
      %vm185 = vcmask 123904
      %186 = vst.msk [vmem:[#allocation2 + $0x10] sm:$0x3] %vm185, 0.0
      %s187 = scalar_lea.vmem [#allocation2], 408
      %188 = vst.msk [vmem:[%s187] sm:$0xff] %vm182, 0.0
      %189 = vst.msk [vmem:[%s187 + $0x8] sm:$0xff] %vm182, 0.0
      %190 = vst.msk [vmem:[%s187 + $0x10] sm:$0x3] %vm185, 0.0
      %vm191 = vcmask 122880
      %192 = vst.msk [vmem:[#allocation2] sm:$0x1] %vm191, 0.0
      %193 = vst.msk [vmem:[#allocation2 + $0x18] sm:$0x1] %vm191, 0.0
      %194 = vst.msk [vmem:[#allocation2 + $0x30] sm:$0x1] %vm191, 0.0
      %195 = vst.msk [vmem:[#allocation2 + $0x48] sm:$0x1] %vm191, 0.0
      %196 = vst.msk [vmem:[#allocation2 + $0x60] sm:$0x1] %vm191, 0.0
      %197 = vst.msk [vmem:[#allocation2 + $0x78] sm:$0x1] %vm191, 0.0
      %198 = vst.msk [vmem:[#allocation2 + $0x90] sm:$0x1] %vm191, 0.0
      %199 = vst.msk [vmem:[#allocation2 + $0xa8] sm:$0x1] %vm191, 0.0
      %200 = vst.msk [vmem:[#allocation2 + $0xc0] sm:$0x1] %vm191, 0.0
      %201 = vst.msk [vmem:[#allocation2 + $0xd8] sm:$0x1] %vm191, 0.0
      %202 = vst.msk [vmem:[#allocation2 + $0xf0] sm:$0x1] %vm191, 0.0
      %203 = vst.msk [vmem:[#allocation2 + $0x108] sm:$0x1] %vm191, 0.0
      %204 = vst.msk [vmem:[#allocation2 + $0x120] sm:$0x1] %vm191, 0.0
      %205 = vst.msk [vmem:[#allocation2 + $0x138] sm:$0x1] %vm191, 0.0
      %206 = vst.msk [vmem:[#allocation2 + $0x150] sm:$0x1] %vm191, 0.0
      %207 = vst.msk [vmem:[#allocation2 + $0x168] sm:$0x1] %vm191, 0.0
      %208 = vst.msk [vmem:[#allocation2 + $0x180] sm:$0x1] %vm191, 0.0
      %209 = vst.msk [vmem:[#allocation2 + $0x198] sm:$0x1] %vm191, 0.0
      %210 = vst.msk [vmem:[#allocation2 + $0x11] sm:$0x1] %vm191, 0.0
      %211 = vst.msk [vmem:[#allocation2 + $0x29] sm:$0x1] %vm191, 0.0
      %212 = vst.msk [vmem:[#allocation2 + $0x41] sm:$0x1] %vm191, 0.0
      %213 = vst.msk [vmem:[#allocation2 + $0x59] sm:$0x1] %vm191, 0.0
      %214 = vst.msk [vmem:[#allocation2 + $0x71] sm:$0x1] %vm191, 0.0
      %215 = vst.msk [vmem:[#allocation2 + $0x89] sm:$0x1] %vm191, 0.0
      %216 = vst.msk [vmem:[#allocation2 + $0xa1] sm:$0x1] %vm191, 0.0
      %217 = vst.msk [vmem:[#allocation2 + $0xb9] sm:$0x1] %vm191, 0.0
      %218 = vst.msk [vmem:[#allocation2 + $0xd1] sm:$0x1] %vm191, 0.0
      %219 = vst.msk [vmem:[#allocation2 + $0xe9] sm:$0x1] %vm191, 0.0
      %220 = vst.msk [vmem:[#allocation2 + $0x101] sm:$0x1] %vm191, 0.0
      %221 = vst.msk [vmem:[#allocation2 + $0x119] sm:$0x1] %vm191, 0.0
      %222 = vst.msk [vmem:[#allocation2 + $0x131] sm:$0x1] %vm191, 0.0
      %223 = vst.msk [vmem:[#allocation2 + $0x149] sm:$0x1] %vm191, 0.0
      %224 = vst.msk [vmem:[#allocation2 + $0x161] sm:$0x1] %vm191, 0.0
      %225 = vst.msk [vmem:[#allocation2 + $0x179] sm:$0x1] %vm191, 0.0
      %226 = vst.msk [vmem:[#allocation2 + $0x191] sm:$0x1] %vm191, 0.0
      %227 = vst.msk [vmem:[#allocation2 + $0x1a9] sm:$0x1] %vm191, 0.0
      %v228 = vld [vmem:[%s172] sm:$0xff]
      %v229 = vld [vmem:[%s172 + $0x8] sm:$0xff]
      %v230 = vld [vmem:[%s172 + $0x10] sm:$0xff]
      %v231 = vld [vmem:[%s172 + $0x18] sm:$0xff]
      %v232 = vld [vmem:[%s172 + $0x20] sm:$0xff]
      %v233 = vld [vmem:[%s172 + $0x28] sm:$0xff]
      %v234 = vld [vmem:[%s172 + $0x30] sm:$0xff]
      %v235 = vld [vmem:[%s172 + $0x38] sm:$0xff]
      %v236 = vld [vmem:[%s172 + $0x40] sm:$0xff]
      %v237 = vld [vmem:[%s172 + $0x48] sm:$0xff]
      %v238 = vld [vmem:[%s172 + $0x50] sm:$0xff]
      %v239 = vld [vmem:[%s172 + $0x58] sm:$0xff]
      %v240 = vld [vmem:[%s172 + $0x60] sm:$0xff]
      %v241 = vld [vmem:[%s172 + $0x68] sm:$0xff]
      %v242 = vld [vmem:[%s172 + $0x70] sm:$0xff]
      %v243 = vld [vmem:[%s172 + $0x78] sm:$0xff]
      %v244 = vld [vmem:[%s172 + $0x80] sm:$0xff]
      %v245 = vld [vmem:[%s172 + $0x88] sm:$0xff]
      %v246 = vld [vmem:[%s172 + $0x90] sm:$0xff]
      %v247 = vld [vmem:[%s172 + $0x98] sm:$0xff]
      %v248 = vld [vmem:[%s172 + $0xa0] sm:$0xff]
      %v249 = vld [vmem:[%s172 + $0xa8] sm:$0xff]
      %v250 = vld [vmem:[%s172 + $0xb0] sm:$0xff]
      %v251 = vld [vmem:[%s172 + $0xb8] sm:$0xff]
      %v252 = vld [vmem:[%s172 + $0xc0] sm:$0xff]
      %v253 = vld [vmem:[%s172 + $0xc8] sm:$0xff]
      %v254 = vld [vmem:[%s172 + $0xd0] sm:$0xff]
      %v255 = vld [vmem:[%s172 + $0xd8] sm:$0xff]
      %v256 = vld [vmem:[%s172 + $0xe0] sm:$0xff]
      %v257 = vld [vmem:[%s172 + $0xe8] sm:$0xff]
      %v258 = vld [vmem:[%s172 + $0xf0] sm:$0xff]
      %v259 = vld [vmem:[%s172 + $0xf8] sm:$0xff]
      %s260 = scalar_lea.vmem [#allocation2], 24
      %261 = vst.msk [vmem:[%s260 + $0x1] sm:$0xff] %vm182, %v228
      %262 = vst.msk [vmem:[%s260 + $0x9] sm:$0xff] %vm182, %v229
      %263 = vst.msk [vmem:[%s260 + $0x19] sm:$0xff] %vm182, %v230
      %264 = vst.msk [vmem:[%s260 + $0x21] sm:$0xff] %vm182, %v231
      %265 = vst.msk [vmem:[%s260 + $0x31] sm:$0xff] %vm182, %v232
      %266 = vst.msk [vmem:[%s260 + $0x39] sm:$0xff] %vm182, %v233
      %267 = vst.msk [vmem:[%s260 + $0x49] sm:$0xff] %vm182, %v234
      %268 = vst.msk [vmem:[%s260 + $0x51] sm:$0xff] %vm182, %v235
      %269 = vst.msk [vmem:[%s260 + $0x61] sm:$0xff] %vm182, %v236
      %270 = vst.msk [vmem:[%s260 + $0x69] sm:$0xff] %vm182, %v237
      %271 = vst.msk [vmem:[%s260 + $0x79] sm:$0xff] %vm182, %v238
      %272 = vst.msk [vmem:[%s260 + $0x81] sm:$0xff] %vm182, %v239
      %273 = vst.msk [vmem:[%s260 + $0x91] sm:$0xff] %vm182, %v240
      %274 = vst.msk [vmem:[%s260 + $0x99] sm:$0xff] %vm182, %v241
      %275 = vst.msk [vmem:[%s260 + $0xa9] sm:$0xff] %vm182, %v242
      %276 = vst.msk [vmem:[%s260 + $0xb1] sm:$0xff] %vm182, %v243
      %277 = vst.msk [vmem:[%s260 + $0xc1] sm:$0xff] %vm182, %v244
      %278 = vst.msk [vmem:[%s260 + $0xc9] sm:$0xff] %vm182, %v245
      %279 = vst.msk [vmem:[%s260 + $0xd9] sm:$0xff] %vm182, %v246
      %280 = vst.msk [vmem:[%s260 + $0xe1] sm:$0xff] %vm182, %v247
      %281 = vst.msk [vmem:[%s260 + $0xf1] sm:$0xff] %vm182, %v248
      %282 = vst.msk [vmem:[%s260 + $0xf9] sm:$0xff] %vm182, %v249
      %283 = vst.msk [vmem:[%s260 + $0x109] sm:$0xff] %vm182, %v250
      %284 = vst.msk [vmem:[%s260 + $0x111] sm:$0xff] %vm182, %v251
      %285 = vst.msk [vmem:[%s260 + $0x121] sm:$0xff] %vm182, %v252
      %286 = vst.msk [vmem:[%s260 + $0x129] sm:$0xff] %vm182, %v253
      %287 = vst.msk [vmem:[%s260 + $0x139] sm:$0xff] %vm182, %v254
      %288 = vst.msk [vmem:[%s260 + $0x141] sm:$0xff] %vm182, %v255
      %289 = vst.msk [vmem:[%s260 + $0x151] sm:$0xff] %vm182, %v256
      %290 = vst.msk [vmem:[%s260 + $0x159] sm:$0xff] %vm182, %v257
      %291 = vst.msk [vmem:[%s260 + $0x169] sm:$0xff] %vm182, %v258
      %292 = vst.msk [vmem:[%s260 + $0x171] sm:$0xff] %vm182, %v259
      %v293 = vld [vmem:[#allocation2] sm:$0xff]
      %v294 = vld [vmem:[#allocation2 + $0x8] sm:$0xff]
      %v295 = vld [vmem:[#allocation2 + $0x10] sm:$0x3]
      %v296 = vld [vmem:[#allocation2 + $0x18] sm:$0xff]
      %v297 = vld [vmem:[#allocation2 + $0x20] sm:$0xff]
      %v298 = vld [vmem:[#allocation2 + $0x28] sm:$0x3]
      %v299 = vld [vmem:[#allocation2 + $0x30] sm:$0xff]
      %v300 = vld [vmem:[#allocation2 + $0x38] sm:$0xff]
      %v301 = vld [vmem:[#allocation2 + $0x40] sm:$0x3]
      %v302 = vld [vmem:[#allocation2 + $0x48] sm:$0xff]
      %v303 = vld [vmem:[#allocation2 + $0x50] sm:$0xff]
      %v304 = vld [vmem:[#allocation2 + $0x58] sm:$0x3]
      %v305 = vld [vmem:[#allocation2 + $0x60] sm:$0xff]
      %v306 = vld [vmem:[#allocation2 + $0x68] sm:$0xff]
      %v307 = vld [vmem:[#allocation2 + $0x70] sm:$0x3]
      %v308 = vld [vmem:[#allocation2 + $0x78] sm:$0xff]
      %v309 = vld [vmem:[#allocation2 + $0x80] sm:$0xff]
      %v310 = vld [vmem:[#allocation2 + $0x88] sm:$0x3]
      %v311 = vld [vmem:[#allocation2 + $0x90] sm:$0xff]
      %v312 = vld [vmem:[#allocation2 + $0x98] sm:$0xff]
      %v313 = vld [vmem:[#allocation2 + $0xa0] sm:$0x3]
      %v314 = vld [vmem:[#allocation2 + $0xa8] sm:$0xff]
      %v315 = vld [vmem:[#allocation2 + $0xb0] sm:$0xff]
      %v316 = vld [vmem:[#allocation2 + $0xb8] sm:$0x3]
      %v317 = vld [vmem:[#allocation2 + $0xc0] sm:$0xff]
      %v318 = vld [vmem:[#allocation2 + $0xc8] sm:$0xff]
      %v319 = vld [vmem:[#allocation2 + $0xd0] sm:$0x3]
      %v320 = vld [vmem:[#allocation2 + $0xd8] sm:$0xff]
      %v321 = vld [vmem:[#allocation2 + $0xe0] sm:$0xff]
      %v322 = vld [vmem:[#allocation2 + $0xe8] sm:$0x3]
      %v323 = vld [vmem:[#allocation2 + $0xf0] sm:$0xff]
      %v324 = vld [vmem:[#allocation2 + $0xf8] sm:$0xff]
      %v325 = vld [vmem:[#allocation2 + $0x100] sm:$0x3]
      %v326 = vld [vmem:[#allocation2 + $0x108] sm:$0xff]
      %v327 = vld [vmem:[#allocation2 + $0x110] sm:$0xff]
      %v328 = vld [vmem:[#allocation2 + $0x118] sm:$0x3]
      %v329 = vld [vmem:[#allocation2 + $0x120] sm:$0xff]
      %v330 = vld [vmem:[#allocation2 + $0x128] sm:$0xff]
      %v331 = vld [vmem:[#allocation2 + $0x130] sm:$0x3]
      %v332 = vld [vmem:[#allocation2 + $0x138] sm:$0xff]
      %v333 = vld [vmem:[#allocation2 + $0x140] sm:$0xff]
      %v334 = vld [vmem:[#allocation2 + $0x148] sm:$0x3]
      %v335 = vld [vmem:[#allocation2 + $0x150] sm:$0xff]
      %v336 = vld [vmem:[#allocation2 + $0x158] sm:$0xff]
      %v337 = vld [vmem:[#allocation2 + $0x160] sm:$0x3]
      %v338 = vld [vmem:[#allocation2 + $0x168] sm:$0xff]
      %v339 = vld [vmem:[#allocation2 + $0x170] sm:$0xff]
      %v340 = vld [vmem:[#allocation2 + $0x178] sm:$0x3]
      %v341 = vld [vmem:[#allocation2 + $0x180] sm:$0xff]
      %v342 = vld [vmem:[#allocation2 + $0x188] sm:$0xff]
      %v343 = vld [vmem:[#allocation2 + $0x190] sm:$0x3]
      %v344 = vld [vmem:[#allocation2 + $0x198] sm:$0xff]
      %v345 = vld [vmem:[#allocation2 + $0x1a0] sm:$0xff]
      %v346 = vld [vmem:[#allocation2 + $0x1a8] sm:$0x3]
      %vm395 = vcmask 1046528
      %v396 = vrot.slane %v293, 1
      %v397 = vrot.slane %v294, 1
      %v398 = vsel %vm395, %v396, %v397
      %v399 = vrot.slane %v295, 1
      %v400 = vsel %vm395, %v397, %v399
      %v401 = vrot.slane %v296, 1
      %v402 = vrot.slane %v297, 1
      %v403 = vsel %vm395, %v401, %v402
      %v404 = vrot.slane %v298, 1
      %v405 = vsel %vm395, %v402, %v404
      %v406 = vrot.slane %v299, 1
      %v407 = vrot.slane %v300, 1
      %v408 = vsel %vm395, %v406, %v407
      %v409 = vrot.slane %v301, 1
      %v410 = vsel %vm395, %v407, %v409
      %v411 = vrot.slane %v302, 1
      %v412 = vrot.slane %v303, 1
      %v413 = vsel %vm395, %v411, %v412
      %v414 = vrot.slane %v304, 1
      %v415 = vsel %vm395, %v412, %v414
      %v416 = vrot.slane %v305, 1
      %v417 = vrot.slane %v306, 1
      %v418 = vsel %vm395, %v416, %v417
      %v419 = vrot.slane %v307, 1
      %v420 = vsel %vm395, %v417, %v419
      %v421 = vrot.slane %v308, 1
      %v422 = vrot.slane %v309, 1
      %v423 = vsel %vm395, %v421, %v422
      %v424 = vrot.slane %v310, 1
      %v425 = vsel %vm395, %v422, %v424
      %v426 = vrot.slane %v311, 1
      %v427 = vrot.slane %v312, 1
      %v428 = vsel %vm395, %v426, %v427
      %v429 = vrot.slane %v313, 1
      %v430 = vsel %vm395, %v427, %v429
      %v431 = vrot.slane %v314, 1
      %v432 = vrot.slane %v315, 1
      %v433 = vsel %vm395, %v431, %v432
      %v434 = vrot.slane %v316, 1
      %v435 = vsel %vm395, %v432, %v434
      %v436 = vrot.slane %v317, 1
      %v437 = vrot.slane %v318, 1
      %v438 = vsel %vm395, %v436, %v437
      %v439 = vrot.slane %v319, 1
      %v440 = vsel %vm395, %v437, %v439
      %v441 = vrot.slane %v320, 1
      %v442 = vrot.slane %v321, 1
      %v443 = vsel %vm395, %v441, %v442
      %v444 = vrot.slane %v322, 1
      %v445 = vsel %vm395, %v442, %v444
      %v446 = vrot.slane %v323, 1
      %v447 = vrot.slane %v324, 1
      %v448 = vsel %vm395, %v446, %v447
      %v449 = vrot.slane %v325, 1
      %v450 = vsel %vm395, %v447, %v449
      %v451 = vrot.slane %v326, 1
      %v452 = vrot.slane %v327, 1
      %v453 = vsel %vm395, %v451, %v452
      %v454 = vrot.slane %v328, 1
      %v455 = vsel %vm395, %v452, %v454
      %v456 = vrot.slane %v329, 1
      %v457 = vrot.slane %v330, 1
      %v458 = vsel %vm395, %v456, %v457
      %v459 = vrot.slane %v331, 1
      %v460 = vsel %vm395, %v457, %v459
      %v461 = vrot.slane %v332, 1
      %v462 = vrot.slane %v333, 1
      %v463 = vsel %vm395, %v461, %v462
      %v464 = vrot.slane %v334, 1
      %v465 = vsel %vm395, %v462, %v464
      %v466 = vrot.slane %v335, 1
      %v467 = vrot.slane %v336, 1
      %v468 = vsel %vm395, %v466, %v467
      %v469 = vrot.slane %v337, 1
      %v470 = vsel %vm395, %v467, %v469
      %v471 = vrot.slane %v338, 1
      %v472 = vrot.slane %v339, 1
      %v473 = vsel %vm395, %v471, %v472
      %v474 = vrot.slane %v340, 1
      %v475 = vsel %vm395, %v472, %v474
      %vm476 = vcmask 1045504
      %v477 = vrot.slane %v293, 2
      %v478 = vrot.slane %v294, 2
      %v479 = vsel %vm476, %v477, %v478
      %v480 = vrot.slane %v295, 2
      %v481 = vsel %vm476, %v478, %v480
      %v482 = vrot.slane %v296, 2
      %v483 = vrot.slane %v297, 2
      %v484 = vsel %vm476, %v482, %v483
      %v485 = vrot.slane %v298, 2
      %v486 = vsel %vm476, %v483, %v485
      %v487 = vrot.slane %v299, 2
      %v488 = vrot.slane %v300, 2
      %v489 = vsel %vm476, %v487, %v488
      %v490 = vrot.slane %v301, 2
      %v491 = vsel %vm476, %v488, %v490
      %v492 = vrot.slane %v302, 2
      %v493 = vrot.slane %v303, 2
      %v494 = vsel %vm476, %v492, %v493
      %v495 = vrot.slane %v304, 2
      %v496 = vsel %vm476, %v493, %v495
      %v497 = vrot.slane %v305, 2
      %v498 = vrot.slane %v306, 2
      %v499 = vsel %vm476, %v497, %v498
      %v500 = vrot.slane %v307, 2
      %v501 = vsel %vm476, %v498, %v500
      %v502 = vrot.slane %v308, 2
      %v503 = vrot.slane %v309, 2
      %v504 = vsel %vm476, %v502, %v503
      %v505 = vrot.slane %v310, 2
      %v506 = vsel %vm476, %v503, %v505
      %v507 = vrot.slane %v311, 2
      %v508 = vrot.slane %v312, 2
      %v509 = vsel %vm476, %v507, %v508
      %v510 = vrot.slane %v313, 2
      %v511 = vsel %vm476, %v508, %v510
      %v512 = vrot.slane %v314, 2
      %v513 = vrot.slane %v315, 2
      %v514 = vsel %vm476, %v512, %v513
      %v515 = vrot.slane %v316, 2
      %v516 = vsel %vm476, %v513, %v515
      %v517 = vrot.slane %v317, 2
      %v518 = vrot.slane %v318, 2
      %v519 = vsel %vm476, %v517, %v518
      %v520 = vrot.slane %v319, 2
      %v521 = vsel %vm476, %v518, %v520
      %v522 = vrot.slane %v320, 2
      %v523 = vrot.slane %v321, 2
      %v524 = vsel %vm476, %v522, %v523
      %v525 = vrot.slane %v322, 2
      %v526 = vsel %vm476, %v523, %v525
      %v527 = vrot.slane %v323, 2
      %v528 = vrot.slane %v324, 2
      %v529 = vsel %vm476, %v527, %v528
      %v530 = vrot.slane %v325, 2
      %v531 = vsel %vm476, %v528, %v530
      %v532 = vrot.slane %v326, 2
      %v533 = vrot.slane %v327, 2
      %v534 = vsel %vm476, %v532, %v533
      %v535 = vrot.slane %v328, 2
      %v536 = vsel %vm476, %v533, %v535
      %v537 = vrot.slane %v329, 2
      %v538 = vrot.slane %v330, 2
      %v539 = vsel %vm476, %v537, %v538
      %v540 = vrot.slane %v331, 2
      %v541 = vsel %vm476, %v538, %v540
      %v542 = vrot.slane %v332, 2
      %v543 = vrot.slane %v333, 2
      %v544 = vsel %vm476, %v542, %v543
      %v545 = vrot.slane %v334, 2
      %v546 = vsel %vm476, %v543, %v545
      %v547 = vrot.slane %v335, 2
      %v548 = vrot.slane %v336, 2
      %v549 = vsel %vm476, %v547, %v548
      %v550 = vrot.slane %v337, 2
      %v551 = vsel %vm476, %v548, %v550
      %v552 = vrot.slane %v338, 2
      %v553 = vrot.slane %v339, 2
      %v554 = vsel %vm476, %v552, %v553
      %v555 = vrot.slane %v340, 2
      %v556 = vsel %vm476, %v553, %v555
      %v560 = vrot.slane %v341, 1
      %v561 = vrot.slane %v342, 1
      %v562 = vsel %vm395, %v560, %v561
      %v563 = vrot.slane %v343, 1
      %v564 = vsel %vm395, %v561, %v563
      %v565 = vrot.slane %v341, 2
      %v566 = vrot.slane %v342, 2
      %v567 = vsel %vm476, %v565, %v566
      %v568 = vrot.slane %v343, 2
      %v569 = vsel %vm476, %v566, %v568
      %v573 = vrot.slane %v344, 1
      %v574 = vrot.slane %v345, 1
      %v575 = vsel %vm395, %v573, %v574
      %v576 = vrot.slane %v346, 1
      %v577 = vsel %vm395, %v574, %v576
      %v578 = vrot.slane %v344, 2
      %v579 = vrot.slane %v345, 2
      %v580 = vsel %vm476, %v578, %v579
      %v581 = vrot.slane %v346, 2
      %v582 = vsel %vm476, %v579, %v581
      %583 = vrot.lane.b32.xlu0 %v398, 16
      %v584 = vpop.permute.xlu0 %583
      %585 = vrot.lane.b32.xlu0 %v400, 16
      %v586 = vpop.permute.xlu0 %585
      %587 = vrot.lane.b32.xlu0 %v403, 16
      %v588 = vpop.permute.xlu0 %587
      %589 = vrot.lane.b32.xlu0 %v405, 16
      %v590 = vpop.permute.xlu0 %589
      %591 = vrot.lane.b32.xlu0 %v408, 16
      %v592 = vpop.permute.xlu0 %591
      %593 = vrot.lane.b32.xlu0 %v410, 16
      %v594 = vpop.permute.xlu0 %593
      %595 = vrot.lane.b32.xlu0 %v413, 16
      %v596 = vpop.permute.xlu0 %595
      %597 = vrot.lane.b32.xlu0 %v415, 16
      %v598 = vpop.permute.xlu0 %597
      %599 = vrot.lane.b32.xlu0 %v418, 16
      %v600 = vpop.permute.xlu0 %599
      %601 = vrot.lane.b32.xlu0 %v420, 16
      %v602 = vpop.permute.xlu0 %601
      %603 = vrot.lane.b32.xlu0 %v423, 16
      %v604 = vpop.permute.xlu0 %603
      %605 = vrot.lane.b32.xlu0 %v425, 16
      %v606 = vpop.permute.xlu0 %605
      %607 = vrot.lane.b32.xlu0 %v428, 16
      %v608 = vpop.permute.xlu0 %607
      %609 = vrot.lane.b32.xlu0 %v430, 16
      %v610 = vpop.permute.xlu0 %609
      %611 = vrot.lane.b32.xlu0 %v433, 16
      %v612 = vpop.permute.xlu0 %611
      %613 = vrot.lane.b32.xlu0 %v435, 16
      %v614 = vpop.permute.xlu0 %613
      %615 = vrot.lane.b32.xlu0 %v438, 16
      %v616 = vpop.permute.xlu0 %615
      %617 = vrot.lane.b32.xlu0 %v440, 16
      %v618 = vpop.permute.xlu0 %617
      %619 = vrot.lane.b32.xlu0 %v443, 16
      %v620 = vpop.permute.xlu0 %619
      %621 = vrot.lane.b32.xlu0 %v445, 16
      %v622 = vpop.permute.xlu0 %621
      %623 = vrot.lane.b32.xlu0 %v448, 16
      %v624 = vpop.permute.xlu0 %623
      %625 = vrot.lane.b32.xlu0 %v450, 16
      %v626 = vpop.permute.xlu0 %625
      %627 = vrot.lane.b32.xlu0 %v453, 16
      %v628 = vpop.permute.xlu0 %627
      %629 = vrot.lane.b32.xlu0 %v455, 16
      %v630 = vpop.permute.xlu0 %629
      %631 = vrot.lane.b32.xlu0 %v458, 16
      %v632 = vpop.permute.xlu0 %631
      %633 = vrot.lane.b32.xlu0 %v460, 16
      %v634 = vpop.permute.xlu0 %633
      %635 = vrot.lane.b32.xlu0 %v463, 16
      %v636 = vpop.permute.xlu0 %635
      %637 = vrot.lane.b32.xlu0 %v465, 16
      %v638 = vpop.permute.xlu0 %637
      %639 = vrot.lane.b32.xlu0 %v468, 16
      %v640 = vpop.permute.xlu0 %639
      %641 = vrot.lane.b32.xlu0 %v470, 16
      %v642 = vpop.permute.xlu0 %641
      %643 = vrot.lane.b32.xlu0 %v473, 16
      %v644 = vpop.permute.xlu0 %643
      %645 = vrot.lane.b32.xlu0 %v475, 16
      %v646 = vpop.permute.xlu0 %645
      %679 = vrot.lane.b32.xlu0 %v479, 32
      %v680 = vpop.permute.xlu0 %679
      %681 = vrot.lane.b32.xlu0 %v481, 32
      %v682 = vpop.permute.xlu0 %681
      %683 = vrot.lane.b32.xlu0 %v484, 32
      %v684 = vpop.permute.xlu0 %683
      %685 = vrot.lane.b32.xlu0 %v486, 32
      %v686 = vpop.permute.xlu0 %685
      %687 = vrot.lane.b32.xlu0 %v489, 32
      %v688 = vpop.permute.xlu0 %687
      %689 = vrot.lane.b32.xlu0 %v491, 32
      %v690 = vpop.permute.xlu0 %689
      %691 = vrot.lane.b32.xlu0 %v494, 32
      %v692 = vpop.permute.xlu0 %691
      %693 = vrot.lane.b32.xlu0 %v496, 32
      %v694 = vpop.permute.xlu0 %693
      %695 = vrot.lane.b32.xlu0 %v499, 32
      %v696 = vpop.permute.xlu0 %695
      %697 = vrot.lane.b32.xlu0 %v501, 32
      %v698 = vpop.permute.xlu0 %697
      %699 = vrot.lane.b32.xlu0 %v504, 32
      %v700 = vpop.permute.xlu0 %699
      %701 = vrot.lane.b32.xlu0 %v506, 32
      %v702 = vpop.permute.xlu0 %701
      %703 = vrot.lane.b32.xlu0 %v509, 32
      %v704 = vpop.permute.xlu0 %703
      %705 = vrot.lane.b32.xlu0 %v511, 32
      %v706 = vpop.permute.xlu0 %705
      %707 = vrot.lane.b32.xlu0 %v514, 32
      %v708 = vpop.permute.xlu0 %707
      %709 = vrot.lane.b32.xlu0 %v516, 32
      %v710 = vpop.permute.xlu0 %709
      %711 = vrot.lane.b32.xlu0 %v519, 32
      %v712 = vpop.permute.xlu0 %711
      %713 = vrot.lane.b32.xlu0 %v521, 32
      %v714 = vpop.permute.xlu0 %713
      %715 = vrot.lane.b32.xlu0 %v524, 32
      %v716 = vpop.permute.xlu0 %715
      %717 = vrot.lane.b32.xlu0 %v526, 32
      %v718 = vpop.permute.xlu0 %717
      %719 = vrot.lane.b32.xlu0 %v529, 32
      %v720 = vpop.permute.xlu0 %719
      %721 = vrot.lane.b32.xlu0 %v531, 32
      %v722 = vpop.permute.xlu0 %721
      %723 = vrot.lane.b32.xlu0 %v534, 32
      %v724 = vpop.permute.xlu0 %723
      %725 = vrot.lane.b32.xlu0 %v536, 32
      %v726 = vpop.permute.xlu0 %725
      %727 = vrot.lane.b32.xlu0 %v539, 32
      %v728 = vpop.permute.xlu0 %727
      %729 = vrot.lane.b32.xlu0 %v541, 32
      %v730 = vpop.permute.xlu0 %729
      %731 = vrot.lane.b32.xlu0 %v544, 32
      %v732 = vpop.permute.xlu0 %731
      %733 = vrot.lane.b32.xlu0 %v546, 32
      %v734 = vpop.permute.xlu0 %733
      %735 = vrot.lane.b32.xlu0 %v549, 32
      %v736 = vpop.permute.xlu0 %735
      %737 = vrot.lane.b32.xlu0 %v551, 32
      %v738 = vpop.permute.xlu0 %737
      %739 = vrot.lane.b32.xlu0 %v554, 32
      %v740 = vpop.permute.xlu0 %739
      %741 = vrot.lane.b32.xlu0 %v556, 32
      %v742 = vpop.permute.xlu0 %741
      %775 = vrot.lane.b32.xlu0 %v296, 48
      %v776 = vpop.permute.xlu0 %775
      %777 = vrot.lane.b32.xlu0 %v297, 48
      %v778 = vpop.permute.xlu0 %777
      %779 = vrot.lane.b32.xlu0 %v299, 48
      %v780 = vpop.permute.xlu0 %779
      %781 = vrot.lane.b32.xlu0 %v300, 48
      %v782 = vpop.permute.xlu0 %781
      %783 = vrot.lane.b32.xlu0 %v302, 48
      %v784 = vpop.permute.xlu0 %783
      %785 = vrot.lane.b32.xlu0 %v303, 48
      %v786 = vpop.permute.xlu0 %785
      %787 = vrot.lane.b32.xlu0 %v305, 48
      %v788 = vpop.permute.xlu0 %787
      %789 = vrot.lane.b32.xlu0 %v306, 48
      %v790 = vpop.permute.xlu0 %789
      %791 = vrot.lane.b32.xlu0 %v308, 48
      %v792 = vpop.permute.xlu0 %791
      %793 = vrot.lane.b32.xlu0 %v309, 48
      %v794 = vpop.permute.xlu0 %793
      %795 = vrot.lane.b32.xlu0 %v311, 48
      %v796 = vpop.permute.xlu0 %795
      %797 = vrot.lane.b32.xlu0 %v312, 48
      %v798 = vpop.permute.xlu0 %797
      %799 = vrot.lane.b32.xlu0 %v314, 48
      %v800 = vpop.permute.xlu0 %799
      %801 = vrot.lane.b32.xlu0 %v315, 48
      %v802 = vpop.permute.xlu0 %801
      %803 = vrot.lane.b32.xlu0 %v317, 48
      %v804 = vpop.permute.xlu0 %803
      %805 = vrot.lane.b32.xlu0 %v318, 48
      %v806 = vpop.permute.xlu0 %805
      %807 = vrot.lane.b32.xlu0 %v320, 48
      %v808 = vpop.permute.xlu0 %807
      %809 = vrot.lane.b32.xlu0 %v321, 48
      %v810 = vpop.permute.xlu0 %809
      %811 = vrot.lane.b32.xlu0 %v323, 48
      %v812 = vpop.permute.xlu0 %811
      %813 = vrot.lane.b32.xlu0 %v324, 48
      %v814 = vpop.permute.xlu0 %813
      %815 = vrot.lane.b32.xlu0 %v326, 48
      %v816 = vpop.permute.xlu0 %815
      %817 = vrot.lane.b32.xlu0 %v327, 48
      %v818 = vpop.permute.xlu0 %817
      %819 = vrot.lane.b32.xlu0 %v329, 48
      %v820 = vpop.permute.xlu0 %819
      %821 = vrot.lane.b32.xlu0 %v330, 48
      %v822 = vpop.permute.xlu0 %821
      %823 = vrot.lane.b32.xlu0 %v332, 48
      %v824 = vpop.permute.xlu0 %823
      %825 = vrot.lane.b32.xlu0 %v333, 48
      %v826 = vpop.permute.xlu0 %825
      %827 = vrot.lane.b32.xlu0 %v335, 48
      %v828 = vpop.permute.xlu0 %827
      %829 = vrot.lane.b32.xlu0 %v336, 48
      %v830 = vpop.permute.xlu0 %829
      %831 = vrot.lane.b32.xlu0 %v338, 48
      %v832 = vpop.permute.xlu0 %831
      %833 = vrot.lane.b32.xlu0 %v339, 48
      %v834 = vpop.permute.xlu0 %833
      %835 = vrot.lane.b32.xlu0 %v341, 48
      %v836 = vpop.permute.xlu0 %835
      %837 = vrot.lane.b32.xlu0 %v342, 48
      %v838 = vpop.permute.xlu0 %837
      %871 = vrot.lane.b32.xlu0 %v403, 64
      %v872 = vpop.permute.xlu0 %871
      %873 = vrot.lane.b32.xlu0 %v405, 64
      %v874 = vpop.permute.xlu0 %873
      %875 = vrot.lane.b32.xlu0 %v408, 64
      %v876 = vpop.permute.xlu0 %875
      %877 = vrot.lane.b32.xlu0 %v410, 64
      %v878 = vpop.permute.xlu0 %877
      %879 = vrot.lane.b32.xlu0 %v413, 64
      %v880 = vpop.permute.xlu0 %879
      %881 = vrot.lane.b32.xlu0 %v415, 64
      %v882 = vpop.permute.xlu0 %881
      %883 = vrot.lane.b32.xlu0 %v418, 64
      %v884 = vpop.permute.xlu0 %883
      %885 = vrot.lane.b32.xlu0 %v420, 64
      %v886 = vpop.permute.xlu0 %885
      %887 = vrot.lane.b32.xlu0 %v423, 64
      %v888 = vpop.permute.xlu0 %887
      %889 = vrot.lane.b32.xlu0 %v425, 64
      %v890 = vpop.permute.xlu0 %889
      %891 = vrot.lane.b32.xlu0 %v428, 64
      %v892 = vpop.permute.xlu0 %891
      %893 = vrot.lane.b32.xlu0 %v430, 64
      %v894 = vpop.permute.xlu0 %893
      %895 = vrot.lane.b32.xlu0 %v433, 64
      %v896 = vpop.permute.xlu0 %895
      %897 = vrot.lane.b32.xlu0 %v435, 64
      %v898 = vpop.permute.xlu0 %897
      %899 = vrot.lane.b32.xlu0 %v438, 64
      %v900 = vpop.permute.xlu0 %899
      %901 = vrot.lane.b32.xlu0 %v440, 64
      %v902 = vpop.permute.xlu0 %901
      %903 = vrot.lane.b32.xlu0 %v443, 64
      %v904 = vpop.permute.xlu0 %903
      %905 = vrot.lane.b32.xlu0 %v445, 64
      %v906 = vpop.permute.xlu0 %905
      %907 = vrot.lane.b32.xlu0 %v448, 64
      %v908 = vpop.permute.xlu0 %907
      %909 = vrot.lane.b32.xlu0 %v450, 64
      %v910 = vpop.permute.xlu0 %909
      %911 = vrot.lane.b32.xlu0 %v453, 64
      %v912 = vpop.permute.xlu0 %911
      %913 = vrot.lane.b32.xlu0 %v455, 64
      %v914 = vpop.permute.xlu0 %913
      %915 = vrot.lane.b32.xlu0 %v458, 64
      %v916 = vpop.permute.xlu0 %915
      %917 = vrot.lane.b32.xlu0 %v460, 64
      %v918 = vpop.permute.xlu0 %917
      %919 = vrot.lane.b32.xlu0 %v463, 64
      %v920 = vpop.permute.xlu0 %919
      %921 = vrot.lane.b32.xlu0 %v465, 64
      %v922 = vpop.permute.xlu0 %921
      %923 = vrot.lane.b32.xlu0 %v468, 64
      %v924 = vpop.permute.xlu0 %923
      %925 = vrot.lane.b32.xlu0 %v470, 64
      %v926 = vpop.permute.xlu0 %925
      %927 = vrot.lane.b32.xlu0 %v473, 64
      %v928 = vpop.permute.xlu0 %927
      %929 = vrot.lane.b32.xlu0 %v475, 64
      %v930 = vpop.permute.xlu0 %929
      %931 = vrot.lane.b32.xlu0 %v562, 64
      %v932 = vpop.permute.xlu0 %931
      %933 = vrot.lane.b32.xlu0 %v564, 64
      %v934 = vpop.permute.xlu0 %933
      %967 = vrot.lane.b32.xlu0 %v484, 80
      %v968 = vpop.permute.xlu0 %967
      %969 = vrot.lane.b32.xlu0 %v486, 80
      %v970 = vpop.permute.xlu0 %969
      %971 = vrot.lane.b32.xlu0 %v489, 80
      %v972 = vpop.permute.xlu0 %971
      %973 = vrot.lane.b32.xlu0 %v491, 80
      %v974 = vpop.permute.xlu0 %973
      %975 = vrot.lane.b32.xlu0 %v494, 80
      %v976 = vpop.permute.xlu0 %975
      %977 = vrot.lane.b32.xlu0 %v496, 80
      %v978 = vpop.permute.xlu0 %977
      %979 = vrot.lane.b32.xlu0 %v499, 80
      %v980 = vpop.permute.xlu0 %979
      %981 = vrot.lane.b32.xlu0 %v501, 80
      %v982 = vpop.permute.xlu0 %981
      %983 = vrot.lane.b32.xlu0 %v504, 80
      %v984 = vpop.permute.xlu0 %983
      %985 = vrot.lane.b32.xlu0 %v506, 80
      %v986 = vpop.permute.xlu0 %985
      %987 = vrot.lane.b32.xlu0 %v509, 80
      %v988 = vpop.permute.xlu0 %987
      %989 = vrot.lane.b32.xlu0 %v511, 80
      %v990 = vpop.permute.xlu0 %989
      %991 = vrot.lane.b32.xlu0 %v514, 80
      %v992 = vpop.permute.xlu0 %991
      %993 = vrot.lane.b32.xlu0 %v516, 80
      %v994 = vpop.permute.xlu0 %993
      %995 = vrot.lane.b32.xlu0 %v519, 80
      %v996 = vpop.permute.xlu0 %995
      %997 = vrot.lane.b32.xlu0 %v521, 80
      %v998 = vpop.permute.xlu0 %997
      %999 = vrot.lane.b32.xlu0 %v524, 80
      %v1000 = vpop.permute.xlu0 %999
      %1001 = vrot.lane.b32.xlu0 %v526, 80
      %v1002 = vpop.permute.xlu0 %1001
      %1003 = vrot.lane.b32.xlu0 %v529, 80
      %v1004 = vpop.permute.xlu0 %1003
      %1005 = vrot.lane.b32.xlu0 %v531, 80
      %v1006 = vpop.permute.xlu0 %1005
      %1007 = vrot.lane.b32.xlu0 %v534, 80
      %v1008 = vpop.permute.xlu0 %1007
      %1009 = vrot.lane.b32.xlu0 %v536, 80
      %v1010 = vpop.permute.xlu0 %1009
      %1011 = vrot.lane.b32.xlu0 %v539, 80
      %v1012 = vpop.permute.xlu0 %1011
      %1013 = vrot.lane.b32.xlu0 %v541, 80
      %v1014 = vpop.permute.xlu0 %1013
      %1015 = vrot.lane.b32.xlu0 %v544, 80
      %v1016 = vpop.permute.xlu0 %1015
      %1017 = vrot.lane.b32.xlu0 %v546, 80
      %v1018 = vpop.permute.xlu0 %1017
      %1019 = vrot.lane.b32.xlu0 %v549, 80
      %v1020 = vpop.permute.xlu0 %1019
      %1021 = vrot.lane.b32.xlu0 %v551, 80
      %v1022 = vpop.permute.xlu0 %1021
      %1023 = vrot.lane.b32.xlu0 %v554, 80
      %v1024 = vpop.permute.xlu0 %1023
      %1025 = vrot.lane.b32.xlu0 %v556, 80
      %v1026 = vpop.permute.xlu0 %1025
      %1027 = vrot.lane.b32.xlu0 %v567, 80
      %v1028 = vpop.permute.xlu0 %1027
      %1029 = vrot.lane.b32.xlu0 %v569, 80
      %v1030 = vpop.permute.xlu0 %1029
      %1063 = vrot.lane.b32.xlu0 %v299, 96
      %v1064 = vpop.permute.xlu0 %1063
      %1065 = vrot.lane.b32.xlu0 %v300, 96
      %v1066 = vpop.permute.xlu0 %1065
      %1067 = vrot.lane.b32.xlu0 %v302, 96
      %v1068 = vpop.permute.xlu0 %1067
      %1069 = vrot.lane.b32.xlu0 %v303, 96
      %v1070 = vpop.permute.xlu0 %1069
      %1071 = vrot.lane.b32.xlu0 %v305, 96
      %v1072 = vpop.permute.xlu0 %1071
      %1073 = vrot.lane.b32.xlu0 %v306, 96
      %v1074 = vpop.permute.xlu0 %1073
      %1075 = vrot.lane.b32.xlu0 %v308, 96
      %v1076 = vpop.permute.xlu0 %1075
      %1077 = vrot.lane.b32.xlu0 %v309, 96
      %v1078 = vpop.permute.xlu0 %1077
      %1079 = vrot.lane.b32.xlu0 %v311, 96
      %v1080 = vpop.permute.xlu0 %1079
      %1081 = vrot.lane.b32.xlu0 %v312, 96
      %v1082 = vpop.permute.xlu0 %1081
      %1083 = vrot.lane.b32.xlu0 %v314, 96
      %v1084 = vpop.permute.xlu0 %1083
      %1085 = vrot.lane.b32.xlu0 %v315, 96
      %v1086 = vpop.permute.xlu0 %1085
      %1087 = vrot.lane.b32.xlu0 %v317, 96
      %v1088 = vpop.permute.xlu0 %1087
      %1089 = vrot.lane.b32.xlu0 %v318, 96
      %v1090 = vpop.permute.xlu0 %1089
      %1091 = vrot.lane.b32.xlu0 %v320, 96
      %v1092 = vpop.permute.xlu0 %1091
      %1093 = vrot.lane.b32.xlu0 %v321, 96
      %v1094 = vpop.permute.xlu0 %1093
      %1095 = vrot.lane.b32.xlu0 %v323, 96
      %v1096 = vpop.permute.xlu0 %1095
      %1097 = vrot.lane.b32.xlu0 %v324, 96
      %v1098 = vpop.permute.xlu0 %1097
      %1099 = vrot.lane.b32.xlu0 %v326, 96
      %v1100 = vpop.permute.xlu0 %1099
      %1101 = vrot.lane.b32.xlu0 %v327, 96
      %v1102 = vpop.permute.xlu0 %1101
      %1103 = vrot.lane.b32.xlu0 %v329, 96
      %v1104 = vpop.permute.xlu0 %1103
      %1105 = vrot.lane.b32.xlu0 %v330, 96
      %v1106 = vpop.permute.xlu0 %1105
      %1107 = vrot.lane.b32.xlu0 %v332, 96
      %v1108 = vpop.permute.xlu0 %1107
      %1109 = vrot.lane.b32.xlu0 %v333, 96
      %v1110 = vpop.permute.xlu0 %1109
      %1111 = vrot.lane.b32.xlu0 %v335, 96
      %v1112 = vpop.permute.xlu0 %1111
      %1113 = vrot.lane.b32.xlu0 %v336, 96
      %v1114 = vpop.permute.xlu0 %1113
      %1115 = vrot.lane.b32.xlu0 %v338, 96
      %v1116 = vpop.permute.xlu0 %1115
      %1117 = vrot.lane.b32.xlu0 %v339, 96
      %v1118 = vpop.permute.xlu0 %1117
      %1119 = vrot.lane.b32.xlu0 %v341, 96
      %v1120 = vpop.permute.xlu0 %1119
      %1121 = vrot.lane.b32.xlu0 %v342, 96
      %v1122 = vpop.permute.xlu0 %1121
      %1123 = vrot.lane.b32.xlu0 %v344, 96
      %v1124 = vpop.permute.xlu0 %1123
      %1125 = vrot.lane.b32.xlu0 %v345, 96
      %v1126 = vpop.permute.xlu0 %1125
      %1159 = vrot.lane.b32.xlu0 %v408, 112
      %v1160 = vpop.permute.xlu0 %1159
      %1161 = vrot.lane.b32.xlu0 %v410, 112
      %v1162 = vpop.permute.xlu0 %1161
      %1163 = vrot.lane.b32.xlu0 %v413, 112
      %v1164 = vpop.permute.xlu0 %1163
      %1165 = vrot.lane.b32.xlu0 %v415, 112
      %v1166 = vpop.permute.xlu0 %1165
      %1167 = vrot.lane.b32.xlu0 %v418, 112
      %v1168 = vpop.permute.xlu0 %1167
      %1169 = vrot.lane.b32.xlu0 %v420, 112
      %v1170 = vpop.permute.xlu0 %1169
      %1171 = vrot.lane.b32.xlu0 %v423, 112
      %v1172 = vpop.permute.xlu0 %1171
      %1173 = vrot.lane.b32.xlu0 %v425, 112
      %v1174 = vpop.permute.xlu0 %1173
      %1175 = vrot.lane.b32.xlu0 %v428, 112
      %v1176 = vpop.permute.xlu0 %1175
      %1177 = vrot.lane.b32.xlu0 %v430, 112
      %v1178 = vpop.permute.xlu0 %1177
      %1179 = vrot.lane.b32.xlu0 %v433, 112
      %v1180 = vpop.permute.xlu0 %1179
      %1181 = vrot.lane.b32.xlu0 %v435, 112
      %v1182 = vpop.permute.xlu0 %1181
      %1183 = vrot.lane.b32.xlu0 %v438, 112
      %v1184 = vpop.permute.xlu0 %1183
      %1185 = vrot.lane.b32.xlu0 %v440, 112
      %v1186 = vpop.permute.xlu0 %1185
      %1187 = vrot.lane.b32.xlu0 %v443, 112
      %v1188 = vpop.permute.xlu0 %1187
      %1189 = vrot.lane.b32.xlu0 %v445, 112
      %v1190 = vpop.permute.xlu0 %1189
      %1191 = vrot.lane.b32.xlu0 %v448, 112
      %v1192 = vpop.permute.xlu0 %1191
      %1193 = vrot.lane.b32.xlu0 %v450, 112
      %v1194 = vpop.permute.xlu0 %1193
      %1195 = vrot.lane.b32.xlu0 %v453, 112
      %v1196 = vpop.permute.xlu0 %1195
      %1197 = vrot.lane.b32.xlu0 %v455, 112
      %v1198 = vpop.permute.xlu0 %1197
      %1199 = vrot.lane.b32.xlu0 %v458, 112
      %v1200 = vpop.permute.xlu0 %1199
      %1201 = vrot.lane.b32.xlu0 %v460, 112
      %v1202 = vpop.permute.xlu0 %1201
      %1203 = vrot.lane.b32.xlu0 %v463, 112
      %v1204 = vpop.permute.xlu0 %1203
      %1205 = vrot.lane.b32.xlu0 %v465, 112
      %v1206 = vpop.permute.xlu0 %1205
      %1207 = vrot.lane.b32.xlu0 %v468, 112
      %v1208 = vpop.permute.xlu0 %1207
      %1209 = vrot.lane.b32.xlu0 %v470, 112
      %v1210 = vpop.permute.xlu0 %1209
      %1211 = vrot.lane.b32.xlu0 %v473, 112
      %v1212 = vpop.permute.xlu0 %1211
      %1213 = vrot.lane.b32.xlu0 %v475, 112
      %v1214 = vpop.permute.xlu0 %1213
      %1215 = vrot.lane.b32.xlu0 %v562, 112
      %v1216 = vpop.permute.xlu0 %1215
      %1217 = vrot.lane.b32.xlu0 %v564, 112
      %v1218 = vpop.permute.xlu0 %1217
      %1219 = vrot.lane.b32.xlu0 %v575, 112
      %v1220 = vpop.permute.xlu0 %1219
      %1221 = vrot.lane.b32.xlu0 %v577, 112
      %v1222 = vpop.permute.xlu0 %1221
      %v1255 = vsel %vm182, %v293, %v584
      %v1256 = vsel %vm182, %v294, %v586
      %v1257 = vsel %vm182, %v296, %v588
      %v1258 = vsel %vm182, %v297, %v590
      %v1259 = vsel %vm182, %v299, %v592
      %v1260 = vsel %vm182, %v300, %v594
      %v1261 = vsel %vm182, %v302, %v596
      %v1262 = vsel %vm182, %v303, %v598
      %v1263 = vsel %vm182, %v305, %v600
      %v1264 = vsel %vm182, %v306, %v602
      %v1265 = vsel %vm182, %v308, %v604
      %v1266 = vsel %vm182, %v309, %v606
      %v1267 = vsel %vm182, %v311, %v608
      %v1268 = vsel %vm182, %v312, %v610
      %v1269 = vsel %vm182, %v314, %v612
      %v1270 = vsel %vm182, %v315, %v614
      %v1271 = vsel %vm182, %v317, %v616
      %v1272 = vsel %vm182, %v318, %v618
      %v1273 = vsel %vm182, %v320, %v620
      %v1274 = vsel %vm182, %v321, %v622
      %v1275 = vsel %vm182, %v323, %v624
      %v1276 = vsel %vm182, %v324, %v626
      %v1277 = vsel %vm182, %v326, %v628
      %v1278 = vsel %vm182, %v327, %v630
      %v1279 = vsel %vm182, %v329, %v632
      %v1280 = vsel %vm182, %v330, %v634
      %v1281 = vsel %vm182, %v332, %v636
      %v1282 = vsel %vm182, %v333, %v638
      %v1283 = vsel %vm182, %v335, %v640
      %v1284 = vsel %vm182, %v336, %v642
      %v1285 = vsel %vm182, %v338, %v644
      %v1286 = vsel %vm182, %v339, %v646
      %vm1287 = vcmask 261120
      %v1288 = vsel %vm1287, %v1255, %v680
      %v1289 = vsel %vm1287, %v1256, %v682
      %v1290 = vsel %vm1287, %v1257, %v684
      %v1291 = vsel %vm1287, %v1258, %v686
      %v1292 = vsel %vm1287, %v1259, %v688
      %v1293 = vsel %vm1287, %v1260, %v690
      %v1294 = vsel %vm1287, %v1261, %v692
      %v1295 = vsel %vm1287, %v1262, %v694
      %v1296 = vsel %vm1287, %v1263, %v696
      %v1297 = vsel %vm1287, %v1264, %v698
      %v1298 = vsel %vm1287, %v1265, %v700
      %v1299 = vsel %vm1287, %v1266, %v702
      %v1300 = vsel %vm1287, %v1267, %v704
      %v1301 = vsel %vm1287, %v1268, %v706
      %v1302 = vsel %vm1287, %v1269, %v708
      %v1303 = vsel %vm1287, %v1270, %v710
      %v1304 = vsel %vm1287, %v1271, %v712
      %v1305 = vsel %vm1287, %v1272, %v714
      %v1306 = vsel %vm1287, %v1273, %v716
      %v1307 = vsel %vm1287, %v1274, %v718
      %v1308 = vsel %vm1287, %v1275, %v720
      %v1309 = vsel %vm1287, %v1276, %v722
      %v1310 = vsel %vm1287, %v1277, %v724
      %v1311 = vsel %vm1287, %v1278, %v726
      %v1312 = vsel %vm1287, %v1279, %v728
      %v1313 = vsel %vm1287, %v1280, %v730
      %v1314 = vsel %vm1287, %v1281, %v732
      %v1315 = vsel %vm1287, %v1282, %v734
      %v1316 = vsel %vm1287, %v1283, %v736
      %v1317 = vsel %vm1287, %v1284, %v738
      %v1318 = vsel %vm1287, %v1285, %v740
      %v1319 = vsel %vm1287, %v1286, %v742
      %vm1320 = vcmask 392192
      %v1321 = vsel %vm1320, %v1288, %v776
      %v1322 = vsel %vm1320, %v1289, %v778
      %v1323 = vsel %vm1320, %v1290, %v780
      %v1324 = vsel %vm1320, %v1291, %v782
      %v1325 = vsel %vm1320, %v1292, %v784
      %v1326 = vsel %vm1320, %v1293, %v786
      %v1327 = vsel %vm1320, %v1294, %v788
      %v1328 = vsel %vm1320, %v1295, %v790
      %v1329 = vsel %vm1320, %v1296, %v792
      %v1330 = vsel %vm1320, %v1297, %v794
      %v1331 = vsel %vm1320, %v1298, %v796
      %v1332 = vsel %vm1320, %v1299, %v798
      %v1333 = vsel %vm1320, %v1300, %v800
      %v1334 = vsel %vm1320, %v1301, %v802
      %v1335 = vsel %vm1320, %v1302, %v804
      %v1336 = vsel %vm1320, %v1303, %v806
      %v1337 = vsel %vm1320, %v1304, %v808
      %v1338 = vsel %vm1320, %v1305, %v810
      %v1339 = vsel %vm1320, %v1306, %v812
      %v1340 = vsel %vm1320, %v1307, %v814
      %v1341 = vsel %vm1320, %v1308, %v816
      %v1342 = vsel %vm1320, %v1309, %v818
      %v1343 = vsel %vm1320, %v1310, %v820
      %v1344 = vsel %vm1320, %v1311, %v822
      %v1345 = vsel %vm1320, %v1312, %v824
      %v1346 = vsel %vm1320, %v1313, %v826
      %v1347 = vsel %vm1320, %v1314, %v828
      %v1348 = vsel %vm1320, %v1315, %v830
      %v1349 = vsel %vm1320, %v1316, %v832
      %v1350 = vsel %vm1320, %v1317, %v834
      %v1351 = vsel %vm1320, %v1318, %v836
      %v1352 = vsel %vm1320, %v1319, %v838
      %vm1353 = vcmask 523264
      %v1354 = vsel %vm1353, %v1321, %v872
      %v1355 = vsel %vm1353, %v1322, %v874
      %v1356 = vsel %vm1353, %v1323, %v876
      %v1357 = vsel %vm1353, %v1324, %v878
      %v1358 = vsel %vm1353, %v1325, %v880
      %v1359 = vsel %vm1353, %v1326, %v882
      %v1360 = vsel %vm1353, %v1327, %v884
      %v1361 = vsel %vm1353, %v1328, %v886
      %v1362 = vsel %vm1353, %v1329, %v888
      %v1363 = vsel %vm1353, %v1330, %v890
      %v1364 = vsel %vm1353, %v1331, %v892
      %v1365 = vsel %vm1353, %v1332, %v894
      %v1366 = vsel %vm1353, %v1333, %v896
      %v1367 = vsel %vm1353, %v1334, %v898
      %v1368 = vsel %vm1353, %v1335, %v900
      %v1369 = vsel %vm1353, %v1336, %v902
      %v1370 = vsel %vm1353, %v1337, %v904
      %v1371 = vsel %vm1353, %v1338, %v906
      %v1372 = vsel %vm1353, %v1339, %v908
      %v1373 = vsel %vm1353, %v1340, %v910
      %v1374 = vsel %vm1353, %v1341, %v912
      %v1375 = vsel %vm1353, %v1342, %v914
      %v1376 = vsel %vm1353, %v1343, %v916
      %v1377 = vsel %vm1353, %v1344, %v918
      %v1378 = vsel %vm1353, %v1345, %v920
      %v1379 = vsel %vm1353, %v1346, %v922
      %v1380 = vsel %vm1353, %v1347, %v924
      %v1381 = vsel %vm1353, %v1348, %v926
      %v1382 = vsel %vm1353, %v1349, %v928
      %v1383 = vsel %vm1353, %v1350, %v930
      %v1384 = vsel %vm1353, %v1351, %v932
      %v1385 = vsel %vm1353, %v1352, %v934
      %vm1386 = vcmask 654336
      %v1387 = vsel %vm1386, %v1354, %v968
      %v1388 = vsel %vm1386, %v1355, %v970
      %v1389 = vsel %vm1386, %v1356, %v972
      %v1390 = vsel %vm1386, %v1357, %v974
      %v1391 = vsel %vm1386, %v1358, %v976
      %v1392 = vsel %vm1386, %v1359, %v978
      %v1393 = vsel %vm1386, %v1360, %v980
      %v1394 = vsel %vm1386, %v1361, %v982
      %v1395 = vsel %vm1386, %v1362, %v984
      %v1396 = vsel %vm1386, %v1363, %v986
      %v1397 = vsel %vm1386, %v1364, %v988
      %v1398 = vsel %vm1386, %v1365, %v990
      %v1399 = vsel %vm1386, %v1366, %v992
      %v1400 = vsel %vm1386, %v1367, %v994
      %v1401 = vsel %vm1386, %v1368, %v996
      %v1402 = vsel %vm1386, %v1369, %v998
      %v1403 = vsel %vm1386, %v1370, %v1000
      %v1404 = vsel %vm1386, %v1371, %v1002
      %v1405 = vsel %vm1386, %v1372, %v1004
      %v1406 = vsel %vm1386, %v1373, %v1006
      %v1407 = vsel %vm1386, %v1374, %v1008
      %v1408 = vsel %vm1386, %v1375, %v1010
      %v1409 = vsel %vm1386, %v1376, %v1012
      %v1410 = vsel %vm1386, %v1377, %v1014
      %v1411 = vsel %vm1386, %v1378, %v1016
      %v1412 = vsel %vm1386, %v1379, %v1018
      %v1413 = vsel %vm1386, %v1380, %v1020
      %v1414 = vsel %vm1386, %v1381, %v1022
      %v1415 = vsel %vm1386, %v1382, %v1024
      %v1416 = vsel %vm1386, %v1383, %v1026
      %v1417 = vsel %vm1386, %v1384, %v1028
      %v1418 = vsel %vm1386, %v1385, %v1030
      %vm1419 = vcmask 785408
      %v1420 = vsel %vm1419, %v1387, %v1064
      %v1421 = vsel %vm1419, %v1388, %v1066
      %v1422 = vsel %vm1419, %v1389, %v1068
      %v1423 = vsel %vm1419, %v1390, %v1070
      %v1424 = vsel %vm1419, %v1391, %v1072
      %v1425 = vsel %vm1419, %v1392, %v1074
      %v1426 = vsel %vm1419, %v1393, %v1076
      %v1427 = vsel %vm1419, %v1394, %v1078
      %v1428 = vsel %vm1419, %v1395, %v1080
      %v1429 = vsel %vm1419, %v1396, %v1082
      %v1430 = vsel %vm1419, %v1397, %v1084
      %v1431 = vsel %vm1419, %v1398, %v1086
      %v1432 = vsel %vm1419, %v1399, %v1088
      %v1433 = vsel %vm1419, %v1400, %v1090
      %v1434 = vsel %vm1419, %v1401, %v1092
      %v1435 = vsel %vm1419, %v1402, %v1094
      %v1436 = vsel %vm1419, %v1403, %v1096
      %v1437 = vsel %vm1419, %v1404, %v1098
      %v1438 = vsel %vm1419, %v1405, %v1100
      %v1439 = vsel %vm1419, %v1406, %v1102
      %v1440 = vsel %vm1419, %v1407, %v1104
      %v1441 = vsel %vm1419, %v1408, %v1106
      %v1442 = vsel %vm1419, %v1409, %v1108
      %v1443 = vsel %vm1419, %v1410, %v1110
      %v1444 = vsel %vm1419, %v1411, %v1112
      %v1445 = vsel %vm1419, %v1412, %v1114
      %v1446 = vsel %vm1419, %v1413, %v1116
      %v1447 = vsel %vm1419, %v1414, %v1118
      %v1448 = vsel %vm1419, %v1415, %v1120
      %v1449 = vsel %vm1419, %v1416, %v1122
      %v1450 = vsel %vm1419, %v1417, %v1124
      %v1451 = vsel %vm1419, %v1418, %v1126
      %vm1452 = vcmask 916480
      %v1453 = vsel %vm1452, %v1420, %v1160
      %v1454 = vsel %vm1452, %v1421, %v1162
      %v1455 = vsel %vm1452, %v1422, %v1164
      %v1456 = vsel %vm1452, %v1423, %v1166
      %v1457 = vsel %vm1452, %v1424, %v1168
      %v1458 = vsel %vm1452, %v1425, %v1170
      %v1459 = vsel %vm1452, %v1426, %v1172
      %v1460 = vsel %vm1452, %v1427, %v1174
      %v1461 = vsel %vm1452, %v1428, %v1176
      %v1462 = vsel %vm1452, %v1429, %v1178
      %v1463 = vsel %vm1452, %v1430, %v1180
      %v1464 = vsel %vm1452, %v1431, %v1182
      %v1465 = vsel %vm1452, %v1432, %v1184
      %v1466 = vsel %vm1452, %v1433, %v1186
      %v1467 = vsel %vm1452, %v1434, %v1188
      %v1468 = vsel %vm1452, %v1435, %v1190
      %v1469 = vsel %vm1452, %v1436, %v1192
      %v1470 = vsel %vm1452, %v1437, %v1194
      %v1471 = vsel %vm1452, %v1438, %v1196
      %v1472 = vsel %vm1452, %v1439, %v1198
      %v1473 = vsel %vm1452, %v1440, %v1200
      %v1474 = vsel %vm1452, %v1441, %v1202
      %v1475 = vsel %vm1452, %v1442, %v1204
      %v1476 = vsel %vm1452, %v1443, %v1206
      %v1477 = vsel %vm1452, %v1444, %v1208
      %v1478 = vsel %vm1452, %v1445, %v1210
      %v1479 = vsel %vm1452, %v1446, %v1212
      %v1480 = vsel %vm1452, %v1447, %v1214
      %v1481 = vsel %vm1452, %v1448, %v1216
      %v1482 = vsel %vm1452, %v1449, %v1218
      %v1483 = vsel %vm1452, %v1450, %v1220
      %v1484 = vsel %vm1452, %v1451, %v1222
      %v1485 = vld [vmem:[%s1] sm:$0xff]
      %v1486 = vld [vmem:[%s1 + $0x8] sm:$0xff]
      %v1487 = vld [vmem:[%s1 + $0x10] sm:$0xff]
      %v1488 = vld [vmem:[%s1 + $0x18] sm:$0xff]
      %v1489 = vld [vmem:[%s1 + $0x20] sm:$0xff]
      %v1490 = vld [vmem:[%s1 + $0x28] sm:$0xff]
      %v1491 = vld [vmem:[%s1 + $0x30] sm:$0xff]
      %v1492 = vld [vmem:[%s1 + $0x38] sm:$0xff]
      %v1493 = vld [vmem:[%s1 + $0x40] sm:$0xff]
      %v1494 = vld [vmem:[%s1 + $0x48] sm:$0xff]
      %v1495 = vld [vmem:[%s1 + $0x50] sm:$0xff]
      %v1496 = vld [vmem:[%s1 + $0x58] sm:$0xff]
      %v1497 = vld [vmem:[%s1 + $0x60] sm:$0xff]
      %v1498 = vld [vmem:[%s1 + $0x68] sm:$0xff]
      %v1499 = vld [vmem:[%s1 + $0x70] sm:$0xff]
      %v1500 = vld [vmem:[%s1 + $0x78] sm:$0xff]
      %v1501 = vld [vmem:[%s1 + $0x80] sm:$0xff]
      %v1502 = vld [vmem:[%s1 + $0x88] sm:$0xff]
      %v1503 = vsel %vm182, %v489, 0
      %v1505 = vsel %vm182, %v491, 0
      %v1507 = vsel %vm182, %v494, 0
      %v1509 = vsel %vm182, %v496, 0
      %v1511 = vsel %vm182, %v499, 0
      %v1513 = vsel %vm182, %v501, 0
      %v1515 = vsel %vm182, %v504, 0
      %v1517 = vsel %vm182, %v506, 0
      %v1519 = vsel %vm182, %v509, 0
      %v1521 = vsel %vm182, %v511, 0
      %v1523 = vsel %vm182, %v514, 0
      %v1525 = vsel %vm182, %v516, 0
      %v1527 = vsel %vm182, %v519, 0
      %v1529 = vsel %vm182, %v521, 0
      %v1531 = vsel %vm182, %v524, 0
      %v1533 = vsel %vm182, %v526, 0
      %v1535 = vsel %vm182, %v529, 0
      %v1537 = vsel %vm182, %v531, 0
      %v1539 = vsel %vm182, %v534, 0
      %v1541 = vsel %vm182, %v536, 0
      %v1543 = vsel %vm182, %v539, 0
      %v1545 = vsel %vm182, %v541, 0
      %v1547 = vsel %vm182, %v544, 0
      %v1549 = vsel %vm182, %v546, 0
      %v1551 = vsel %vm182, %v549, 0
      %v1553 = vsel %vm182, %v551, 0
      %v1555 = vsel %vm182, %v554, 0
      %v1557 = vsel %vm182, %v556, 0
      %v1559 = vsel %vm182, %v567, 0
      %v1561 = vsel %vm182, %v569, 0
      %v1563 = vsel %vm182, %v580, 0
      %v1565 = vsel %vm182, %v582, 0
      %1567 = vmatpush.msra.mxu0 %v1500
      %1568 = vmatpush.msra.mxu0 %v1499
      %1569 = vmatpush.msra.mxu0 %v1498
      %1570 = vmatpush.msra.mxu0 %v1497
      %1571 = vmatpush.msra.mxu0 %v1496
      %1572 = vmatpush.msra.mxu0 %v1495
      %1573 = vmatpush.msra.mxu0 %v1494
      %1574 = vmatpush.msra.mxu0 %v1493
      %1575 = vmatpush.msra.mxu0 %v1492
      %1576 = vmatpush.msra.mxu0 %v1491
      %1577 = vmatpush.msra.mxu0 %v1490
      %1578 = vmatpush.msra.mxu0 %v1489
      %1579 = vmatpush.msra.mxu0 %v1488
      %1580 = vmatpush.msra.mxu0 %v1487
      %1581 = vmatpush.msra.mxu0 %v1486
      %1582 = vmatpush.msra.mxu0 %v1485
      %1583 = vmatmul.f32.gmra.mxu0 %v1453
      %v1584 = vpop.f32.mrf.mxu0
      %v1585 = vadd.f32 0.0, %v1584
      %1586 = vmatmul.f32.gmra.mxu0 %v1454
      %v1587 = vpop.f32.mrf.mxu0
      %v1588 = vadd.f32 0.0, %v1587
      %1589 = vmatmul.f32.gmra.mxu0 %v1455
      %v1590 = vpop.f32.mrf.mxu0
      %v1591 = vadd.f32 0.0, %v1590
      %1592 = vmatmul.f32.gmra.mxu0 %v1456
      %v1593 = vpop.f32.mrf.mxu0
      %v1594 = vadd.f32 0.0, %v1593
      %1595 = vmatmul.f32.gmra.mxu0 %v1457
      %v1596 = vpop.f32.mrf.mxu0
      %v1597 = vadd.f32 0.0, %v1596
      %1598 = vmatmul.f32.gmra.mxu0 %v1458
      %v1599 = vpop.f32.mrf.mxu0
      %v1600 = vadd.f32 0.0, %v1599
      %1601 = vmatmul.f32.gmra.mxu0 %v1459
      %v1602 = vpop.f32.mrf.mxu0
      %v1603 = vadd.f32 0.0, %v1602
      %1604 = vmatmul.f32.gmra.mxu0 %v1460
      %v1605 = vpop.f32.mrf.mxu0
      %v1606 = vadd.f32 0.0, %v1605
      %1607 = vmatmul.f32.gmra.mxu0 %v1461
      %v1608 = vpop.f32.mrf.mxu0
      %v1609 = vadd.f32 0.0, %v1608
      %1610 = vmatmul.f32.gmra.mxu0 %v1462
      %v1611 = vpop.f32.mrf.mxu0
      %v1612 = vadd.f32 0.0, %v1611
      %1613 = vmatmul.f32.gmra.mxu0 %v1463
      %v1614 = vpop.f32.mrf.mxu0
      %v1615 = vadd.f32 0.0, %v1614
      %1616 = vmatmul.f32.gmra.mxu0 %v1464
      %v1617 = vpop.f32.mrf.mxu0
      %v1618 = vadd.f32 0.0, %v1617
      %1619 = vmatmul.f32.gmra.mxu0 %v1465
      %v1620 = vpop.f32.mrf.mxu0
      %v1621 = vadd.f32 0.0, %v1620
      %1622 = vmatmul.f32.gmra.mxu0 %v1466
      %v1623 = vpop.f32.mrf.mxu0
      %v1624 = vadd.f32 0.0, %v1623
      %1625 = vmatmul.f32.gmra.mxu0 %v1467
      %v1626 = vpop.f32.mrf.mxu0
      %v1627 = vadd.f32 0.0, %v1626
      %1628 = vmatmul.f32.gmra.mxu0 %v1468
      %v1629 = vpop.f32.mrf.mxu0
      %v1630 = vadd.f32 0.0, %v1629
      %1631 = vmatmul.f32.gmra.mxu0 %v1469
      %v1632 = vpop.f32.mrf.mxu0
      %v1633 = vadd.f32 0.0, %v1632
      %1634 = vmatmul.f32.gmra.mxu0 %v1470
      %v1635 = vpop.f32.mrf.mxu0
      %v1636 = vadd.f32 0.0, %v1635
      %1637 = vmatmul.f32.gmra.mxu0 %v1471
      %v1638 = vpop.f32.mrf.mxu0
      %v1639 = vadd.f32 0.0, %v1638
      %1640 = vmatmul.f32.gmra.mxu0 %v1472
      %v1641 = vpop.f32.mrf.mxu0
      %v1642 = vadd.f32 0.0, %v1641
      %1643 = vmatmul.f32.gmra.mxu0 %v1473
      %v1644 = vpop.f32.mrf.mxu0
      %v1645 = vadd.f32 0.0, %v1644
      %1646 = vmatmul.f32.gmra.mxu0 %v1474
      %v1647 = vpop.f32.mrf.mxu0
      %v1648 = vadd.f32 0.0, %v1647
      %1649 = vmatmul.f32.gmra.mxu0 %v1475
      %v1650 = vpop.f32.mrf.mxu0
      %v1651 = vadd.f32 0.0, %v1650
      %1652 = vmatmul.f32.gmra.mxu0 %v1476
      %v1653 = vpop.f32.mrf.mxu0
      %v1654 = vadd.f32 0.0, %v1653
      %1655 = vmatmul.f32.gmra.mxu0 %v1477
      %v1656 = vpop.f32.mrf.mxu0
      %v1657 = vadd.f32 0.0, %v1656
      %1658 = vmatmul.f32.gmra.mxu0 %v1478
      %v1659 = vpop.f32.mrf.mxu0
      %v1660 = vadd.f32 0.0, %v1659
      %1661 = vmatmul.f32.gmra.mxu0 %v1479
      %v1662 = vpop.f32.mrf.mxu0
      %v1663 = vadd.f32 0.0, %v1662
      %1664 = vmatmul.f32.gmra.mxu0 %v1480
      %v1665 = vpop.f32.mrf.mxu0
      %v1666 = vadd.f32 0.0, %v1665
      %1667 = vmatmul.f32.gmra.mxu0 %v1481
      %v1668 = vpop.f32.mrf.mxu0
      %v1669 = vadd.f32 0.0, %v1668
      %1670 = vmatmul.f32.gmra.mxu0 %v1482
      %v1671 = vpop.f32.mrf.mxu0
      %v1672 = vadd.f32 0.0, %v1671
      %1673 = vmatmul.f32.gmra.mxu0 %v1483
      %v1674 = vpop.f32.mrf.mxu0
      %v1675 = vadd.f32 0.0, %v1674
      %1676 = vmatmul.f32.gmra.mxu0 %v1484
      %v1677 = vpop.f32.mrf.mxu0
      %v1678 = vadd.f32 0.0, %v1677
      %1679 = vdwg.mxu0
      %1680 = vmatpush.msra.mxu0 0.0
      %1681 = vmatpush.msra.mxu0 0.0
      %1682 = vmatpush.msra.mxu0 0.0
      %1683 = vmatpush.msra.mxu0 0.0
      %1684 = vmatpush.msra.mxu0 0.0
      %1685 = vmatpush.msra.mxu0 0.0
      %1686 = vmatpush.msra.mxu0 0.0
      %1687 = vmatpush.msra.mxu0 0.0
      %1688 = vmatpush.msra.mxu0 0.0
      %1689 = vmatpush.msra.mxu0 0.0
      %1690 = vmatpush.msra.mxu0 0.0
      %1691 = vmatpush.msra.mxu0 0.0
      %1692 = vmatpush.msra.mxu0 0.0
      %1693 = vmatpush.msra.mxu0 0.0
      %1694 = vmatpush.msra.mxu0 %v1502
      %1695 = vmatpush.msra.mxu0 %v1501
      %1696 = vmatmul.f32.gmra.mxu0 %v1503
      %v1697 = vpop.f32.mrf.mxu0
      %v1698 = vadd.f32 %v1585, %v1697
      %1699 = vmatmul.f32.gmra.mxu0 %v1505
      %v1700 = vpop.f32.mrf.mxu0
      %v1701 = vadd.f32 %v1588, %v1700
      %1702 = vmatmul.f32.gmra.mxu0 %v1507
      %v1703 = vpop.f32.mrf.mxu0
      %v1704 = vadd.f32 %v1591, %v1703
      %1705 = vmatmul.f32.gmra.mxu0 %v1509
      %v1706 = vpop.f32.mrf.mxu0
      %v1707 = vadd.f32 %v1594, %v1706
      %1708 = vmatmul.f32.gmra.mxu0 %v1511
      %v1709 = vpop.f32.mrf.mxu0
      %v1710 = vadd.f32 %v1597, %v1709
      %1711 = vmatmul.f32.gmra.mxu0 %v1513
      %v1712 = vpop.f32.mrf.mxu0
      %v1713 = vadd.f32 %v1600, %v1712
      %1714 = vmatmul.f32.gmra.mxu0 %v1515
      %v1715 = vpop.f32.mrf.mxu0
      %v1716 = vadd.f32 %v1603, %v1715
      %1717 = vmatmul.f32.gmra.mxu0 %v1517
      %v1718 = vpop.f32.mrf.mxu0
      %v1719 = vadd.f32 %v1606, %v1718
      %1720 = vmatmul.f32.gmra.mxu0 %v1519
      %v1721 = vpop.f32.mrf.mxu0
      %v1722 = vadd.f32 %v1609, %v1721
      %1723 = vmatmul.f32.gmra.mxu0 %v1521
      %v1724 = vpop.f32.mrf.mxu0
      %v1725 = vadd.f32 %v1612, %v1724
      %1726 = vmatmul.f32.gmra.mxu0 %v1523
      %v1727 = vpop.f32.mrf.mxu0
      %v1728 = vadd.f32 %v1615, %v1727
      %1729 = vmatmul.f32.gmra.mxu0 %v1525
      %v1730 = vpop.f32.mrf.mxu0
      %v1731 = vadd.f32 %v1618, %v1730
      %1732 = vmatmul.f32.gmra.mxu0 %v1527
      %v1733 = vpop.f32.mrf.mxu0
      %v1734 = vadd.f32 %v1621, %v1733
      %1735 = vmatmul.f32.gmra.mxu0 %v1529
      %v1736 = vpop.f32.mrf.mxu0
      %v1737 = vadd.f32 %v1624, %v1736
      %1738 = vmatmul.f32.gmra.mxu0 %v1531
      %v1739 = vpop.f32.mrf.mxu0
      %v1740 = vadd.f32 %v1627, %v1739
      %1741 = vmatmul.f32.gmra.mxu0 %v1533
      %v1742 = vpop.f32.mrf.mxu0
      %v1743 = vadd.f32 %v1630, %v1742
      %1744 = vmatmul.f32.gmra.mxu0 %v1535
      %v1745 = vpop.f32.mrf.mxu0
      %v1746 = vadd.f32 %v1633, %v1745
      %1747 = vmatmul.f32.gmra.mxu0 %v1537
      %v1748 = vpop.f32.mrf.mxu0
      %v1749 = vadd.f32 %v1636, %v1748
      %1750 = vmatmul.f32.gmra.mxu0 %v1539
      %v1751 = vpop.f32.mrf.mxu0
      %v1752 = vadd.f32 %v1639, %v1751
      %1753 = vmatmul.f32.gmra.mxu0 %v1541
      %v1754 = vpop.f32.mrf.mxu0
      %v1755 = vadd.f32 %v1642, %v1754
      %1756 = vmatmul.f32.gmra.mxu0 %v1543
      %v1757 = vpop.f32.mrf.mxu0
      %v1758 = vadd.f32 %v1645, %v1757
      %1759 = vmatmul.f32.gmra.mxu0 %v1545
      %v1760 = vpop.f32.mrf.mxu0
      %v1761 = vadd.f32 %v1648, %v1760
      %1762 = vmatmul.f32.gmra.mxu0 %v1547
      %v1763 = vpop.f32.mrf.mxu0
      %v1764 = vadd.f32 %v1651, %v1763
      %1765 = vmatmul.f32.gmra.mxu0 %v1549
      %v1766 = vpop.f32.mrf.mxu0
      %v1767 = vadd.f32 %v1654, %v1766
      %1768 = vmatmul.f32.gmra.mxu0 %v1551
      %v1769 = vpop.f32.mrf.mxu0
      %v1770 = vadd.f32 %v1657, %v1769
      %1771 = vmatmul.f32.gmra.mxu0 %v1553
      %v1772 = vpop.f32.mrf.mxu0
      %v1773 = vadd.f32 %v1660, %v1772
      %1774 = vmatmul.f32.gmra.mxu0 %v1555
      %v1775 = vpop.f32.mrf.mxu0
      %v1776 = vadd.f32 %v1663, %v1775
      %1777 = vmatmul.f32.gmra.mxu0 %v1557
      %v1778 = vpop.f32.mrf.mxu0
      %v1779 = vadd.f32 %v1666, %v1778
      %1780 = vmatmul.f32.gmra.mxu0 %v1559
      %v1781 = vpop.f32.mrf.mxu0
      %v1782 = vadd.f32 %v1669, %v1781
      %1783 = vmatmul.f32.gmra.mxu0 %v1561
      %v1784 = vpop.f32.mrf.mxu0
      %v1785 = vadd.f32 %v1672, %v1784
      %1786 = vmatmul.f32.gmra.mxu0 %v1563
      %v1787 = vpop.f32.mrf.mxu0
      %v1788 = vadd.f32 %v1675, %v1787
      %1789 = vmatmul.f32.gmra.mxu0 %v1565
      %v1790 = vpop.f32.mrf.mxu0
      %v1791 = vadd.f32 %v1678, %v1790
      %1792 = vdwg.mxu0
      %v1793 = vsel %vm182, %v1698, 0.0
      %v1794 = vsel %vm182, %v1701, 0.0
      %v1795 = vadd.f32 %v1793, %v1794
      %v1796 = vsel %vm182, %v1704, 0.0
      %v1797 = vadd.f32 %v1795, %v1796
      %v1798 = vsel %vm182, %v1707, 0.0
      %v1799 = vadd.f32 %v1797, %v1798
      %v1800 = vsel %vm182, %v1710, 0.0
      %v1801 = vadd.f32 %v1799, %v1800
      %v1802 = vsel %vm182, %v1713, 0.0
      %v1803 = vadd.f32 %v1801, %v1802
      %v1804 = vsel %vm182, %v1716, 0.0
      %v1805 = vadd.f32 %v1803, %v1804
      %v1806 = vsel %vm182, %v1719, 0.0
      %v1807 = vadd.f32 %v1805, %v1806
      %v1808 = vsel %vm182, %v1722, 0.0
      %v1809 = vadd.f32 %v1807, %v1808
      %v1810 = vsel %vm182, %v1725, 0.0
      %v1811 = vadd.f32 %v1809, %v1810
      %v1812 = vsel %vm182, %v1728, 0.0
      %v1813 = vadd.f32 %v1811, %v1812
      %v1814 = vsel %vm182, %v1731, 0.0
      %v1815 = vadd.f32 %v1813, %v1814
      %v1816 = vsel %vm182, %v1734, 0.0
      %v1817 = vadd.f32 %v1815, %v1816
      %v1818 = vsel %vm182, %v1737, 0.0
      %v1819 = vadd.f32 %v1817, %v1818
      %v1820 = vsel %vm182, %v1740, 0.0
      %v1821 = vadd.f32 %v1819, %v1820
      %v1822 = vsel %vm182, %v1743, 0.0
      %v1823 = vadd.f32 %v1821, %v1822
      %v1824 = vsel %vm182, %v1746, 0.0
      %v1825 = vadd.f32 %v1823, %v1824
      %v1826 = vsel %vm182, %v1749, 0.0
      %v1827 = vadd.f32 %v1825, %v1826
      %v1828 = vsel %vm182, %v1752, 0.0
      %v1829 = vadd.f32 %v1827, %v1828
      %v1830 = vsel %vm182, %v1755, 0.0
      %v1831 = vadd.f32 %v1829, %v1830
      %v1832 = vsel %vm182, %v1758, 0.0
      %v1833 = vadd.f32 %v1831, %v1832
      %v1834 = vsel %vm182, %v1761, 0.0
      %v1835 = vadd.f32 %v1833, %v1834
      %v1836 = vsel %vm182, %v1764, 0.0
      %v1837 = vadd.f32 %v1835, %v1836
      %v1838 = vsel %vm182, %v1767, 0.0
      %v1839 = vadd.f32 %v1837, %v1838
      %v1840 = vsel %vm182, %v1770, 0.0
      %v1841 = vadd.f32 %v1839, %v1840
      %v1842 = vsel %vm182, %v1773, 0.0
      %v1843 = vadd.f32 %v1841, %v1842
      %v1844 = vsel %vm182, %v1776, 0.0
      %v1845 = vadd.f32 %v1843, %v1844
      %v1846 = vsel %vm182, %v1779, 0.0
      %v1847 = vadd.f32 %v1845, %v1846
      %v1848 = vsel %vm182, %v1782, 0.0
      %v1849 = vadd.f32 %v1847, %v1848
      %v1850 = vsel %vm182, %v1785, 0.0
      %v1851 = vadd.f32 %v1849, %v1850
      %v1852 = vsel %vm182, %v1788, 0.0
      %v1853 = vadd.f32 %v1851, %v1852
      %v1854 = vsel %vm182, %v1791, 0.0
      %v1855 = vadd.f32 %v1853, %v1854
      %v1856 = vrot.slane %v1855, 4
      %v1857 = vadd.f32 %v1855, %v1856
      %v1858 = vrot.slane %v1857, 2
      %v1859 = vadd.f32 %v1857, %v1858
      %v1860 = vrot.slane %v1859, 1
      %v1861 = vadd.f32 %v1859, %v1860
      %v1862 = vmul.f32 %v1698, %v1698
      %v1863 = vmul.f32 %v1701, %v1701
      %v1864 = vmul.f32 %v1704, %v1704
      %v1865 = vmul.f32 %v1707, %v1707
      %v1866 = vmul.f32 %v1710, %v1710
      %v1867 = vmul.f32 %v1713, %v1713
      %v1868 = vmul.f32 %v1716, %v1716
      %v1869 = vmul.f32 %v1719, %v1719
      %v1870 = vmul.f32 %v1722, %v1722
      %v1871 = vmul.f32 %v1725, %v1725
      %v1872 = vmul.f32 %v1728, %v1728
      %v1873 = vmul.f32 %v1731, %v1731
      %v1874 = vmul.f32 %v1734, %v1734
      %v1875 = vmul.f32 %v1737, %v1737
      %v1876 = vmul.f32 %v1740, %v1740
      %v1877 = vmul.f32 %v1743, %v1743
      %v1878 = vmul.f32 %v1746, %v1746
      %v1879 = vmul.f32 %v1749, %v1749
      %v1880 = vmul.f32 %v1752, %v1752
      %v1881 = vmul.f32 %v1755, %v1755
      %v1882 = vmul.f32 %v1758, %v1758
      %v1883 = vmul.f32 %v1761, %v1761
      %v1884 = vmul.f32 %v1764, %v1764
      %v1885 = vmul.f32 %v1767, %v1767
      %v1886 = vmul.f32 %v1770, %v1770
      %v1887 = vmul.f32 %v1773, %v1773
      %v1888 = vmul.f32 %v1776, %v1776
      %v1889 = vmul.f32 %v1779, %v1779
      %v1890 = vmul.f32 %v1782, %v1782
      %v1891 = vmul.f32 %v1785, %v1785
      %v1892 = vmul.f32 %v1788, %v1788
      %v1893 = vmul.f32 %v1791, %v1791
      %v1894 = vsel %vm182, %v1862, 0.0
      %v1895 = vsel %vm182, %v1863, 0.0
      %v1896 = vadd.f32 %v1894, %v1895
      %v1897 = vsel %vm182, %v1864, 0.0
      %v1898 = vadd.f32 %v1896, %v1897
      %v1899 = vsel %vm182, %v1865, 0.0
      %v1900 = vadd.f32 %v1898, %v1899
      %v1901 = vsel %vm182, %v1866, 0.0
      %v1902 = vadd.f32 %v1900, %v1901
      %v1903 = vsel %vm182, %v1867, 0.0
      %v1904 = vadd.f32 %v1902, %v1903
      %v1905 = vsel %vm182, %v1868, 0.0
      %v1906 = vadd.f32 %v1904, %v1905
      %v1907 = vsel %vm182, %v1869, 0.0
      %v1908 = vadd.f32 %v1906, %v1907
      %v1909 = vsel %vm182, %v1870, 0.0
      %v1910 = vadd.f32 %v1908, %v1909
      %v1911 = vsel %vm182, %v1871, 0.0
      %v1912 = vadd.f32 %v1910, %v1911
      %v1913 = vsel %vm182, %v1872, 0.0
      %v1914 = vadd.f32 %v1912, %v1913
      %v1915 = vsel %vm182, %v1873, 0.0
      %v1916 = vadd.f32 %v1914, %v1915
      %v1917 = vsel %vm182, %v1874, 0.0
      %v1918 = vadd.f32 %v1916, %v1917
      %v1919 = vsel %vm182, %v1875, 0.0
      %v1920 = vadd.f32 %v1918, %v1919
      %v1921 = vsel %vm182, %v1876, 0.0
      %v1922 = vadd.f32 %v1920, %v1921
      %v1923 = vsel %vm182, %v1877, 0.0
      %v1924 = vadd.f32 %v1922, %v1923
      %v1925 = vsel %vm182, %v1878, 0.0
      %v1926 = vadd.f32 %v1924, %v1925
      %v1927 = vsel %vm182, %v1879, 0.0
      %v1928 = vadd.f32 %v1926, %v1927
      %v1929 = vsel %vm182, %v1880, 0.0
      %v1930 = vadd.f32 %v1928, %v1929
      %v1931 = vsel %vm182, %v1881, 0.0
      %v1932 = vadd.f32 %v1930, %v1931
      %v1933 = vsel %vm182, %v1882, 0.0
      %v1934 = vadd.f32 %v1932, %v1933
      %v1935 = vsel %vm182, %v1883, 0.0
      %v1936 = vadd.f32 %v1934, %v1935
      %v1937 = vsel %vm182, %v1884, 0.0
      %v1938 = vadd.f32 %v1936, %v1937
      %v1939 = vsel %vm182, %v1885, 0.0
      %v1940 = vadd.f32 %v1938, %v1939
      %v1941 = vsel %vm182, %v1886, 0.0
      %v1942 = vadd.f32 %v1940, %v1941
      %v1943 = vsel %vm182, %v1887, 0.0
      %v1944 = vadd.f32 %v1942, %v1943
      %v1945 = vsel %vm182, %v1888, 0.0
      %v1946 = vadd.f32 %v1944, %v1945
      %v1947 = vsel %vm182, %v1889, 0.0
      %v1948 = vadd.f32 %v1946, %v1947
      %v1949 = vsel %vm182, %v1890, 0.0
      %v1950 = vadd.f32 %v1948, %v1949
      %v1951 = vsel %vm182, %v1891, 0.0
      %v1952 = vadd.f32 %v1950, %v1951
      %v1953 = vsel %vm182, %v1892, 0.0
      %v1954 = vadd.f32 %v1952, %v1953
      %v1955 = vsel %vm182, %v1893, 0.0
      %v1956 = vadd.f32 %v1954, %v1955
      %v1957 = vrot.slane %v1956, 4
      %v1958 = vadd.f32 %v1956, %v1957
      %v1959 = vrot.slane %v1958, 2
      %v1960 = vadd.f32 %v1958, %v1959
      %v1961 = vrot.slane %v1960, 1
      %v1962 = vadd.f32 %v1960, %v1961
      %vm1963 = vcmask 1040384
      %v1964 = vsel %vm1963, %v1861, %v1962
      %1965 = vst.msk [vmem:[%s181] sm:$0x3] %vm185, %v1964
      %v1982 = vrot.slane %v1704, 7
      %vm1983 = vcmask 1041409
      %v1984 = vsel %vm1983, %v1982, %v1698
      %v1985 = vrot.slane %v1710, 6
      %vm1986 = vcmask 1042434
      %v1987 = vsel %vm1986, %v1985, %v1984
      %v1988 = vrot.slane %v1716, 5
      %vm1989 = vcmask 1043459
      %v1990 = vsel %vm1989, %v1988, %v1987
      %v1991 = vrot.slane %v1722, 4
      %vm1992 = vcmask 1044484
      %v1993 = vsel %vm1992, %v1991, %v1990
      %v1994 = vrot.slane %v1728, 3
      %vm1995 = vcmask 1045509
      %v1996 = vsel %vm1995, %v1994, %v1993
      %v1997 = vrot.slane %v1734, 2
      %vm1998 = vcmask 1046534
      %v1999 = vsel %vm1998, %v1997, %v1996
      %v2000 = vrot.slane %v1740, 1
      %vm2001 = vcmask 1047559
      %v2002 = vsel %vm2001, %v2000, %v1999
      %v2003 = vrot.slane %v1752, 7
      %v2004 = vsel %vm1983, %v2003, %v1746
      %v2005 = vrot.slane %v1758, 6
      %v2006 = vsel %vm1986, %v2005, %v2004
      %v2007 = vrot.slane %v1764, 5
      %v2008 = vsel %vm1989, %v2007, %v2006
      %v2009 = vrot.slane %v1770, 4
      %v2010 = vsel %vm1992, %v2009, %v2008
      %v2011 = vrot.slane %v1776, 3
      %v2012 = vsel %vm1995, %v2011, %v2010
      %v2013 = vrot.slane %v1782, 2
      %v2014 = vsel %vm1998, %v2013, %v2012
      %v2015 = vrot.slane %v1788, 1
      %v2016 = vsel %vm2001, %v2015, %v2014
      %v2019 = vrot.slane %v1698, 1
      %v2020 = vsel %vm1983, %v1704, %v2019
      %v2021 = vrot.slane %v1710, 7
      %v2022 = vsel %vm1986, %v2021, %v2020
      %v2023 = vrot.slane %v1716, 6
      %v2024 = vsel %vm1989, %v2023, %v2022
      %v2025 = vrot.slane %v1722, 5
      %v2026 = vsel %vm1992, %v2025, %v2024
      %v2027 = vrot.slane %v1728, 4
      %v2028 = vsel %vm1995, %v2027, %v2026
      %v2029 = vrot.slane %v1734, 3
      %v2030 = vsel %vm1998, %v2029, %v2028
      %v2031 = vrot.slane %v1740, 2
      %v2032 = vsel %vm2001, %v2031, %v2030
      %v2033 = vrot.slane %v1746, 1
      %v2034 = vsel %vm1983, %v1752, %v2033
      %v2035 = vrot.slane %v1758, 7
      %v2036 = vsel %vm1986, %v2035, %v2034
      %v2037 = vrot.slane %v1764, 6
      %v2038 = vsel %vm1989, %v2037, %v2036
      %v2039 = vrot.slane %v1770, 5
      %v2040 = vsel %vm1992, %v2039, %v2038
      %v2041 = vrot.slane %v1776, 4
      %v2042 = vsel %vm1995, %v2041, %v2040
      %v2043 = vrot.slane %v1782, 3
      %v2044 = vsel %vm1998, %v2043, %v2042
      %v2045 = vrot.slane %v1788, 2
      %v2046 = vsel %vm2001, %v2045, %v2044
      %2047 = vrot.lane.b32.xlu0 %v2032, 16
      %v2048 = vpop.permute.xlu0 %2047
      %2049 = vrot.lane.b32.xlu0 %v2046, 16
      %v2050 = vpop.permute.xlu0 %2049
      %v2053 = vrot.slane %v1698, 2
      %v2054 = vrot.slane %v1704, 1
      %v2055 = vsel %vm1983, %v2054, %v2053
      %v2056 = vsel %vm1986, %v1710, %v2055
      %v2057 = vrot.slane %v1716, 7
      %v2058 = vsel %vm1989, %v2057, %v2056
      %v2059 = vrot.slane %v1722, 6
      %v2060 = vsel %vm1992, %v2059, %v2058
      %v2061 = vrot.slane %v1728, 5
      %v2062 = vsel %vm1995, %v2061, %v2060
      %v2063 = vrot.slane %v1734, 4
      %v2064 = vsel %vm1998, %v2063, %v2062
      %v2065 = vrot.slane %v1740, 3
      %v2066 = vsel %vm2001, %v2065, %v2064
      %v2067 = vrot.slane %v1746, 2
      %v2068 = vrot.slane %v1752, 1
      %v2069 = vsel %vm1983, %v2068, %v2067
      %v2070 = vsel %vm1986, %v1758, %v2069
      %v2071 = vrot.slane %v1764, 7
      %v2072 = vsel %vm1989, %v2071, %v2070
      %v2073 = vrot.slane %v1770, 6
      %v2074 = vsel %vm1992, %v2073, %v2072
      %v2075 = vrot.slane %v1776, 5
      %v2076 = vsel %vm1995, %v2075, %v2074
      %v2077 = vrot.slane %v1782, 4
      %v2078 = vsel %vm1998, %v2077, %v2076
      %v2079 = vrot.slane %v1788, 3
      %v2080 = vsel %vm2001, %v2079, %v2078
      %2081 = vrot.lane.b32.xlu0 %v2066, 32
      %v2082 = vpop.permute.xlu0 %2081
      %2083 = vrot.lane.b32.xlu0 %v2080, 32
      %v2084 = vpop.permute.xlu0 %2083
      %v2087 = vrot.slane %v1698, 3
      %v2088 = vrot.slane %v1704, 2
      %v2089 = vsel %vm1983, %v2088, %v2087
      %v2090 = vrot.slane %v1710, 1
      %v2091 = vsel %vm1986, %v2090, %v2089
      %v2092 = vsel %vm1989, %v1716, %v2091
      %v2093 = vrot.slane %v1722, 7
      %v2094 = vsel %vm1992, %v2093, %v2092
      %v2095 = vrot.slane %v1728, 6
      %v2096 = vsel %vm1995, %v2095, %v2094
      %v2097 = vrot.slane %v1734, 5
      %v2098 = vsel %vm1998, %v2097, %v2096
      %v2099 = vrot.slane %v1740, 4
      %v2100 = vsel %vm2001, %v2099, %v2098
      %v2101 = vrot.slane %v1746, 3
      %v2102 = vrot.slane %v1752, 2
      %v2103 = vsel %vm1983, %v2102, %v2101
      %v2104 = vrot.slane %v1758, 1
      %v2105 = vsel %vm1986, %v2104, %v2103
      %v2106 = vsel %vm1989, %v1764, %v2105
      %v2107 = vrot.slane %v1770, 7
      %v2108 = vsel %vm1992, %v2107, %v2106
      %v2109 = vrot.slane %v1776, 6
      %v2110 = vsel %vm1995, %v2109, %v2108
      %v2111 = vrot.slane %v1782, 5
      %v2112 = vsel %vm1998, %v2111, %v2110
      %v2113 = vrot.slane %v1788, 4
      %v2114 = vsel %vm2001, %v2113, %v2112
      %2115 = vrot.lane.b32.xlu0 %v2100, 48
      %v2116 = vpop.permute.xlu0 %2115
      %2117 = vrot.lane.b32.xlu0 %v2114, 48
      %v2118 = vpop.permute.xlu0 %2117
      %v2121 = vrot.slane %v1698, 4
      %v2122 = vrot.slane %v1704, 3
      %v2123 = vsel %vm1983, %v2122, %v2121
      %v2124 = vrot.slane %v1710, 2
      %v2125 = vsel %vm1986, %v2124, %v2123
      %v2126 = vrot.slane %v1716, 1
      %v2127 = vsel %vm1989, %v2126, %v2125
      %v2128 = vsel %vm1992, %v1722, %v2127
      %v2129 = vrot.slane %v1728, 7
      %v2130 = vsel %vm1995, %v2129, %v2128
      %v2131 = vrot.slane %v1734, 6
      %v2132 = vsel %vm1998, %v2131, %v2130
      %v2133 = vrot.slane %v1740, 5
      %v2134 = vsel %vm2001, %v2133, %v2132
      %v2135 = vrot.slane %v1746, 4
      %v2136 = vrot.slane %v1752, 3
      %v2137 = vsel %vm1983, %v2136, %v2135
      %v2138 = vrot.slane %v1758, 2
      %v2139 = vsel %vm1986, %v2138, %v2137
      %v2140 = vrot.slane %v1764, 1
      %v2141 = vsel %vm1989, %v2140, %v2139
      %v2142 = vsel %vm1992, %v1770, %v2141
      %v2143 = vrot.slane %v1776, 7
      %v2144 = vsel %vm1995, %v2143, %v2142
      %v2145 = vrot.slane %v1782, 6
      %v2146 = vsel %vm1998, %v2145, %v2144
      %v2147 = vrot.slane %v1788, 5
      %v2148 = vsel %vm2001, %v2147, %v2146
      %2149 = vrot.lane.b32.xlu0 %v2134, 64
      %v2150 = vpop.permute.xlu0 %2149
      %2151 = vrot.lane.b32.xlu0 %v2148, 64
      %v2152 = vpop.permute.xlu0 %2151
      %v2155 = vrot.slane %v1698, 5
      %v2156 = vrot.slane %v1704, 4
      %v2157 = vsel %vm1983, %v2156, %v2155
      %v2158 = vrot.slane %v1710, 3
      %v2159 = vsel %vm1986, %v2158, %v2157
      %v2160 = vrot.slane %v1716, 2
      %v2161 = vsel %vm1989, %v2160, %v2159
      %v2162 = vrot.slane %v1722, 1
      %v2163 = vsel %vm1992, %v2162, %v2161
      %v2164 = vsel %vm1995, %v1728, %v2163
      %v2165 = vrot.slane %v1734, 7
      %v2166 = vsel %vm1998, %v2165, %v2164
      %v2167 = vrot.slane %v1740, 6
      %v2168 = vsel %vm2001, %v2167, %v2166
      %v2169 = vrot.slane %v1746, 5
      %v2170 = vrot.slane %v1752, 4
      %v2171 = vsel %vm1983, %v2170, %v2169
      %v2172 = vrot.slane %v1758, 3
      %v2173 = vsel %vm1986, %v2172, %v2171
      %v2174 = vrot.slane %v1764, 2
      %v2175 = vsel %vm1989, %v2174, %v2173
      %v2176 = vrot.slane %v1770, 1
      %v2177 = vsel %vm1992, %v2176, %v2175
      %v2178 = vsel %vm1995, %v1776, %v2177
      %v2179 = vrot.slane %v1782, 7
      %v2180 = vsel %vm1998, %v2179, %v2178
      %v2181 = vrot.slane %v1788, 6
      %v2182 = vsel %vm2001, %v2181, %v2180
      %2183 = vrot.lane.b32.xlu0 %v2168, 80
      %v2184 = vpop.permute.xlu0 %2183
      %2185 = vrot.lane.b32.xlu0 %v2182, 80
      %v2186 = vpop.permute.xlu0 %2185
      %v2189 = vrot.slane %v1698, 6
      %v2190 = vrot.slane %v1704, 5
      %v2191 = vsel %vm1983, %v2190, %v2189
      %v2192 = vrot.slane %v1710, 4
      %v2193 = vsel %vm1986, %v2192, %v2191
      %v2194 = vrot.slane %v1716, 3
      %v2195 = vsel %vm1989, %v2194, %v2193
      %v2196 = vrot.slane %v1722, 2
      %v2197 = vsel %vm1992, %v2196, %v2195
      %v2198 = vrot.slane %v1728, 1
      %v2199 = vsel %vm1995, %v2198, %v2197
      %v2200 = vsel %vm1998, %v1734, %v2199
      %v2201 = vrot.slane %v1740, 7
      %v2202 = vsel %vm2001, %v2201, %v2200
      %v2203 = vrot.slane %v1746, 6
      %v2204 = vrot.slane %v1752, 5
      %v2205 = vsel %vm1983, %v2204, %v2203
      %v2206 = vrot.slane %v1758, 4
      %v2207 = vsel %vm1986, %v2206, %v2205
      %v2208 = vrot.slane %v1764, 3
      %v2209 = vsel %vm1989, %v2208, %v2207
      %v2210 = vrot.slane %v1770, 2
      %v2211 = vsel %vm1992, %v2210, %v2209
      %v2212 = vrot.slane %v1776, 1
      %v2213 = vsel %vm1995, %v2212, %v2211
      %v2214 = vsel %vm1998, %v1782, %v2213
      %v2215 = vrot.slane %v1788, 7
      %v2216 = vsel %vm2001, %v2215, %v2214
      %2217 = vrot.lane.b32.xlu0 %v2202, 96
      %v2218 = vpop.permute.xlu0 %2217
      %2219 = vrot.lane.b32.xlu0 %v2216, 96
      %v2220 = vpop.permute.xlu0 %2219
      %v2223 = vrot.slane %v1698, 7
      %v2224 = vrot.slane %v1704, 6
      %v2225 = vsel %vm1983, %v2224, %v2223
      %v2226 = vrot.slane %v1710, 5
      %v2227 = vsel %vm1986, %v2226, %v2225
      %v2228 = vrot.slane %v1716, 4
      %v2229 = vsel %vm1989, %v2228, %v2227
      %v2230 = vrot.slane %v1722, 3
      %v2231 = vsel %vm1992, %v2230, %v2229
      %v2232 = vrot.slane %v1728, 2
      %v2233 = vsel %vm1995, %v2232, %v2231
      %v2234 = vrot.slane %v1734, 1
      %v2235 = vsel %vm1998, %v2234, %v2233
      %v2236 = vsel %vm2001, %v1740, %v2235
      %v2237 = vrot.slane %v1746, 7
      %v2238 = vrot.slane %v1752, 6
      %v2239 = vsel %vm1983, %v2238, %v2237
      %v2240 = vrot.slane %v1758, 5
      %v2241 = vsel %vm1986, %v2240, %v2239
      %v2242 = vrot.slane %v1764, 4
      %v2243 = vsel %vm1989, %v2242, %v2241
      %v2244 = vrot.slane %v1770, 3
      %v2245 = vsel %vm1992, %v2244, %v2243
      %v2246 = vrot.slane %v1776, 2
      %v2247 = vsel %vm1995, %v2246, %v2245
      %v2248 = vrot.slane %v1782, 1
      %v2249 = vsel %vm1998, %v2248, %v2247
      %v2250 = vsel %vm2001, %v1788, %v2249
      %2251 = vrot.lane.b32.xlu0 %v2236, 112
      %v2252 = vpop.permute.xlu0 %2251
      %2253 = vrot.lane.b32.xlu0 %v2250, 112
      %v2254 = vpop.permute.xlu0 %2253
      %v2273 = vrot.slane %v1707, 7
      %v2274 = vsel %vm1983, %v2273, %v1701
      %v2275 = vrot.slane %v1713, 6
      %v2276 = vsel %vm1986, %v2275, %v2274
      %v2277 = vrot.slane %v1719, 5
      %v2278 = vsel %vm1989, %v2277, %v2276
      %v2279 = vrot.slane %v1725, 4
      %v2280 = vsel %vm1992, %v2279, %v2278
      %v2281 = vrot.slane %v1731, 3
      %v2282 = vsel %vm1995, %v2281, %v2280
      %v2283 = vrot.slane %v1737, 2
      %v2284 = vsel %vm1998, %v2283, %v2282
      %v2285 = vrot.slane %v1743, 1
      %v2286 = vsel %vm2001, %v2285, %v2284
      %v2287 = vrot.slane %v1755, 7
      %v2288 = vsel %vm1983, %v2287, %v1749
      %v2289 = vrot.slane %v1761, 6
      %v2290 = vsel %vm1986, %v2289, %v2288
      %v2291 = vrot.slane %v1767, 5
      %v2292 = vsel %vm1989, %v2291, %v2290
      %v2293 = vrot.slane %v1773, 4
      %v2294 = vsel %vm1992, %v2293, %v2292
      %v2295 = vrot.slane %v1779, 3
      %v2296 = vsel %vm1995, %v2295, %v2294
      %v2297 = vrot.slane %v1785, 2
      %v2298 = vsel %vm1998, %v2297, %v2296
      %v2299 = vrot.slane %v1791, 1
      %v2300 = vsel %vm2001, %v2299, %v2298
      %v2303 = vrot.slane %v1701, 1
      %v2304 = vsel %vm1983, %v1707, %v2303
      %v2305 = vrot.slane %v1713, 7
      %v2306 = vsel %vm1986, %v2305, %v2304
      %v2307 = vrot.slane %v1719, 6
      %v2308 = vsel %vm1989, %v2307, %v2306
      %v2309 = vrot.slane %v1725, 5
      %v2310 = vsel %vm1992, %v2309, %v2308
      %v2311 = vrot.slane %v1731, 4
      %v2312 = vsel %vm1995, %v2311, %v2310
      %v2313 = vrot.slane %v1737, 3
      %v2314 = vsel %vm1998, %v2313, %v2312
      %v2315 = vrot.slane %v1743, 2
      %v2316 = vsel %vm2001, %v2315, %v2314
      %v2317 = vrot.slane %v1749, 1
      %v2318 = vsel %vm1983, %v1755, %v2317
      %v2319 = vrot.slane %v1761, 7
      %v2320 = vsel %vm1986, %v2319, %v2318
      %v2321 = vrot.slane %v1767, 6
      %v2322 = vsel %vm1989, %v2321, %v2320
      %v2323 = vrot.slane %v1773, 5
      %v2324 = vsel %vm1992, %v2323, %v2322
      %v2325 = vrot.slane %v1779, 4
      %v2326 = vsel %vm1995, %v2325, %v2324
      %v2327 = vrot.slane %v1785, 3
      %v2328 = vsel %vm1998, %v2327, %v2326
      %v2329 = vrot.slane %v1791, 2
      %v2330 = vsel %vm2001, %v2329, %v2328
      %2331 = vrot.lane.b32.xlu0 %v2316, 16
      %v2332 = vpop.permute.xlu0 %2331
      %2333 = vrot.lane.b32.xlu0 %v2330, 16
      %v2334 = vpop.permute.xlu0 %2333
      %v2337 = vrot.slane %v1701, 2
      %v2338 = vrot.slane %v1707, 1
      %v2339 = vsel %vm1983, %v2338, %v2337
      %v2340 = vsel %vm1986, %v1713, %v2339
      %v2341 = vrot.slane %v1719, 7
      %v2342 = vsel %vm1989, %v2341, %v2340
      %v2343 = vrot.slane %v1725, 6
      %v2344 = vsel %vm1992, %v2343, %v2342
      %v2345 = vrot.slane %v1731, 5
      %v2346 = vsel %vm1995, %v2345, %v2344
      %v2347 = vrot.slane %v1737, 4
      %v2348 = vsel %vm1998, %v2347, %v2346
      %v2349 = vrot.slane %v1743, 3
      %v2350 = vsel %vm2001, %v2349, %v2348
      %v2351 = vrot.slane %v1749, 2
      %v2352 = vrot.slane %v1755, 1
      %v2353 = vsel %vm1983, %v2352, %v2351
      %v2354 = vsel %vm1986, %v1761, %v2353
      %v2355 = vrot.slane %v1767, 7
      %v2356 = vsel %vm1989, %v2355, %v2354
      %v2357 = vrot.slane %v1773, 6
      %v2358 = vsel %vm1992, %v2357, %v2356
      %v2359 = vrot.slane %v1779, 5
      %v2360 = vsel %vm1995, %v2359, %v2358
      %v2361 = vrot.slane %v1785, 4
      %v2362 = vsel %vm1998, %v2361, %v2360
      %v2363 = vrot.slane %v1791, 3
      %v2364 = vsel %vm2001, %v2363, %v2362
      %2365 = vrot.lane.b32.xlu0 %v2350, 32
      %v2366 = vpop.permute.xlu0 %2365
      %2367 = vrot.lane.b32.xlu0 %v2364, 32
      %v2368 = vpop.permute.xlu0 %2367
      %v2371 = vrot.slane %v1701, 3
      %v2372 = vrot.slane %v1707, 2
      %v2373 = vsel %vm1983, %v2372, %v2371
      %v2374 = vrot.slane %v1713, 1
      %v2375 = vsel %vm1986, %v2374, %v2373
      %v2376 = vsel %vm1989, %v1719, %v2375
      %v2377 = vrot.slane %v1725, 7
      %v2378 = vsel %vm1992, %v2377, %v2376
      %v2379 = vrot.slane %v1731, 6
      %v2380 = vsel %vm1995, %v2379, %v2378
      %v2381 = vrot.slane %v1737, 5
      %v2382 = vsel %vm1998, %v2381, %v2380
      %v2383 = vrot.slane %v1743, 4
      %v2384 = vsel %vm2001, %v2383, %v2382
      %v2385 = vrot.slane %v1749, 3
      %v2386 = vrot.slane %v1755, 2
      %v2387 = vsel %vm1983, %v2386, %v2385
      %v2388 = vrot.slane %v1761, 1
      %v2389 = vsel %vm1986, %v2388, %v2387
      %v2390 = vsel %vm1989, %v1767, %v2389
      %v2391 = vrot.slane %v1773, 7
      %v2392 = vsel %vm1992, %v2391, %v2390
      %v2393 = vrot.slane %v1779, 6
      %v2394 = vsel %vm1995, %v2393, %v2392
      %v2395 = vrot.slane %v1785, 5
      %v2396 = vsel %vm1998, %v2395, %v2394
      %v2397 = vrot.slane %v1791, 4
      %v2398 = vsel %vm2001, %v2397, %v2396
      %2399 = vrot.lane.b32.xlu0 %v2384, 48
      %v2400 = vpop.permute.xlu0 %2399
      %2401 = vrot.lane.b32.xlu0 %v2398, 48
      %v2402 = vpop.permute.xlu0 %2401
      %v2405 = vrot.slane %v1701, 4
      %v2406 = vrot.slane %v1707, 3
      %v2407 = vsel %vm1983, %v2406, %v2405
      %v2408 = vrot.slane %v1713, 2
      %v2409 = vsel %vm1986, %v2408, %v2407
      %v2410 = vrot.slane %v1719, 1
      %v2411 = vsel %vm1989, %v2410, %v2409
      %v2412 = vsel %vm1992, %v1725, %v2411
      %v2413 = vrot.slane %v1731, 7
      %v2414 = vsel %vm1995, %v2413, %v2412
      %v2415 = vrot.slane %v1737, 6
      %v2416 = vsel %vm1998, %v2415, %v2414
      %v2417 = vrot.slane %v1743, 5
      %v2418 = vsel %vm2001, %v2417, %v2416
      %v2419 = vrot.slane %v1749, 4
      %v2420 = vrot.slane %v1755, 3
      %v2421 = vsel %vm1983, %v2420, %v2419
      %v2422 = vrot.slane %v1761, 2
      %v2423 = vsel %vm1986, %v2422, %v2421
      %v2424 = vrot.slane %v1767, 1
      %v2425 = vsel %vm1989, %v2424, %v2423
      %v2426 = vsel %vm1992, %v1773, %v2425
      %v2427 = vrot.slane %v1779, 7
      %v2428 = vsel %vm1995, %v2427, %v2426
      %v2429 = vrot.slane %v1785, 6
      %v2430 = vsel %vm1998, %v2429, %v2428
      %v2431 = vrot.slane %v1791, 5
      %v2432 = vsel %vm2001, %v2431, %v2430
      %2433 = vrot.lane.b32.xlu0 %v2418, 64
      %v2434 = vpop.permute.xlu0 %2433
      %2435 = vrot.lane.b32.xlu0 %v2432, 64
      %v2436 = vpop.permute.xlu0 %2435
      %v2439 = vrot.slane %v1701, 5
      %v2440 = vrot.slane %v1707, 4
      %v2441 = vsel %vm1983, %v2440, %v2439
      %v2442 = vrot.slane %v1713, 3
      %v2443 = vsel %vm1986, %v2442, %v2441
      %v2444 = vrot.slane %v1719, 2
      %v2445 = vsel %vm1989, %v2444, %v2443
      %v2446 = vrot.slane %v1725, 1
      %v2447 = vsel %vm1992, %v2446, %v2445
      %v2448 = vsel %vm1995, %v1731, %v2447
      %v2449 = vrot.slane %v1737, 7
      %v2450 = vsel %vm1998, %v2449, %v2448
      %v2451 = vrot.slane %v1743, 6
      %v2452 = vsel %vm2001, %v2451, %v2450
      %v2453 = vrot.slane %v1749, 5
      %v2454 = vrot.slane %v1755, 4
      %v2455 = vsel %vm1983, %v2454, %v2453
      %v2456 = vrot.slane %v1761, 3
      %v2457 = vsel %vm1986, %v2456, %v2455
      %v2458 = vrot.slane %v1767, 2
      %v2459 = vsel %vm1989, %v2458, %v2457
      %v2460 = vrot.slane %v1773, 1
      %v2461 = vsel %vm1992, %v2460, %v2459
      %v2462 = vsel %vm1995, %v1779, %v2461
      %v2463 = vrot.slane %v1785, 7
      %v2464 = vsel %vm1998, %v2463, %v2462
      %v2465 = vrot.slane %v1791, 6
      %v2466 = vsel %vm2001, %v2465, %v2464
      %2467 = vrot.lane.b32.xlu0 %v2452, 80
      %v2468 = vpop.permute.xlu0 %2467
      %2469 = vrot.lane.b32.xlu0 %v2466, 80
      %v2470 = vpop.permute.xlu0 %2469
      %v2473 = vrot.slane %v1701, 6
      %v2474 = vrot.slane %v1707, 5
      %v2475 = vsel %vm1983, %v2474, %v2473
      %v2476 = vrot.slane %v1713, 4
      %v2477 = vsel %vm1986, %v2476, %v2475
      %v2478 = vrot.slane %v1719, 3
      %v2479 = vsel %vm1989, %v2478, %v2477
      %v2480 = vrot.slane %v1725, 2
      %v2481 = vsel %vm1992, %v2480, %v2479
      %v2482 = vrot.slane %v1731, 1
      %v2483 = vsel %vm1995, %v2482, %v2481
      %v2484 = vsel %vm1998, %v1737, %v2483
      %v2485 = vrot.slane %v1743, 7
      %v2486 = vsel %vm2001, %v2485, %v2484
      %v2487 = vrot.slane %v1749, 6
      %v2488 = vrot.slane %v1755, 5
      %v2489 = vsel %vm1983, %v2488, %v2487
      %v2490 = vrot.slane %v1761, 4
      %v2491 = vsel %vm1986, %v2490, %v2489
      %v2492 = vrot.slane %v1767, 3
      %v2493 = vsel %vm1989, %v2492, %v2491
      %v2494 = vrot.slane %v1773, 2
      %v2495 = vsel %vm1992, %v2494, %v2493
      %v2496 = vrot.slane %v1779, 1
      %v2497 = vsel %vm1995, %v2496, %v2495
      %v2498 = vsel %vm1998, %v1785, %v2497
      %v2499 = vrot.slane %v1791, 7
      %v2500 = vsel %vm2001, %v2499, %v2498
      %2501 = vrot.lane.b32.xlu0 %v2486, 96
      %v2502 = vpop.permute.xlu0 %2501
      %2503 = vrot.lane.b32.xlu0 %v2500, 96
      %v2504 = vpop.permute.xlu0 %2503
      %v2507 = vrot.slane %v1701, 7
      %v2508 = vrot.slane %v1707, 6
      %v2509 = vsel %vm1983, %v2508, %v2507
      %v2510 = vrot.slane %v1713, 5
      %v2511 = vsel %vm1986, %v2510, %v2509
      %v2512 = vrot.slane %v1719, 4
      %v2513 = vsel %vm1989, %v2512, %v2511
      %v2514 = vrot.slane %v1725, 3
      %v2515 = vsel %vm1992, %v2514, %v2513
      %v2516 = vrot.slane %v1731, 2
      %v2517 = vsel %vm1995, %v2516, %v2515
      %v2518 = vrot.slane %v1737, 1
      %v2519 = vsel %vm1998, %v2518, %v2517
      %v2520 = vsel %vm2001, %v1743, %v2519
      %v2521 = vrot.slane %v1749, 7
      %v2522 = vrot.slane %v1755, 6
      %v2523 = vsel %vm1983, %v2522, %v2521
      %v2524 = vrot.slane %v1761, 5
      %v2525 = vsel %vm1986, %v2524, %v2523
      %v2526 = vrot.slane %v1767, 4
      %v2527 = vsel %vm1989, %v2526, %v2525
      %v2528 = vrot.slane %v1773, 3
      %v2529 = vsel %vm1992, %v2528, %v2527
      %v2530 = vrot.slane %v1779, 2
      %v2531 = vsel %vm1995, %v2530, %v2529
      %v2532 = vrot.slane %v1785, 1
      %v2533 = vsel %vm1998, %v2532, %v2531
      %v2534 = vsel %vm2001, %v1791, %v2533
      %2535 = vrot.lane.b32.xlu0 %v2520, 112
      %v2536 = vpop.permute.xlu0 %2535
      %2537 = vrot.lane.b32.xlu0 %v2534, 112
      %v2538 = vpop.permute.xlu0 %2537
      %v2541 = vsel %vm182, %v2002, %v2048
      %v2542 = vsel %vm182, %v2016, %v2050
      %v2543 = vsel %vm1287, %v2541, %v2082
      %v2544 = vsel %vm1287, %v2542, %v2084
      %v2545 = vsel %vm1320, %v2543, %v2116
      %v2546 = vsel %vm1320, %v2544, %v2118
      %v2547 = vsel %vm1353, %v2545, %v2150
      %v2548 = vsel %vm1353, %v2546, %v2152
      %v2549 = vsel %vm1386, %v2547, %v2184
      %v2550 = vsel %vm1386, %v2548, %v2186
      %v2551 = vsel %vm1419, %v2549, %v2218
      %v2552 = vsel %vm1419, %v2550, %v2220
      %v2553 = vsel %vm1452, %v2551, %v2252
      %v2554 = vsel %vm1452, %v2552, %v2254
      %v2555 = vsel %vm182, %v2286, %v2332
      %v2556 = vsel %vm182, %v2300, %v2334
      %v2557 = vsel %vm1287, %v2555, %v2366
      %v2558 = vsel %vm1287, %v2556, %v2368
      %v2559 = vsel %vm1320, %v2557, %v2400
      %v2560 = vsel %vm1320, %v2558, %v2402
      %v2561 = vsel %vm1353, %v2559, %v2434
      %v2562 = vsel %vm1353, %v2560, %v2436
      %v2563 = vsel %vm1386, %v2561, %v2468
      %v2564 = vsel %vm1386, %v2562, %v2470
      %v2565 = vsel %vm1419, %v2563, %v2502
      %v2566 = vsel %vm1419, %v2564, %v2504
      %v2567 = vsel %vm1452, %v2565, %v2536
      %v2568 = vsel %vm1452, %v2566, %v2538
      %2569 = vst [vmem:[%s177] sm:$0xff] %v2553
      %2570 = vst [vmem:[%s177 + $0x8] sm:$0xff] %v2567
      %2571 = vst [vmem:[%s177 + $0x10] sm:$0xff] %v2554
      %2572 = vst [vmem:[%s177 + $0x18] sm:$0xff] %v2568
      %p2573 = scmp.lt.s32.totalorder %s15, 1
      %s2574 = scalar_select %p2573, %s15, 1
      %s2575 = smul.addr %s2574, 4
      %s2576 = smul.addr %s2575, 8
      %s2577 = scalar_lea.vmem %s2, %s2576
      %p2578 = scmp.lt.s32.totalorder %s15, 1
      %s2579 = scalar_select %p2578, %s15, 1
      %s2580 = smul.addr %s2579, 2
      %s2581 = scalar_lea.vmem %s3, %s2580
      // Predicated region
      $region29: #{residual_block.3} parent=27 // pred_check
        %p2582 = pneg %p80
      $region30: #{residual_block.3} parent=27 // pred_check_branch
        %2584 = sbr.rel (%p2582) target = $region32
      $region31: #{residual_block.3} parent=27 // pred_region
        _
      $region32: #{residual_block.3} parent=27 // pred_fallthru
        _
      // Predicated region
      $region33: #{residual_block.3} parent=27 // pred_check
        %p2585 = pneg %p106
      $region34: #{residual_block.3} parent=27 // pred_check_branch
        %2587 = sbr.rel (%p2585) target = $region36
      $region35: #{residual_block.3} parent=27 // pred_region
        _
      $region36: #{residual_block.3} parent=27 // pred_fallthru
        _
    $region28: #{residual_block.3} parent=5 // pred_fallthru
      _
    %p2588 = scmp.le.s32.totalorder 2, %s10
    // Predicated region
    $region37: #{residual_block.3} parent=5 // pred_check
      %p2589 = pneg %p2588
    $region38: #{residual_block.3} parent=5 // pred_check_branch
      %2591 = sbr.rel (%p2589) target = $region40
    $region39: #{residual_block.3} parent=5 // pred_region
      %s2592 = ssub.s32 %s10, 2
      // Predicated region
      $region41: #{residual_block.3} parent=39 // pred_check
        %p2593 = pneg %p86
      $region42: #{residual_block.3} parent=39 // pred_check_branch
        %2595 = sbr.rel (%p2593) target = $region44
      $region43: #{residual_block.3} parent=39 // pred_region
        %p2596 = scmp.lt.s32.totalorder %s16, 1
        %s2597 = scalar_select %p2596, %s16, 1
        %s2598 = smul.addr %s2597, 4
        %s2599 = smul.addr %s2598, 8
        %s2600 = scalar_lea.vmem %s2, %s2599
      $region44: #{residual_block.3} parent=39 // pred_fallthru
        _
      // Predicated region
      $region45: #{residual_block.3} parent=39 // pred_check
        %p2601 = pneg %p112
      $region46: #{residual_block.3} parent=39 // pred_check_branch
        %2603 = sbr.rel (%p2601) target = $region48
      $region47: #{residual_block.3} parent=39 // pred_region
        %p2604 = scmp.lt.s32.totalorder %s16, 1
        %s2605 = scalar_select %p2604, %s16, 1
        %s2606 = smul.addr %s2605, 2
        %s2607 = scalar_lea.vmem %s3, %s2606
      $region48: #{residual_block.3} parent=39 // pred_fallthru
        _
    $region40: #{residual_block.3} parent=5 // pred_fallthru
      _
  $region6: #{residual_block.3} parent=0 // loop_footer
    %s14 = sadd.s32 1, %s10
  $region7: #{residual_block.3} parent=0 // loop_footer_branch
    %9 = sbr.rel target = $region3
  $region8: #{residual_block.3} parent=0 // loop_exit
    _

</llo_original>
